<compile_context>
chip_gen: v5e
topology: v5e:2x2
jax: 0.10.0
libtpu: 0.0.40
codegen_flags: <defaults>
</compile_context>

<pallas_src>
import jax
import jax.numpy as jnp
from jax.experimental import pallas as pl
from jax.experimental.pallas import tpu as pltpu


def _round_up(x, m):
    return (x + m - 1) // m * m


def _pad_to(x, shape, value=0.0):
    pads = [(0, s - d) for d, s in zip(x.shape, shape)]
    return jnp.pad(x, pads, constant_values=value)


def _pad_gate_lanes(x, H, Hp):
    """Per-gate lane padding of the last axis: (..., 4*H) -> (..., 4*Hp)."""
    xr = x.reshape(x.shape[:-1] + (4, H))
    pads = [(0, 0)] * (xr.ndim - 1) + [(0, Hp - H)]
    return jnp.pad(xr, pads).reshape(x.shape[:-1] + (4 * Hp,))


# ------------------------------ Pallas kernel --------------------------------

def _seq2seq_kernel(tf_ref,            # (T,) int32  [SMEM, scalar prefetch]
                    src_gates_ref,     # (S, Bp, 4Hp)  resident (step 0 only)
                    tgt_gates_ref,     # (1, Bp, 4Hp)  block i = target[i] gates
                    enc_whh_ref,       # (Hp, 4Hp)
                    dec_whh_ref,       # (Hp, 4Hp)
                    fused_tbl_ref,     # (Vp, 4Hp) = dec_emb @ W_ih_dec + b_dec
                    dec_wout_ref,      # (Hp, Vp)
                    dec_bout_ref,      # (1, Vp)   padded vocab lanes = -1e30
                    out_ref,           # (1, Bp, Vp)  block i
                    h_ref, c_ref, gx_ref):   # persistent VMEM scratch
    i = pl.program_id(0)
    T = tf_ref.shape[0]
    S = src_gates_ref.shape[0]
    Bp = h_ref.shape[0]
    Hp = h_ref.shape[1]
    Vp = dec_wout_ref.shape[1]

    def lstm_update(pre_gates, whh_ref):
        # pre_gates already contains x @ W_ih + b; only the serial h @ W_hh
        # matmul sits on the recurrent critical path.
        gates = pre_gates + jnp.dot(h_ref[...], whh_ref[...],
                                    preferred_element_type=jnp.float32)
        # Hp is a multiple of 128 -> every gate slice is a lane-aligned view.
        i_g = jax.nn.sigmoid(gates[:, 0 * Hp:1 * Hp])
        f_g = jax.nn.sigmoid(gates[:, 1 * Hp:2 * Hp])
        g_g = jnp.tanh(gates[:, 2 * Hp:3 * Hp])
        o_g = jax.nn.sigmoid(gates[:, 3 * Hp:4 * Hp])
        c_new = f_g * c_ref[...] + i_g * g_g
        h_new = o_g * jnp.tanh(c_new)
        h_ref[...] = h_new
        c_ref[...] = c_new
        return h_new

    # --------------------------- encoder (step 0) -----------------------------
    @pl.when(i == 0)
    def _():
        h_ref[...] = jnp.zeros_like(h_ref)
        c_ref[...] = jnp.zeros_like(c_ref)
        # Short static time loop: fully unrolled at trace time so the LLO
        # scheduler sees across-iteration slack.
        for t in range(S):
            lstm_update(src_gates_ref[t], enc_whh_ref)
        gx_ref[...] = tgt_gates_ref[0]          # x = target[0]

    # ------------------- one decoder step per grid iteration ------------------
    h_new = lstm_update(gx_ref[...], dec_whh_ref)
    logits = (jnp.dot(h_new, dec_wout_ref[...],
                      preferred_element_type=jnp.float32) + dec_bout_ref[...])
    out_ref[0] = logits                          # streamed to HBM per step

    tf_i = tf_ref[i]
    has_next = i + 1 < T                         # last step's x is never used

    @pl.when(jnp.logical_and(has_next, tf_i != 0))
    def _():
        # Teacher forcing: next input is target[i]; its gate contribution was
        # precomputed -- no in-kernel work beyond a VMEM copy.
        gx_ref[...] = tgt_gates_ref[0]

    @pl.when(jnp.logical_and(has_next, tf_i == 0))
    def _():
        # Greedy prediction path: argmax over vocab lanes (padded lanes carry
        # -1e30 bias so they never win), then a single onehot @ fused_tbl
        # matmul gives emb(pred) @ W_ih + b directly.
        lane = jax.lax.broadcasted_iota(jnp.int32, (Bp, Vp), 1).astype(jnp.float32)
        m = jnp.max(logits, axis=1, keepdims=True)
        cand = jnp.where(logits == m, lane, float(Vp))
        best = jnp.min(cand, axis=1, keepdims=True)
        onehot = (lane == best).astype(jnp.float32)
        gx_ref[...] = jnp.dot(onehot, fused_tbl_ref[...],
                              preferred_element_type=jnp.float32)


def _seq2seq_pallas(tf_flags, src_gates, tgt_gates,
                    enc_whh, dec_whh, fused_tbl, dec_wout, dec_bout):
    S, Bp, G = src_gates.shape               # G = 4 * Hp
    T = tgt_gates.shape[0]
    Hp = enc_whh.shape[0]
    Vp = dec_wout.shape[1]

    grid_spec = pltpu.PrefetchScalarGridSpec(
        num_scalar_prefetch=1,                # tf_flags -> SMEM
        grid=(T,),                            # one decode step per grid point
        in_specs=[
            pl.BlockSpec((S, Bp, G), lambda i, tf: (0, 0, 0)),   # src_gates (resident)
            pl.BlockSpec((1, Bp, G), lambda i, tf: (i, 0, 0)),   # tgt_gates[i]
            pl.BlockSpec((Hp, G),    lambda i, tf: (0, 0)),      # enc_whh
            pl.BlockSpec((Hp, G),    lambda i, tf: (0, 0)),      # dec_whh
            pl.BlockSpec((Vp, G),    lambda i, tf: (0, 0)),      # fused_tbl
            pl.BlockSpec((Hp, Vp),   lambda i, tf: (0, 0)),      # dec_wout
            pl.BlockSpec((1, Vp),    lambda i, tf: (0, 0)),      # dec_bout
        ],
        out_specs=pl.BlockSpec((1, Bp, Vp), lambda i, tf: (i, 0, 0)),
        scratch_shapes=[pltpu.VMEM((Bp, Hp), jnp.float32),   # h
                        pltpu.VMEM((Bp, Hp), jnp.float32),   # c
                        pltpu.VMEM((Bp, G), jnp.float32)],   # next-input gates
    )
    return pl.pallas_call(
        _seq2seq_kernel,
        out_shape=jax.ShapeDtypeStruct((T, Bp, Vp), jnp.float32),
        grid_spec=grid_spec,
        compiler_params=pltpu.CompilerParams(
            dimension_semantics=("arbitrary",),       # recurrence over the grid
            vmem_limit_bytes=32 * 1024 * 1024),
    )(tf_flags, src_gates, tgt_gates, enc_whh, dec_whh,
      fused_tbl, dec_wout, dec_bout)


# ------------------------------ Seq2Seq forward -------------------------------

@jax.jit
def seq2seq_forward(params, source, target, tf_draws, teacher_force_ratio=0.5):
    """source: (SRC_LEN, B) int32, target: (TGT_LEN, B) int32,
    tf_draws: (TGT_LEN,) uniform[0,1) (stand-in for per-step random.random()).
    Returns (TGT_LEN, B, VOCAB) float32 logits."""
    SRC_LEN, B = source.shape
    TGT_LEN = target.shape[0]
    V, E = params["enc_emb"].shape
    H = params["enc_whh"].shape[0]

    Bp = max(_round_up(B, 8), 8)      # sublane tile
    Hp = _round_up(H, 128)            # lane tiles
    Vp = _round_up(V, 128)

    # ---- hoist all input-side projections out of the recurrent kernel --------
    src_emb = params["enc_emb"][source]          # (S, B, E)
    tgt_emb = params["dec_emb"][target]          # (T, B, E)

    src_gates = jnp.einsum("sbe,eg->sbg", src_emb, params["enc_wih"]) + params["enc_b"]
    tgt_gates = jnp.einsum("tbe,eg->tbg", tgt_emb, params["dec_wih"]) + params["dec_b"]
    # Fused (embedding lookup ∘ input projection) table; onehot rows sum to 1
    # so folding the bias in is exact.
    fused_tbl = params["dec_emb"] @ params["dec_wih"] + params["dec_b"]     # (V, 4H)

    # Per-gate lane padding (i/f/g/o each a lane-aligned 128-wide block), then
    # batch / vocab row padding.  Padded entries are exactly inert.
    src_gates = _pad_to(_pad_gate_lanes(src_gates, H, Hp), (SRC_LEN, Bp, 4 * Hp))
    tgt_gates = _pad_to(_pad_gate_lanes(tgt_gates, H, Hp), (TGT_LEN, Bp, 4 * Hp))
    fused_tbl = _pad_to(_pad_gate_lanes(fused_tbl, H, Hp), (Vp, 4 * Hp))

    def pad_whh(whh):
        return _pad_to(whh.reshape(H, 4, H), (Hp, 4, Hp)).reshape(Hp, 4 * Hp)

    enc_whh = pad_whh(params["enc_whh"])
    dec_whh = pad_whh(params["dec_whh"])
    dec_wout = _pad_to(params["dec_wout"], (Hp, Vp))
    # Padded vocab lanes get a very negative bias so the in-kernel argmax (and
    # the padded logits we slice off) ignore them.
    dec_bout = _pad_to(params["dec_bout"], (1, Vp), value=-1e30)

    tf_flags = (tf_draws < teacher_force_ratio).astype(jnp.int32)

    out = _seq2seq_pallas(tf_flags, src_gates, tgt_gates,
                          enc_whh, dec_whh, fused_tbl, dec_wout, dec_bout)
    return out[:, :B, :V]


# -------------------------------- param init ----------------------------------

def init_params(key, vocab, emb, hid):
    ks = jax.random.split(key, 9)
    s = 0.1
    return {
        "enc_emb":  s * jax.random.normal(ks[0], (vocab, emb), jnp.float32),
        "enc_wih":  s * jax.random.normal(ks[1], (emb, 4 * hid), jnp.float32),
        "enc_whh":  s * jax.random.normal(ks[2], (hid, 4 * hid), jnp.float32),
        "enc_b":    s * jax.random.normal(ks[3], (1, 4 * hid), jnp.float32),
        "dec_emb":  s * jax.random.normal(ks[4], (vocab, emb), jnp.float32),
        "dec_wih":  s * jax.random.normal(ks[5], (emb, 4 * hid), jnp.float32),
        "dec_whh":  s * jax.random.normal(ks[6], (hid, 4 * hid), jnp.float32),
        "dec_b":    s * jax.random.normal(ks[7], (1, 4 * hid), jnp.float32),
        "dec_wout": s * jax.random.normal(ks[8], (hid, vocab), jnp.float32),
        "dec_bout": jnp.zeros((1, vocab), jnp.float32),
    }


# ----------------------------------- main --------------------------------------

if __name__ == "__main__":
    VOCAB, EMB, HID = 32, 16, 32
    SRC_LEN, TGT_LEN, BATCH = 8, 8, 2

    key = jax.random.PRNGKey(0)
    k_par, k_src, k_tgt, k_tf = jax.random.split(key, 4)

    params = init_params(k_par, VOCAB, EMB, HID)
    source = jax.random.randint(k_src, (SRC_LEN, BATCH), 0, VOCAB, dtype=jnp.int32)
    target = jax.random.randint(k_tgt, (TGT_LEN, BATCH), 0, VOCAB, dtype=jnp.int32)
    # Deterministic stand-in for Python's random.random() in the torch loop.
    tf_draws = jax.random.uniform(k_tf, (TGT_LEN,))

    outputs = seq2seq_forward(params, source, target, tf_draws, 0.5)
    jax.block_until_ready(outputs)

    assert outputs.shape == (TGT_LEN, BATCH, VOCAB)
    assert outputs.dtype == jnp.float32
    assert bool(jnp.all(jnp.isfinite(outputs)))
    print("KERNEL_OK")
</pallas_src>

<mosaic_0001>
module attributes {stable_mosaic.version = 11 : i64} {
  func.func @_seq2seq_kernel(%arg0: i32, %arg1: memref<8xi32, #tpu.memory_space<smem>>, %arg2: memref<8x8x512xf32, #tpu.memory_space<vmem>>, %arg3: memref<1x8x512xf32, #tpu.memory_space<vmem>>, %arg4: memref<128x512xf32, #tpu.memory_space<vmem>>, %arg5: memref<128x512xf32, #tpu.memory_space<vmem>>, %arg6: memref<128x512xf32, #tpu.memory_space<vmem>>, %arg7: memref<128x128xf32, #tpu.memory_space<vmem>>, %arg8: memref<1x128xf32, #tpu.memory_space<vmem>>, %arg9: memref<1x8x128xf32, #tpu.memory_space<vmem>>, %arg10: memref<8x128xf32, #tpu.memory_space<vmem>>, %arg11: memref<8x128xf32, #tpu.memory_space<vmem>>, %arg12: memref<8x512xf32, #tpu.memory_space<vmem>>) attributes {dimension_semantics = [#tpu.dimension_semantics<arbitrary>], iteration_bounds = array<i64: 8>, scalar_prefetch = 1 : i64, scratch_operands = 3 : i64, tpu.core_type = #tpu.core_type<tc>, window_params = [{pipeline_mode = #tpu.pipeline_mode<synchronous>, transform_indices = @transform_0, window_bounds = array<i64: 8, 8, 512>}, {transform_indices = @transform_1, window_bounds = array<i64: 1, 8, 512>}, {pipeline_mode = #tpu.pipeline_mode<synchronous>, transform_indices = @transform_2, window_bounds = array<i64: 128, 512>}, {pipeline_mode = #tpu.pipeline_mode<synchronous>, transform_indices = @transform_3, window_bounds = array<i64: 128, 512>}, {pipeline_mode = #tpu.pipeline_mode<synchronous>, transform_indices = @transform_4, window_bounds = array<i64: 128, 512>}, {pipeline_mode = #tpu.pipeline_mode<synchronous>, transform_indices = @transform_5, window_bounds = array<i64: 128, 128>}, {pipeline_mode = #tpu.pipeline_mode<synchronous>, transform_indices = @transform_6, window_bounds = array<i64: 1, 128>}, {transform_indices = @transform_7, window_bounds = array<i64: 1, 8, 128>}]} {
    %c0_i32 = arith.constant 0 : i32
    %0 = arith.cmpi eq, %arg0, %c0_i32 : i32
    %1 = arith.extui %0 : i1 to i32
    %c0_i32_0 = arith.constant 0 : i32
    %2 = arith.cmpi ne, %1, %c0_i32_0 : i32
    scf.if %2 {
      %cst_27 = arith.constant 0.000000e+00 : f32
      %56 = vector.broadcast %cst_27 : f32 to vector<8x128xf32>
      %c0_28 = arith.constant 0 : index
      %c0_29 = arith.constant 0 : index
      %57 = vector.load %arg10[%c0_28, %c0_29] : memref<8x128xf32, #tpu.memory_space<vmem>>, vector<8x128xf32>
      tpu.vector_store %arg10[%c0_28, %c0_29], %56 {strides = array<i32>} : memref<8x128xf32, #tpu.memory_space<vmem>>, vector<8x128xf32>,
      %cst_30 = arith.constant 0.000000e+00 : f32
      %58 = vector.broadcast %cst_30 : f32 to vector<8x128xf32>
      %c0_31 = arith.constant 0 : index
      %c0_32 = arith.constant 0 : index
      %59 = vector.load %arg11[%c0_31, %c0_32] : memref<8x128xf32, #tpu.memory_space<vmem>>, vector<8x128xf32>
      tpu.vector_store %arg11[%c0_31, %c0_32], %58 {strides = array<i32>} : memref<8x128xf32, #tpu.memory_space<vmem>>, vector<8x128xf32>,
      %c0_33 = arith.constant 0 : index
      %c0_34 = arith.constant 0 : index
      %c0_35 = arith.constant 0 : index
      %60 = vector.load %arg2[%c0_33, %c0_34, %c0_35] : memref<8x8x512xf32, #tpu.memory_space<vmem>>, vector<1x8x512xf32>
      %61 = vector.shape_cast %60 : vector<1x8x512xf32> to vector<8x512xf32>
      %c0_36 = arith.constant 0 : index
      %c0_37 = arith.constant 0 : index
      %62 = vector.load %arg10[%c0_36, %c0_37] : memref<8x128xf32, #tpu.memory_space<vmem>>, vector<8x128xf32>
      %c0_38 = arith.constant 0 : index
      %c0_39 = arith.constant 0 : index
      %63 = vector.load %arg4[%c0_38, %c0_39] : memref<128x512xf32, #tpu.memory_space<vmem>>, vector<128x512xf32>
      %cst_40 = arith.constant dense<0.000000e+00> : vector<8x512xf32>
      %64 = tpu.matmul %62, %63, %cst_40 {dimension_numbers = #tpu.dot_dimension_numbers<[1], [0], [0], [1], [0, 0, 1, 1], [], []>} : vector<8x128xf32>, vector<128x512xf32>, vector<8x512xf32> -> vector<8x512xf32>
      %65 = arith.addf %61, %64 : vector<8x512xf32>
      %66 = vector.extract_strided_slice %65 {offsets = [0, 0], sizes = [8, 128], strides = [1, 1]} : vector<8x512xf32> to vector<8x128xf32>
      %67 = arith.negf %66 : vector<8x128xf32>
      %68 = math.exp %67 : vector<8x128xf32>
      %cst_41 = arith.constant 1.000000e+00 : f32
      %69 = vector.broadcast %cst_41 : f32 to vector<8x128xf32>
      %70 = arith.addf %69, %68 : vector<8x128xf32>
      %71 = arith.divf %69, %70 : vector<8x128xf32>
      %72 = vector.extract_strided_slice %65 {offsets = [0, 128], sizes = [8, 128], strides = [1, 1]} : vector<8x512xf32> to vector<8x128xf32>
      %73 = arith.negf %72 : vector<8x128xf32>
      %74 = math.exp %73 : vector<8x128xf32>
      %cst_42 = arith.constant 1.000000e+00 : f32
      %75 = vector.broadcast %cst_42 : f32 to vector<8x128xf32>
      %76 = arith.addf %75, %74 : vector<8x128xf32>
      %77 = arith.divf %75, %76 : vector<8x128xf32>
      %78 = vector.extract_strided_slice %65 {offsets = [0, 256], sizes = [8, 128], strides = [1, 1]} : vector<8x512xf32> to vector<8x128xf32>
      %79 = math.tanh %78 : vector<8x128xf32>
      %80 = vector.extract_strided_slice %65 {offsets = [0, 384], sizes = [8, 128], strides = [1, 1]} : vector<8x512xf32> to vector<8x128xf32>
      %81 = arith.negf %80 : vector<8x128xf32>
      %82 = math.exp %81 : vector<8x128xf32>
      %cst_43 = arith.constant 1.000000e+00 : f32
      %83 = vector.broadcast %cst_43 : f32 to vector<8x128xf32>
      %84 = arith.addf %83, %82 : vector<8x128xf32>
      %85 = arith.divf %83, %84 : vector<8x128xf32>
      %c0_44 = arith.constant 0 : index
      %c0_45 = arith.constant 0 : index
      %86 = vector.load %arg11[%c0_44, %c0_45] : memref<8x128xf32, #tpu.memory_space<vmem>>, vector<8x128xf32>
      %87 = arith.mulf %77, %86 : vector<8x128xf32>
      %88 = arith.mulf %71, %79 : vector<8x128xf32>
      %89 = arith.addf %87, %88 : vector<8x128xf32>
      %90 = math.tanh %89 : vector<8x128xf32>
      %91 = arith.mulf %85, %90 : vector<8x128xf32>
      %c0_46 = arith.constant 0 : index
      %c0_47 = arith.constant 0 : index
      %92 = vector.load %arg10[%c0_46, %c0_47] : memref<8x128xf32, #tpu.memory_space<vmem>>, vector<8x128xf32>
      tpu.vector_store %arg10[%c0_46, %c0_47], %91 {strides = array<i32>} : memref<8x128xf32, #tpu.memory_space<vmem>>, vector<8x128xf32>,
      %c0_48 = arith.constant 0 : index
      %c0_49 = arith.constant 0 : index
      %93 = vector.load %arg11[%c0_48, %c0_49] : memref<8x128xf32, #tpu.memory_space<vmem>>, vector<8x128xf32>
      tpu.vector_store %arg11[%c0_48, %c0_49], %89 {strides = array<i32>} : memref<8x128xf32, #tpu.memory_space<vmem>>, vector<8x128xf32>,
      %c1 = arith.constant 1 : index
      %c0_50 = arith.constant 0 : index
      %c0_51 = arith.constant 0 : index
      %94 = vector.load %arg2[%c1, %c0_50, %c0_51] : memref<8x8x512xf32, #tpu.memory_space<vmem>>, vector<1x8x512xf32>
      %95 = vector.shape_cast %94 : vector<1x8x512xf32> to vector<8x512xf32>
      %c0_52 = arith.constant 0 : index
      %c0_53 = arith.constant 0 : index
      %96 = vector.load %arg10[%c0_52, %c0_53] : memref<8x128xf32, #tpu.memory_space<vmem>>, vector<8x128xf32>
      %c0_54 = arith.constant 0 : index
      %c0_55 = arith.constant 0 : index
      %97 = vector.load %arg4[%c0_54, %c0_55] : memref<128x512xf32, #tpu.memory_space<vmem>>, vector<128x512xf32>
      %cst_56 = arith.constant dense<0.000000e+00> : vector<8x512xf32>
      %98 = tpu.matmul %96, %97, %cst_56 {dimension_numbers = #tpu.dot_dimension_numbers<[1], [0], [0], [1], [0, 0, 1, 1], [], []>} : vector<8x128xf32>, vector<128x512xf32>, vector<8x512xf32> -> vector<8x512xf32>
      %99 = arith.addf %95, %98 : vector<8x512xf32>
      %100 = vector.extract_strided_slice %99 {offsets = [0, 0], sizes = [8, 128], strides = [1, 1]} : vector<8x512xf32> to vector<8x128xf32>
      %101 = arith.negf %100 : vector<8x128xf32>
      %102 = math.exp %101 : vector<8x128xf32>
      %cst_57 = arith.constant 1.000000e+00 : f32
      %103 = vector.broadcast %cst_57 : f32 to vector<8x128xf32>
      %104 = arith.addf %103, %102 : vector<8x128xf32>
      %105 = arith.divf %103, %104 : vector<8x128xf32>
      %106 = vector.extract_strided_slice %99 {offsets = [0, 128], sizes = [8, 128], strides = [1, 1]} : vector<8x512xf32> to vector<8x128xf32>
      %107 = arith.negf %106 : vector<8x128xf32>
      %108 = math.exp %107 : vector<8x128xf32>
      %cst_58 = arith.constant 1.000000e+00 : f32
      %109 = vector.broadcast %cst_58 : f32 to vector<8x128xf32>
      %110 = arith.addf %109, %108 : vector<8x128xf32>
      %111 = arith.divf %109, %110 : vector<8x128xf32>
      %112 = vector.extract_strided_slice %99 {offsets = [0, 256], sizes = [8, 128], strides = [1, 1]} : vector<8x512xf32> to vector<8x128xf32>
      %113 = math.tanh %112 : vector<8x128xf32>
      %114 = vector.extract_strided_slice %99 {offsets = [0, 384], sizes = [8, 128], strides = [1, 1]} : vector<8x512xf32> to vector<8x128xf32>
      %115 = arith.negf %114 : vector<8x128xf32>
      %116 = math.exp %115 : vector<8x128xf32>
      %cst_59 = arith.constant 1.000000e+00 : f32
      %117 = vector.broadcast %cst_59 : f32 to vector<8x128xf32>
      %118 = arith.addf %117, %116 : vector<8x128xf32>
      %119 = arith.divf %117, %118 : vector<8x128xf32>
      %c0_60 = arith.constant 0 : index
      %c0_61 = arith.constant 0 : index
      %120 = vector.load %arg11[%c0_60, %c0_61] : memref<8x128xf32, #tpu.memory_space<vmem>>, vector<8x128xf32>
      %121 = arith.mulf %111, %120 : vector<8x128xf32>
      %122 = arith.mulf %105, %113 : vector<8x128xf32>
      %123 = arith.addf %121, %122 : vector<8x128xf32>
      %124 = math.tanh %123 : vector<8x128xf32>
      %125 = arith.mulf %119, %124 : vector<8x128xf32>
      %c0_62 = arith.constant 0 : index
      %c0_63 = arith.constant 0 : index
      %126 = vector.load %arg10[%c0_62, %c0_63] : memref<8x128xf32, #tpu.memory_space<vmem>>, vector<8x128xf32>
      tpu.vector_store %arg10[%c0_62, %c0_63], %125 {strides = array<i32>} : memref<8x128xf32, #tpu.memory_space<vmem>>, vector<8x128xf32>,
      %c0_64 = arith.constant 0 : index
      %c0_65 = arith.constant 0 : index
      %127 = vector.load %arg11[%c0_64, %c0_65] : memref<8x128xf32, #tpu.memory_space<vmem>>, vector<8x128xf32>
      tpu.vector_store %arg11[%c0_64, %c0_65], %123 {strides = array<i32>} : memref<8x128xf32, #tpu.memory_space<vmem>>, vector<8x128xf32>,
      %c2 = arith.constant 2 : index
      %c0_66 = arith.constant 0 : index
      %c0_67 = arith.constant 0 : index
      %128 = vector.load %arg2[%c2, %c0_66, %c0_67] : memref<8x8x512xf32, #tpu.memory_space<vmem>>, vector<1x8x512xf32>
      %129 = vector.shape_cast %128 : vector<1x8x512xf32> to vector<8x512xf32>
      %c0_68 = arith.constant 0 : index
      %c0_69 = arith.constant 0 : index
      %130 = vector.load %arg10[%c0_68, %c0_69] : memref<8x128xf32, #tpu.memory_space<vmem>>, vector<8x128xf32>
      %c0_70 = arith.constant 0 : index
      %c0_71 = arith.constant 0 : index
      %131 = vector.load %arg4[%c0_70, %c0_71] : memref<128x512xf32, #tpu.memory_space<vmem>>, vector<128x512xf32>
      %cst_72 = arith.constant dense<0.000000e+00> : vector<8x512xf32>
      %132 = tpu.matmul %130, %131, %cst_72 {dimension_numbers = #tpu.dot_dimension_numbers<[1], [0], [0], [1], [0, 0, 1, 1], [], []>} : vector<8x128xf32>, vector<128x512xf32>, vector<8x512xf32> -> vector<8x512xf32>
      %133 = arith.addf %129, %132 : vector<8x512xf32>
      %134 = vector.extract_strided_slice %133 {offsets = [0, 0], sizes = [8, 128], strides = [1, 1]} : vector<8x512xf32> to vector<8x128xf32>
      %135 = arith.negf %134 : vector<8x128xf32>
      %136 = math.exp %135 : vector<8x128xf32>
      %cst_73 = arith.constant 1.000000e+00 : f32
      %137 = vector.broadcast %cst_73 : f32 to vector<8x128xf32>
      %138 = arith.addf %137, %136 : vector<8x128xf32>
      %139 = arith.divf %137, %138 : vector<8x128xf32>
      %140 = vector.extract_strided_slice %133 {offsets = [0, 128], sizes = [8, 128], strides = [1, 1]} : vector<8x512xf32> to vector<8x128xf32>
      %141 = arith.negf %140 : vector<8x128xf32>
      %142 = math.exp %141 : vector<8x128xf32>
      %cst_74 = arith.constant 1.000000e+00 : f32
      %143 = vector.broadcast %cst_74 : f32 to vector<8x128xf32>
      %144 = arith.addf %143, %142 : vector<8x128xf32>
      %145 = arith.divf %143, %144 : vector<8x128xf32>
      %146 = vector.extract_strided_slice %133 {offsets = [0, 256], sizes = [8, 128], strides = [1, 1]} : vector<8x512xf32> to vector<8x128xf32>
      %147 = math.tanh %146 : vector<8x128xf32>
      %148 = vector.extract_strided_slice %133 {offsets = [0, 384], sizes = [8, 128], strides = [1, 1]} : vector<8x512xf32> to vector<8x128xf32>
      %149 = arith.negf %148 : vector<8x128xf32>
      %150 = math.exp %149 : vector<8x128xf32>
      %cst_75 = arith.constant 1.000000e+00 : f32
      %151 = vector.broadcast %cst_75 : f32 to vector<8x128xf32>
      %152 = arith.addf %151, %150 : vector<8x128xf32>
      %153 = arith.divf %151, %152 : vector<8x128xf32>
      %c0_76 = arith.constant 0 : index
      %c0_77 = arith.constant 0 : index
      %154 = vector.load %arg11[%c0_76, %c0_77] : memref<8x128xf32, #tpu.memory_space<vmem>>, vector<8x128xf32>
      %155 = arith.mulf %145, %154 : vector<8x128xf32>
      %156 = arith.mulf %139, %147 : vector<8x128xf32>
      %157 = arith.addf %155, %156 : vector<8x128xf32>
      %158 = math.tanh %157 : vector<8x128xf32>
      %159 = arith.mulf %153, %158 : vector<8x128xf32>
      %c0_78 = arith.constant 0 : index
      %c0_79 = arith.constant 0 : index
      %160 = vector.load %arg10[%c0_78, %c0_79] : memref<8x128xf32, #tpu.memory_space<vmem>>, vector<8x128xf32>
      tpu.vector_store %arg10[%c0_78, %c0_79], %159 {strides = array<i32>} : memref<8x128xf32, #tpu.memory_space<vmem>>, vector<8x128xf32>,
      %c0_80 = arith.constant 0 : index
      %c0_81 = arith.constant 0 : index
      %161 = vector.load %arg11[%c0_80, %c0_81] : memref<8x128xf32, #tpu.memory_space<vmem>>, vector<8x128xf32>
      tpu.vector_store %arg11[%c0_80, %c0_81], %157 {strides = array<i32>} : memref<8x128xf32, #tpu.memory_space<vmem>>, vector<8x128xf32>,
      %c3 = arith.constant 3 : index
      %c0_82 = arith.constant 0 : index
      %c0_83 = arith.constant 0 : index
      %162 = vector.load %arg2[%c3, %c0_82, %c0_83] : memref<8x8x512xf32, #tpu.memory_space<vmem>>, vector<1x8x512xf32>
      %163 = vector.shape_cast %162 : vector<1x8x512xf32> to vector<8x512xf32>
      %c0_84 = arith.constant 0 : index
      %c0_85 = arith.constant 0 : index
      %164 = vector.load %arg10[%c0_84, %c0_85] : memref<8x128xf32, #tpu.memory_space<vmem>>, vector<8x128xf32>
      %c0_86 = arith.constant 0 : index
      %c0_87 = arith.constant 0 : index
      %165 = vector.load %arg4[%c0_86, %c0_87] : memref<128x512xf32, #tpu.memory_space<vmem>>, vector<128x512xf32>
      %cst_88 = arith.constant dense<0.000000e+00> : vector<8x512xf32>
      %166 = tpu.matmul %164, %165, %cst_88 {dimension_numbers = #tpu.dot_dimension_numbers<[1], [0], [0], [1], [0, 0, 1, 1], [], []>} : vector<8x128xf32>, vector<128x512xf32>, vector<8x512xf32> -> vector<8x512xf32>
      %167 = arith.addf %163, %166 : vector<8x512xf32>
      %168 = vector.extract_strided_slice %167 {offsets = [0, 0], sizes = [8, 128], strides = [1, 1]} : vector<8x512xf32> to vector<8x128xf32>
      %169 = arith.negf %168 : vector<8x128xf32>
      %170 = math.exp %169 : vector<8x128xf32>
      %cst_89 = arith.constant 1.000000e+00 : f32
      %171 = vector.broadcast %cst_89 : f32 to vector<8x128xf32>
      %172 = arith.addf %171, %170 : vector<8x128xf32>
      %173 = arith.divf %171, %172 : vector<8x128xf32>
      %174 = vector.extract_strided_slice %167 {offsets = [0, 128], sizes = [8, 128], strides = [1, 1]} : vector<8x512xf32> to vector<8x128xf32>
      %175 = arith.negf %174 : vector<8x128xf32>
      %176 = math.exp %175 : vector<8x128xf32>
      %cst_90 = arith.constant 1.000000e+00 : f32
      %177 = vector.broadcast %cst_90 : f32 to vector<8x128xf32>
      %178 = arith.addf %177, %176 : vector<8x128xf32>
      %179 = arith.divf %177, %178 : vector<8x128xf32>
      %180 = vector.extract_strided_slice %167 {offsets = [0, 256], sizes = [8, 128], strides = [1, 1]} : vector<8x512xf32> to vector<8x128xf32>
      %181 = math.tanh %180 : vector<8x128xf32>
      %182 = vector.extract_strided_slice %167 {offsets = [0, 384], sizes = [8, 128], strides = [1, 1]} : vector<8x512xf32> to vector<8x128xf32>
      %183 = arith.negf %182 : vector<8x128xf32>
      %184 = math.exp %183 : vector<8x128xf32>
      %cst_91 = arith.constant 1.000000e+00 : f32
      %185 = vector.broadcast %cst_91 : f32 to vector<8x128xf32>
      %186 = arith.addf %185, %184 : vector<8x128xf32>
      %187 = arith.divf %185, %186 : vector<8x128xf32>
      %c0_92 = arith.constant 0 : index
      %c0_93 = arith.constant 0 : index
      %188 = vector.load %arg11[%c0_92, %c0_93] : memref<8x128xf32, #tpu.memory_space<vmem>>, vector<8x128xf32>
      %189 = arith.mulf %179, %188 : vector<8x128xf32>
      %190 = arith.mulf %173, %181 : vector<8x128xf32>
      %191 = arith.addf %189, %190 : vector<8x128xf32>
      %192 = math.tanh %191 : vector<8x128xf32>
      %193 = arith.mulf %187, %192 : vector<8x128xf32>
      %c0_94 = arith.constant 0 : index
      %c0_95 = arith.constant 0 : index
      %194 = vector.load %arg10[%c0_94, %c0_95] : memref<8x128xf32, #tpu.memory_space<vmem>>, vector<8x128xf32>
      tpu.vector_store %arg10[%c0_94, %c0_95], %193 {strides = array<i32>} : memref<8x128xf32, #tpu.memory_space<vmem>>, vector<8x128xf32>,
      %c0_96 = arith.constant 0 : index
      %c0_97 = arith.constant 0 : index
      %195 = vector.load %arg11[%c0_96, %c0_97] : memref<8x128xf32, #tpu.memory_space<vmem>>, vector<8x128xf32>
      tpu.vector_store %arg11[%c0_96, %c0_97], %191 {strides = array<i32>} : memref<8x128xf32, #tpu.memory_space<vmem>>, vector<8x128xf32>,
      %c4 = arith.constant 4 : index
      %c0_98 = arith.constant 0 : index
      %c0_99 = arith.constant 0 : index
      %196 = vector.load %arg2[%c4, %c0_98, %c0_99] : memref<8x8x512xf32, #tpu.memory_space<vmem>>, vector<1x8x512xf32>
      %197 = vector.shape_cast %196 : vector<1x8x512xf32> to vector<8x512xf32>
      %c0_100 = arith.constant 0 : index
      %c0_101 = arith.constant 0 : index
      %198 = vector.load %arg10[%c0_100, %c0_101] : memref<8x128xf32, #tpu.memory_space<vmem>>, vector<8x128xf32>
      %c0_102 = arith.constant 0 : index
      %c0_103 = arith.constant 0 : index
      %199 = vector.load %arg4[%c0_102, %c0_103] : memref<128x512xf32, #tpu.memory_space<vmem>>, vector<128x512xf32>
      %cst_104 = arith.constant dense<0.000000e+00> : vector<8x512xf32>
      %200 = tpu.matmul %198, %199, %cst_104 {dimension_numbers = #tpu.dot_dimension_numbers<[1], [0], [0], [1], [0, 0, 1, 1], [], []>} : vector<8x128xf32>, vector<128x512xf32>, vector<8x512xf32> -> vector<8x512xf32>
      %201 = arith.addf %197, %200 : vector<8x512xf32>
      %202 = vector.extract_strided_slice %201 {offsets = [0, 0], sizes = [8, 128], strides = [1, 1]} : vector<8x512xf32> to vector<8x128xf32>
      %203 = arith.negf %202 : vector<8x128xf32>
      %204 = math.exp %203 : vector<8x128xf32>
      %cst_105 = arith.constant 1.000000e+00 : f32
      %205 = vector.broadcast %cst_105 : f32 to vector<8x128xf32>
      %206 = arith.addf %205, %204 : vector<8x128xf32>
      %207 = arith.divf %205, %206 : vector<8x128xf32>
      %208 = vector.extract_strided_slice %201 {offsets = [0, 128], sizes = [8, 128], strides = [1, 1]} : vector<8x512xf32> to vector<8x128xf32>
      %209 = arith.negf %208 : vector<8x128xf32>
      %210 = math.exp %209 : vector<8x128xf32>
      %cst_106 = arith.constant 1.000000e+00 : f32
      %211 = vector.broadcast %cst_106 : f32 to vector<8x128xf32>
      %212 = arith.addf %211, %210 : vector<8x128xf32>
      %213 = arith.divf %211, %212 : vector<8x128xf32>
      %214 = vector.extract_strided_slice %201 {offsets = [0, 256], sizes = [8, 128], strides = [1, 1]} : vector<8x512xf32> to vector<8x128xf32>
      %215 = math.tanh %214 : vector<8x128xf32>
      %216 = vector.extract_strided_slice %201 {offsets = [0, 384], sizes = [8, 128], strides = [1, 1]} : vector<8x512xf32> to vector<8x128xf32>
      %217 = arith.negf %216 : vector<8x128xf32>
      %218 = math.exp %217 : vector<8x128xf32>
      %cst_107 = arith.constant 1.000000e+00 : f32
      %219 = vector.broadcast %cst_107 : f32 to vector<8x128xf32>
      %220 = arith.addf %219, %218 : vector<8x128xf32>
      %221 = arith.divf %219, %220 : vector<8x128xf32>
      %c0_108 = arith.constant 0 : index
      %c0_109 = arith.constant 0 : index
      %222 = vector.load %arg11[%c0_108, %c0_109] : memref<8x128xf32, #tpu.memory_space<vmem>>, vector<8x128xf32>
      %223 = arith.mulf %213, %222 : vector<8x128xf32>
      %224 = arith.mulf %207, %215 : vector<8x128xf32>
      %225 = arith.addf %223, %224 : vector<8x128xf32>
      %226 = math.tanh %225 : vector<8x128xf32>
      %227 = arith.mulf %221, %226 : vector<8x128xf32>
      %c0_110 = arith.constant 0 : index
      %c0_111 = arith.constant 0 : index
      %228 = vector.load %arg10[%c0_110, %c0_111] : memref<8x128xf32, #tpu.memory_space<vmem>>, vector<8x128xf32>
      tpu.vector_store %arg10[%c0_110, %c0_111], %227 {strides = array<i32>} : memref<8x128xf32, #tpu.memory_space<vmem>>, vector<8x128xf32>,
      %c0_112 = arith.constant 0 : index
      %c0_113 = arith.constant 0 : index
      %229 = vector.load %arg11[%c0_112, %c0_113] : memref<8x128xf32, #tpu.memory_space<vmem>>, vector<8x128xf32>
      tpu.vector_store %arg11[%c0_112, %c0_113], %225 {strides = array<i32>} : memref<8x128xf32, #tpu.memory_space<vmem>>, vector<8x128xf32>,
      %c5 = arith.constant 5 : index
      %c0_114 = arith.constant 0 : index
      %c0_115 = arith.constant 0 : index
      %230 = vector.load %arg2[%c5, %c0_114, %c0_115] : memref<8x8x512xf32, #tpu.memory_space<vmem>>, vector<1x8x512xf32>
      %231 = vector.shape_cast %230 : vector<1x8x512xf32> to vector<8x512xf32>
      %c0_116 = arith.constant 0 : index
      %c0_117 = arith.constant 0 : index
      %232 = vector.load %arg10[%c0_116, %c0_117] : memref<8x128xf32, #tpu.memory_space<vmem>>, vector<8x128xf32>
      %c0_118 = arith.constant 0 : index
      %c0_119 = arith.constant 0 : index
      %233 = vector.load %arg4[%c0_118, %c0_119] : memref<128x512xf32, #tpu.memory_space<vmem>>, vector<128x512xf32>
      %cst_120 = arith.constant dense<0.000000e+00> : vector<8x512xf32>
      %234 = tpu.matmul %232, %233, %cst_120 {dimension_numbers = #tpu.dot_dimension_numbers<[1], [0], [0], [1], [0, 0, 1, 1], [], []>} : vector<8x128xf32>, vector<128x512xf32>, vector<8x512xf32> -> vector<8x512xf32>
      %235 = arith.addf %231, %234 : vector<8x512xf32>
      %236 = vector.extract_strided_slice %235 {offsets = [0, 0], sizes = [8, 128], strides = [1, 1]} : vector<8x512xf32> to vector<8x128xf32>
      %237 = arith.negf %236 : vector<8x128xf32>
      %238 = math.exp %237 : vector<8x128xf32>
      %cst_121 = arith.constant 1.000000e+00 : f32
      %239 = vector.broadcast %cst_121 : f32 to vector<8x128xf32>
      %240 = arith.addf %239, %238 : vector<8x128xf32>
      %241 = arith.divf %239, %240 : vector<8x128xf32>
      %242 = vector.extract_strided_slice %235 {offsets = [0, 128], sizes = [8, 128], strides = [1, 1]} : vector<8x512xf32> to vector<8x128xf32>
      %243 = arith.negf %242 : vector<8x128xf32>
      %244 = math.exp %243 : vector<8x128xf32>
      %cst_122 = arith.constant 1.000000e+00 : f32
      %245 = vector.broadcast %cst_122 : f32 to vector<8x128xf32>
      %246 = arith.addf %245, %244 : vector<8x128xf32>
      %247 = arith.divf %245, %246 : vector<8x128xf32>
      %248 = vector.extract_strided_slice %235 {offsets = [0, 256], sizes = [8, 128], strides = [1, 1]} : vector<8x512xf32> to vector<8x128xf32>
      %249 = math.tanh %248 : vector<8x128xf32>
      %250 = vector.extract_strided_slice %235 {offsets = [0, 384], sizes = [8, 128], strides = [1, 1]} : vector<8x512xf32> to vector<8x128xf32>
      %251 = arith.negf %250 : vector<8x128xf32>
      %252 = math.exp %251 : vector<8x128xf32>
      %cst_123 = arith.constant 1.000000e+00 : f32
      %253 = vector.broadcast %cst_123 : f32 to vector<8x128xf32>
      %254 = arith.addf %253, %252 : vector<8x128xf32>
      %255 = arith.divf %253, %254 : vector<8x128xf32>
      %c0_124 = arith.constant 0 : index
      %c0_125 = arith.constant 0 : index
      %256 = vector.load %arg11[%c0_124, %c0_125] : memref<8x128xf32, #tpu.memory_space<vmem>>, vector<8x128xf32>
      %257 = arith.mulf %247, %256 : vector<8x128xf32>
      %258 = arith.mulf %241, %249 : vector<8x128xf32>
      %259 = arith.addf %257, %258 : vector<8x128xf32>
      %260 = math.tanh %259 : vector<8x128xf32>
      %261 = arith.mulf %255, %260 : vector<8x128xf32>
      %c0_126 = arith.constant 0 : index
      %c0_127 = arith.constant 0 : index
      %262 = vector.load %arg10[%c0_126, %c0_127] : memref<8x128xf32, #tpu.memory_space<vmem>>, vector<8x128xf32>
      tpu.vector_store %arg10[%c0_126, %c0_127], %261 {strides = array<i32>} : memref<8x128xf32, #tpu.memory_space<vmem>>, vector<8x128xf32>,
      %c0_128 = arith.constant 0 : index
      %c0_129 = arith.constant 0 : index
      %263 = vector.load %arg11[%c0_128, %c0_129] : memref<8x128xf32, #tpu.memory_space<vmem>>, vector<8x128xf32>
      tpu.vector_store %arg11[%c0_128, %c0_129], %259 {strides = array<i32>} : memref<8x128xf32, #tpu.memory_space<vmem>>, vector<8x128xf32>,
      %c6 = arith.constant 6 : index
      %c0_130 = arith.constant 0 : index
      %c0_131 = arith.constant 0 : index
      %264 = vector.load %arg2[%c6, %c0_130, %c0_131] : memref<8x8x512xf32, #tpu.memory_space<vmem>>, vector<1x8x512xf32>
      %265 = vector.shape_cast %264 : vector<1x8x512xf32> to vector<8x512xf32>
      %c0_132 = arith.constant 0 : index
      %c0_133 = arith.constant 0 : index
      %266 = vector.load %arg10[%c0_132, %c0_133] : memref<8x128xf32, #tpu.memory_space<vmem>>, vector<8x128xf32>
      %c0_134 = arith.constant 0 : index
      %c0_135 = arith.constant 0 : index
      %267 = vector.load %arg4[%c0_134, %c0_135] : memref<128x512xf32, #tpu.memory_space<vmem>>, vector<128x512xf32>
      %cst_136 = arith.constant dense<0.000000e+00> : vector<8x512xf32>
      %268 = tpu.matmul %266, %267, %cst_136 {dimension_numbers = #tpu.dot_dimension_numbers<[1], [0], [0], [1], [0, 0, 1, 1], [], []>} : vector<8x128xf32>, vector<128x512xf32>, vector<8x512xf32> -> vector<8x512xf32>
      %269 = arith.addf %265, %268 : vector<8x512xf32>
      %270 = vector.extract_strided_slice %269 {offsets = [0, 0], sizes = [8, 128], strides = [1, 1]} : vector<8x512xf32> to vector<8x128xf32>
      %271 = arith.negf %270 : vector<8x128xf32>
      %272 = math.exp %271 : vector<8x128xf32>
      %cst_137 = arith.constant 1.000000e+00 : f32
      %273 = vector.broadcast %cst_137 : f32 to vector<8x128xf32>
      %274 = arith.addf %273, %272 : vector<8x128xf32>
      %275 = arith.divf %273, %274 : vector<8x128xf32>
      %276 = vector.extract_strided_slice %269 {offsets = [0, 128], sizes = [8, 128], strides = [1, 1]} : vector<8x512xf32> to vector<8x128xf32>
      %277 = arith.negf %276 : vector<8x128xf32>
      %278 = math.exp %277 : vector<8x128xf32>
      %cst_138 = arith.constant 1.000000e+00 : f32
      %279 = vector.broadcast %cst_138 : f32 to vector<8x128xf32>
      %280 = arith.addf %279, %278 : vector<8x128xf32>
      %281 = arith.divf %279, %280 : vector<8x128xf32>
      %282 = vector.extract_strided_slice %269 {offsets = [0, 256], sizes = [8, 128], strides = [1, 1]} : vector<8x512xf32> to vector<8x128xf32>
      %283 = math.tanh %282 : vector<8x128xf32>
      %284 = vector.extract_strided_slice %269 {offsets = [0, 384], sizes = [8, 128], strides = [1, 1]} : vector<8x512xf32> to vector<8x128xf32>
      %285 = arith.negf %284 : vector<8x128xf32>
      %286 = math.exp %285 : vector<8x128xf32>
      %cst_139 = arith.constant 1.000000e+00 : f32
      %287 = vector.broadcast %cst_139 : f32 to vector<8x128xf32>
      %288 = arith.addf %287, %286 : vector<8x128xf32>
      %289 = arith.divf %287, %288 : vector<8x128xf32>
      %c0_140 = arith.constant 0 : index
      %c0_141 = arith.constant 0 : index
      %290 = vector.load %arg11[%c0_140, %c0_141] : memref<8x128xf32, #tpu.memory_space<vmem>>, vector<8x128xf32>
      %291 = arith.mulf %281, %290 : vector<8x128xf32>
      %292 = arith.mulf %275, %283 : vector<8x128xf32>
      %293 = arith.addf %291, %292 : vector<8x128xf32>
      %294 = math.tanh %293 : vector<8x128xf32>
      %295 = arith.mulf %289, %294 : vector<8x128xf32>
      %c0_142 = arith.constant 0 : index
      %c0_143 = arith.constant 0 : index
      %296 = vector.load %arg10[%c0_142, %c0_143] : memref<8x128xf32, #tpu.memory_space<vmem>>, vector<8x128xf32>
      tpu.vector_store %arg10[%c0_142, %c0_143], %295 {strides = array<i32>} : memref<8x128xf32, #tpu.memory_space<vmem>>, vector<8x128xf32>,
      %c0_144 = arith.constant 0 : index
      %c0_145 = arith.constant 0 : index
      %297 = vector.load %arg11[%c0_144, %c0_145] : memref<8x128xf32, #tpu.memory_space<vmem>>, vector<8x128xf32>
      tpu.vector_store %arg11[%c0_144, %c0_145], %293 {strides = array<i32>} : memref<8x128xf32, #tpu.memory_space<vmem>>, vector<8x128xf32>,
      %c7 = arith.constant 7 : index
      %c0_146 = arith.constant 0 : index
      %c0_147 = arith.constant 0 : index
      %298 = vector.load %arg2[%c7, %c0_146, %c0_147] : memref<8x8x512xf32, #tpu.memory_space<vmem>>, vector<1x8x512xf32>
      %299 = vector.shape_cast %298 : vector<1x8x512xf32> to vector<8x512xf32>
      %c0_148 = arith.constant 0 : index
      %c0_149 = arith.constant 0 : index
      %300 = vector.load %arg10[%c0_148, %c0_149] : memref<8x128xf32, #tpu.memory_space<vmem>>, vector<8x128xf32>
      %c0_150 = arith.constant 0 : index
      %c0_151 = arith.constant 0 : index
      %301 = vector.load %arg4[%c0_150, %c0_151] : memref<128x512xf32, #tpu.memory_space<vmem>>, vector<128x512xf32>
      %cst_152 = arith.constant dense<0.000000e+00> : vector<8x512xf32>
      %302 = tpu.matmul %300, %301, %cst_152 {dimension_numbers = #tpu.dot_dimension_numbers<[1], [0], [0], [1], [0, 0, 1, 1], [], []>} : vector<8x128xf32>, vector<128x512xf32>, vector<8x512xf32> -> vector<8x512xf32>
      %303 = arith.addf %299, %302 : vector<8x512xf32>
      %304 = vector.extract_strided_slice %303 {offsets = [0, 0], sizes = [8, 128], strides = [1, 1]} : vector<8x512xf32> to vector<8x128xf32>
      %305 = arith.negf %304 : vector<8x128xf32>
      %306 = math.exp %305 : vector<8x128xf32>
      %cst_153 = arith.constant 1.000000e+00 : f32
      %307 = vector.broadcast %cst_153 : f32 to vector<8x128xf32>
      %308 = arith.addf %307, %306 : vector<8x128xf32>
      %309 = arith.divf %307, %308 : vector<8x128xf32>
      %310 = vector.extract_strided_slice %303 {offsets = [0, 128], sizes = [8, 128], strides = [1, 1]} : vector<8x512xf32> to vector<8x128xf32>
      %311 = arith.negf %310 : vector<8x128xf32>
      %312 = math.exp %311 : vector<8x128xf32>
      %cst_154 = arith.constant 1.000000e+00 : f32
      %313 = vector.broadcast %cst_154 : f32 to vector<8x128xf32>
      %314 = arith.addf %313, %312 : vector<8x128xf32>
      %315 = arith.divf %313, %314 : vector<8x128xf32>
      %316 = vector.extract_strided_slice %303 {offsets = [0, 256], sizes = [8, 128], strides = [1, 1]} : vector<8x512xf32> to vector<8x128xf32>
      %317 = math.tanh %316 : vector<8x128xf32>
      %318 = vector.extract_strided_slice %303 {offsets = [0, 384], sizes = [8, 128], strides = [1, 1]} : vector<8x512xf32> to vector<8x128xf32>
      %319 = arith.negf %318 : vector<8x128xf32>
      %320 = math.exp %319 : vector<8x128xf32>
      %cst_155 = arith.constant 1.000000e+00 : f32
      %321 = vector.broadcast %cst_155 : f32 to vector<8x128xf32>
      %322 = arith.addf %321, %320 : vector<8x128xf32>
      %323 = arith.divf %321, %322 : vector<8x128xf32>
      %c0_156 = arith.constant 0 : index
      %c0_157 = arith.constant 0 : index
      %324 = vector.load %arg11[%c0_156, %c0_157] : memref<8x128xf32, #tpu.memory_space<vmem>>, vector<8x128xf32>
      %325 = arith.mulf %315, %324 : vector<8x128xf32>
      %326 = arith.mulf %309, %317 : vector<8x128xf32>
      %327 = arith.addf %325, %326 : vector<8x128xf32>
      %328 = math.tanh %327 : vector<8x128xf32>
      %329 = arith.mulf %323, %328 : vector<8x128xf32>
      %c0_158 = arith.constant 0 : index
      %c0_159 = arith.constant 0 : index
      %330 = vector.load %arg10[%c0_158, %c0_159] : memref<8x128xf32, #tpu.memory_space<vmem>>, vector<8x128xf32>
      tpu.vector_store %arg10[%c0_158, %c0_159], %329 {strides = array<i32>} : memref<8x128xf32, #tpu.memory_space<vmem>>, vector<8x128xf32>,
      %c0_160 = arith.constant 0 : index
      %c0_161 = arith.constant 0 : index
      %331 = vector.load %arg11[%c0_160, %c0_161] : memref<8x128xf32, #tpu.memory_space<vmem>>, vector<8x128xf32>
      tpu.vector_store %arg11[%c0_160, %c0_161], %327 {strides = array<i32>} : memref<8x128xf32, #tpu.memory_space<vmem>>, vector<8x128xf32>,
      %c0_162 = arith.constant 0 : index
      %c0_163 = arith.constant 0 : index
      %c0_164 = arith.constant 0 : index
      %332 = vector.load %arg3[%c0_162, %c0_163, %c0_164] : memref<1x8x512xf32, #tpu.memory_space<vmem>>, vector<1x8x512xf32>
      %333 = vector.shape_cast %332 : vector<1x8x512xf32> to vector<8x512xf32>
      %c0_165 = arith.constant 0 : index
      %c0_166 = arith.constant 0 : index
      %334 = vector.load %arg12[%c0_165, %c0_166] : memref<8x512xf32, #tpu.memory_space<vmem>>, vector<8x512xf32>
      tpu.vector_store %arg12[%c0_165, %c0_166], %333 {strides = array<i32>} : memref<8x512xf32, #tpu.memory_space<vmem>>, vector<8x512xf32>,
    } else {
    }
    %c0 = arith.constant 0 : index
    %c0_1 = arith.constant 0 : index
    %3 = vector.load %arg12[%c0, %c0_1] : memref<8x512xf32, #tpu.memory_space<vmem>>, vector<8x512xf32>
    %c0_2 = arith.constant 0 : index
    %c0_3 = arith.constant 0 : index
    %4 = vector.load %arg10[%c0_2, %c0_3] : memref<8x128xf32, #tpu.memory_space<vmem>>, vector<8x128xf32>
    %c0_4 = arith.constant 0 : index
    %c0_5 = arith.constant 0 : index
    %5 = vector.load %arg5[%c0_4, %c0_5] : memref<128x512xf32, #tpu.memory_space<vmem>>, vector<128x512xf32>
    %cst = arith.constant dense<0.000000e+00> : vector<8x512xf32>
    %6 = tpu.matmul %4, %5, %cst {dimension_numbers = #tpu.dot_dimension_numbers<[1], [0], [0], [1], [0, 0, 1, 1], [], []>} : vector<8x128xf32>, vector<128x512xf32>, vector<8x512xf32> -> vector<8x512xf32>
    %7 = arith.addf %3, %6 : vector<8x512xf32>
    %8 = vector.extract_strided_slice %7 {offsets = [0, 0], sizes = [8, 128], strides = [1, 1]} : vector<8x512xf32> to vector<8x128xf32>
    %9 = arith.negf %8 : vector<8x128xf32>
    %10 = math.exp %9 : vector<8x128xf32>
    %cst_6 = arith.constant 1.000000e+00 : f32
    %11 = vector.broadcast %cst_6 : f32 to vector<8x128xf32>
    %12 = arith.addf %11, %10 : vector<8x128xf32>
    %13 = arith.divf %11, %12 : vector<8x128xf32>
    %14 = vector.extract_strided_slice %7 {offsets = [0, 128], sizes = [8, 128], strides = [1, 1]} : vector<8x512xf32> to vector<8x128xf32>
    %15 = arith.negf %14 : vector<8x128xf32>
    %16 = math.exp %15 : vector<8x128xf32>
    %cst_7 = arith.constant 1.000000e+00 : f32
    %17 = vector.broadcast %cst_7 : f32 to vector<8x128xf32>
    %18 = arith.addf %17, %16 : vector<8x128xf32>
    %19 = arith.divf %17, %18 : vector<8x128xf32>
    %20 = vector.extract_strided_slice %7 {offsets = [0, 256], sizes = [8, 128], strides = [1, 1]} : vector<8x512xf32> to vector<8x128xf32>
    %21 = math.tanh %20 : vector<8x128xf32>
    %22 = vector.extract_strided_slice %7 {offsets = [0, 384], sizes = [8, 128], strides = [1, 1]} : vector<8x512xf32> to vector<8x128xf32>
    %23 = arith.negf %22 : vector<8x128xf32>
    %24 = math.exp %23 : vector<8x128xf32>
    %cst_8 = arith.constant 1.000000e+00 : f32
    %25 = vector.broadcast %cst_8 : f32 to vector<8x128xf32>
    %26 = arith.addf %25, %24 : vector<8x128xf32>
    %27 = arith.divf %25, %26 : vector<8x128xf32>
    %c0_9 = arith.constant 0 : index
    %c0_10 = arith.constant 0 : index
    %28 = vector.load %arg11[%c0_9, %c0_10] : memref<8x128xf32, #tpu.memory_space<vmem>>, vector<8x128xf32>
    %29 = arith.mulf %19, %28 : vector<8x128xf32>
    %30 = arith.mulf %13, %21 : vector<8x128xf32>
    %31 = arith.addf %29, %30 : vector<8x128xf32>
    %32 = math.tanh %31 : vector<8x128xf32>
    %33 = arith.mulf %27, %32 : vector<8x128xf32>
    %c0_11 = arith.constant 0 : index
    %c0_12 = arith.constant 0 : index
    %34 = vector.load %arg10[%c0_11, %c0_12] : memref<8x128xf32, #tpu.memory_space<vmem>>, vector<8x128xf32>
    tpu.vector_store %arg10[%c0_11, %c0_12], %33 {strides = array<i32>} : memref<8x128xf32, #tpu.memory_space<vmem>>, vector<8x128xf32>,
    %c0_13 = arith.constant 0 : index
    %c0_14 = arith.constant 0 : index
    %35 = vector.load %arg11[%c0_13, %c0_14] : memref<8x128xf32, #tpu.memory_space<vmem>>, vector<8x128xf32>
    tpu.vector_store %arg11[%c0_13, %c0_14], %31 {strides = array<i32>} : memref<8x128xf32, #tpu.memory_space<vmem>>, vector<8x128xf32>,
    %c0_15 = arith.constant 0 : index
    %c0_16 = arith.constant 0 : index
    %36 = vector.load %arg7[%c0_15, %c0_16] : memref<128x128xf32, #tpu.memory_space<vmem>>, vector<128x128xf32>
    %cst_17 = arith.constant dense<0.000000e+00> : vector<8x128xf32>
    %37 = tpu.matmul %33, %36, %cst_17 {dimension_numbers = #tpu.dot_dimension_numbers<[1], [0], [0], [1], [0, 0, 1, 1], [], []>} : vector<8x128xf32>, vector<128x128xf32>, vector<8x128xf32> -> vector<8x128xf32>
    %c0_18 = arith.constant 0 : index
    %c0_19 = arith.constant 0 : index
    %38 = vector.load %arg8[%c0_18, %c0_19] : memref<1x128xf32, #tpu.memory_space<vmem>>, vector<1x128xf32>
    %39 = vector.broadcast %38 : vector<1x128xf32> to vector<8x128xf32>
    %40 = arith.addf %37, %39 : vector<8x128xf32>
    %c0_20 = arith.constant 0 : index
    %c0_21 = arith.constant 0 : index
    %c0_22 = arith.constant 0 : index
    %41 = vector.load %arg9[%c0_20, %c0_21, %c0_22] : memref<1x8x128xf32, #tpu.memory_space<vmem>>, vector<1x8x128xf32>
    %42 = vector.shape_cast %41 : vector<1x8x128xf32> to vector<8x128xf32>
    %43 = vector.shape_cast %40 : vector<8x128xf32> to vector<1x8x128xf32>
    tpu.vector_store %arg9[%c0_20, %c0_21, %c0_22], %43 {strides = array<i32>} : memref<1x8x128xf32, #tpu.memory_space<vmem>>, vector<1x8x128xf32>,
    %44 = arith.index_cast %arg0 : i32 to index
    %45 = memref.load %arg1[%44] : memref<8xi32, #tpu.memory_space<smem>>
    %c1_i32 = arith.constant 1 : i32
    %46 = arith.addi %arg0, %c1_i32 : i32
    %c8_i32 = arith.constant 8 : i32
    %47 = arith.cmpi slt, %46, %c8_i32 : i32
    %c0_i32_23 = arith.constant 0 : i32
    %48 = arith.cmpi ne, %45, %c0_i32_23 : i32
    %49 = arith.andi %47, %48 : i1
    %50 = arith.extui %49 : i1 to i32
    %c0_i32_24 = arith.constant 0 : i32
    %51 = arith.cmpi ne, %50, %c0_i32_24 : i32
    scf.if %51 {
      %c0_27 = arith.constant 0 : index
      %c0_28 = arith.constant 0 : index
      %c0_29 = arith.constant 0 : index
      %56 = vector.load %arg3[%c0_27, %c0_28, %c0_29] : memref<1x8x512xf32, #tpu.memory_space<vmem>>, vector<1x8x512xf32>
      %57 = vector.shape_cast %56 : vector<1x8x512xf32> to vector<8x512xf32>
      %c0_30 = arith.constant 0 : index
      %c0_31 = arith.constant 0 : index
      %58 = vector.load %arg12[%c0_30, %c0_31] : memref<8x512xf32, #tpu.memory_space<vmem>>, vector<8x512xf32>
      tpu.vector_store %arg12[%c0_30, %c0_31], %57 {strides = array<i32>} : memref<8x512xf32, #tpu.memory_space<vmem>>, vector<8x512xf32>,
    } else {
    }
    %c0_i32_25 = arith.constant 0 : i32
    %52 = arith.cmpi eq, %45, %c0_i32_25 : i32
    %53 = arith.andi %47, %52 : i1
    %54 = arith.extui %53 : i1 to i32
    %c0_i32_26 = arith.constant 0 : i32
    %55 = arith.cmpi ne, %54, %c0_i32_26 : i32
    scf.if %55 {
      %56 = tpu.iota {dimensions = array<i32: 1>} : vector<8x128xi32>
      %57 = arith.sitofp %56 : vector<8x128xi32> to vector<8x128xf32>
      %cst_27 = arith.constant dense<0xFF800000> : vector<8xf32>
      %58 = vector.multi_reduction <maximumf>, %40, %cst_27 [1] : vector<8x128xf32> to vector<8xf32>
      %59 = vector.shape_cast %58 : vector<8xf32> to vector<8x1xf32>
      %60 = vector.broadcast %59 : vector<8x1xf32> to vector<8x128xf32>
      %61 = arith.cmpf oeq, %40, %60 : vector<8x128xf32>
      %cst_28 = arith.constant 1.280000e+02 : f32
      %62 = vector.broadcast %cst_28 : f32 to vector<8x128xf32>
      %63 = arith.select %61, %57, %62 : vector<8x128xi1>, vector<8x128xf32>
      %cst_29 = arith.constant dense<0x7F800000> : vector<8xf32>
      %64 = vector.multi_reduction <minimumf>, %63, %cst_29 [1] : vector<8x128xf32> to vector<8xf32>
      %65 = vector.shape_cast %64 : vector<8xf32> to vector<8x1xf32>
      %66 = vector.broadcast %65 : vector<8x1xf32> to vector<8x128xf32>
      %67 = arith.cmpf oeq, %57, %66 : vector<8x128xf32>
      %68 = arith.extui %67 : vector<8x128xi1> to vector<8x128xi32>
      %69 = arith.sitofp %68 : vector<8x128xi32> to vector<8x128xf32>
      %c0_30 = arith.constant 0 : index
      %c0_31 = arith.constant 0 : index
      %70 = vector.load %arg6[%c0_30, %c0_31] : memref<128x512xf32, #tpu.memory_space<vmem>>, vector<128x512xf32>
      %cst_32 = arith.constant dense<0.000000e+00> : vector<8x512xf32>
      %71 = tpu.matmul %69, %70, %cst_32 {dimension_numbers = #tpu.dot_dimension_numbers<[1], [0], [0], [1], [0, 0, 1, 1], [], []>} : vector<8x128xf32>, vector<128x512xf32>, vector<8x512xf32> -> vector<8x512xf32>
      %c0_33 = arith.constant 0 : index
      %c0_34 = arith.constant 0 : index
      %72 = vector.load %arg12[%c0_33, %c0_34] : memref<8x512xf32, #tpu.memory_space<vmem>>, vector<8x512xf32>
      tpu.vector_store %arg12[%c0_33, %c0_34], %71 {strides = array<i32>} : memref<8x512xf32, #tpu.memory_space<vmem>>, vector<8x512xf32>,
    } else {
    }
    return
  }
  func.func @transform_0(%arg0: i32, %arg1: memref<8xi32, #tpu.memory_space<smem>>) -> (i32, i32, i32) {
    %c0_i32 = arith.constant 0 : i32
    %c0_i32_0 = arith.constant 0 : i32
    %c0_i32_1 = arith.constant 0 : i32
    %c0_i32_2 = arith.constant 0 : i32
    return %c0_i32, %c0_i32_0, %c0_i32_1 : i32, i32, i32
  }
  func.func @transform_1(%arg0: i32, %arg1: memref<8xi32, #tpu.memory_space<smem>>) -> (i32, i32, i32) {
    %c0_i32 = arith.constant 0 : i32
    %c0_i32_0 = arith.constant 0 : i32
    %c0_i32_1 = arith.constant 0 : i32
    return %arg0, %c0_i32, %c0_i32_0 : i32, i32, i32
  }
  func.func @transform_2(%arg0: i32, %arg1: memref<8xi32, #tpu.memory_space<smem>>) -> (i32, i32) {
    %c0_i32 = arith.constant 0 : i32
    %c0_i32_0 = arith.constant 0 : i32
    %c0_i32_1 = arith.constant 0 : i32
    return %c0_i32, %c0_i32_0 : i32, i32
  }
  func.func @transform_3(%arg0: i32, %arg1: memref<8xi32, #tpu.memory_space<smem>>) -> (i32, i32) {
    %c0_i32 = arith.constant 0 : i32
    %c0_i32_0 = arith.constant 0 : i32
    %c0_i32_1 = arith.constant 0 : i32
    return %c0_i32, %c0_i32_0 : i32, i32
  }
  func.func @transform_4(%arg0: i32, %arg1: memref<8xi32, #tpu.memory_space<smem>>) -> (i32, i32) {
    %c0_i32 = arith.constant 0 : i32
    %c0_i32_0 = arith.constant 0 : i32
    %c0_i32_1 = arith.constant 0 : i32
    return %c0_i32, %c0_i32_0 : i32, i32
  }
  func.func @transform_5(%arg0: i32, %arg1: memref<8xi32, #tpu.memory_space<smem>>) -> (i32, i32) {
    %c0_i32 = arith.constant 0 : i32
    %c0_i32_0 = arith.constant 0 : i32
    %c0_i32_1 = arith.constant 0 : i32
    return %c0_i32, %c0_i32_0 : i32, i32
  }
  func.func @transform_6(%arg0: i32, %arg1: memref<8xi32, #tpu.memory_space<smem>>) -> (i32, i32) {
    %c0_i32 = arith.constant 0 : i32
    %c0_i32_0 = arith.constant 0 : i32
    %c0_i32_1 = arith.constant 0 : i32
    return %c0_i32, %c0_i32_0 : i32, i32
  }
  func.func @transform_7(%arg0: i32, %arg1: memref<8xi32, #tpu.memory_space<smem>>) -> (i32, i32, i32) {
    %c0_i32 = arith.constant 0 : i32
    %c0_i32_0 = arith.constant 0 : i32
    %c0_i32_1 = arith.constant 0 : i32
    return %arg0, %c0_i32, %c0_i32_0 : i32, i32, i32
  }
}

</mosaic_0001>

<llo_original>
// kernel: seq2seq_forward.1
$region0: #{seq2seq_forward.1}
  #allocation0 [shape = 'u32[]', space=smem, size = 0x4, offset = 0x4, fixed_abs, tag = 'smem constant byte address 0x4 - core index']
  #allocation1 [shape = 'u32[72,128]{1,0:T(1,128)}', space=vmem, size = 0x9000, scoped, tag = 'internal scratch']
  #allocation2 [shape = 'f32[8,128]{1,0:T(8,128)}', space=vmem, size = 0x1000, scoped, tag = 'scratch operand']
  #allocation3 [shape = 'f32[8,128]{1,0:T(8,128)}', space=vmem, size = 0x1000, scoped, tag = 'scratch operand']
  #allocation4 [shape = 'f32[8,512]{1,0:T(8,128)}', space=vmem, size = 0x4000, scoped, tag = 'scratch operand']
  #allocation5 [shape = 's32[1]{0}', space=sflag, size = 0x4, scoped, tag = 'scoped memory for seq2seq_forward.1']
  #allocation6 [shape = 'u8[512]{0}', space=smem, size = 0x200, scoped, tag = 'prefetched SMEM operand 0']
  %s0 = inlined_call_operand.vmem [shape: s32[8], index: 0, kind: input, shape index: {}]
  %s1 = inlined_call_operand.vmem [shape: f32[8,8,512], index: 1, kind: input, shape index: {}]
  %s2 = inlined_call_operand.vmem [shape: f32[8,8,512], index: 2, kind: input, shape index: {}]
  %s3 = inlined_call_operand.vmem [shape: f32[128,512], index: 3, kind: input, shape index: {}]
  %s4 = inlined_call_operand.vmem [shape: f32[128,512], index: 4, kind: input, shape index: {}]
  %s5 = inlined_call_operand.vmem [shape: f32[128,512], index: 5, kind: input, shape index: {}]
  %s6 = inlined_call_operand.vmem [shape: f32[128,128], index: 6, kind: input, shape index: {}]
  %s7 = inlined_call_operand.vmem [shape: f32[1,128], index: 7, kind: input, shape index: {}]
  %s8 = inlined_call_operand.vmem [shape: f32[8,8,128], index: 8, kind: output, shape index: {}]
  %s9 = sld [smem:[#allocation0]]
  $region73: #{seq2seq_forward.1} parent=0
    _
  %s11 = ssub.s32 1, %s9
  %s12 = scalar_select 0, %s11, %s9
  %s14 = sshll.u32 %s0, 4
  %s15 = int_to_ptr.vmem [resolvable:$true] %s14
  %17 = dma.vmem_to_smem %s15, 16, [#allocation6], [#allocation5]
  %19 = dma.done [#allocation5], 16
  %20 = sfence
  loop: start=0, step=1, limit=10
  $region2: #{seq2seq_forward.1} parent=0 // loop_pre_header
    _
  $region3: #{seq2seq_forward.1} parent=0 // loop_header
    %s22 = sphi 0, %s26
    %p23 = scmp.ge.s32.totalorder %s22, 10
    %s30 = sphi 0, %s30
    %s32 = sphi 0, %s30
    %s33 = sphi 0, %s32
    %s47 = sphi 0, %s33
    %s53 = sphi 0, %s55
    %s56 = sphi 0, %s53
    %s57 = sphi 0, %s56
    %s73 = sphi 0, %s57
    %s77 = sphi 0, %s77
    %s79 = sphi 0, %s77
    %s80 = sphi 0, %s79
    %s94 = sphi 0, %s80
    %s98 = sphi 0, %s98
    %s100 = sphi 0, %s98
    %s101 = sphi 0, %s100
    %s115 = sphi 0, %s101
    %s119 = sphi 0, %s119
    %s121 = sphi 0, %s119
    %s122 = sphi 0, %s121
    %s136 = sphi 0, %s122
    %s140 = sphi 0, %s140
    %s142 = sphi 0, %s140
    %s143 = sphi 0, %s142
    %s157 = sphi 0, %s143
    %s161 = sphi 0, %s161
    %s163 = sphi 0, %s161
    %s164 = sphi 0, %s163
    %s178 = sphi 0, %s164
    %s184 = sphi 0, %s186
    %s187 = sphi 0, %s184
    %s188 = sphi 0, %s187
    %s204 = sphi 0, %s188
  $region4: #{seq2seq_forward.1} parent=0 // loop_header_branch
    %25 = sbr.rel (%p23) target = $region8
  $region5: #{seq2seq_forward.1} parent=0 // loop_body
    %s27 = ssub.s32 %s22, 1
    %s28 = ssub.s32 %s22, 2
    %s29 = sadd.s32 %s22, 1
    %s31 = sadd.s32 %s30, 1
    %p34 = scmp.eq.s32.totalorder %s22, 7
    %p35 = scmp.ne.s32.totalorder %s30, %s32
    %p36 = scmp.eq.s32.totalorder %s22, 0
    %p37 = por %p35, %p36
    %p38 = scmp.ne.s32.totalorder %s30, %s32
    %p39 = scmp.eq.s32.totalorder %s27, 7
    %p40 = por %p38, %p39
    %p41 = scmp.ne.s32.totalorder %s32, %s33
    %p42 = scmp.eq.s32.totalorder %s27, 0
    %p43 = por %p41, %p42
    %p44 = scmp.ne.s32.totalorder %s32, %s33
    %p45 = scmp.eq.s32.totalorder %s28, 7
    %p46 = por %p44, %p45
    %p48 = scmp.ne.s32.totalorder %s33, %s47
    %p49 = scmp.eq.s32.totalorder %s28, 0
    %p50 = por %p48, %p49
    %s51 = ssub.s32 %s22, %s29
    %p52 = scmp.eq.s32.totalorder %s51, 0
    %s54 = sadd.s32 %s53, 1
    %s55 = scalar_select %p52, %s53, %s54
    %p58 = pneg %p52
    %p59 = scmp.eq.s32.totalorder %s22, 7
    %p60 = por %p58, %p59
    %p61 = scmp.ne.s32.totalorder %s53, %s56
    %p62 = scmp.eq.s32.totalorder %s22, 0
    %p63 = por %p61, %p62
    %p64 = scmp.ne.s32.totalorder %s53, %s56
    %p65 = scmp.eq.s32.totalorder %s27, 7
    %p66 = por %p64, %p65
    %p67 = scmp.ne.s32.totalorder %s56, %s57
    %p68 = scmp.eq.s32.totalorder %s27, 0
    %p69 = por %p67, %p68
    %p70 = scmp.ne.s32.totalorder %s56, %s57
    %p71 = scmp.eq.s32.totalorder %s28, 7
    %p72 = por %p70, %p71
    %p74 = scmp.ne.s32.totalorder %s57, %s73
    %p75 = scmp.eq.s32.totalorder %s28, 0
    %p76 = por %p74, %p75
    %s78 = sadd.s32 %s77, 1
    %p81 = scmp.eq.s32.totalorder %s22, 7
    %p82 = scmp.ne.s32.totalorder %s77, %s79
    %p83 = scmp.eq.s32.totalorder %s22, 0
    %p84 = por %p82, %p83
    %p85 = scmp.ne.s32.totalorder %s77, %s79
    %p86 = scmp.eq.s32.totalorder %s27, 7
    %p87 = por %p85, %p86
    %p88 = scmp.ne.s32.totalorder %s79, %s80
    %p89 = scmp.eq.s32.totalorder %s27, 0
    %p90 = por %p88, %p89
    %p91 = scmp.ne.s32.totalorder %s79, %s80
    %p92 = scmp.eq.s32.totalorder %s28, 7
    %p93 = por %p91, %p92
    %p95 = scmp.ne.s32.totalorder %s80, %s94
    %p96 = scmp.eq.s32.totalorder %s28, 0
    %p97 = por %p95, %p96
    %s99 = sadd.s32 %s98, 1
    %p102 = scmp.eq.s32.totalorder %s22, 7
    %p103 = scmp.ne.s32.totalorder %s98, %s100
    %p104 = scmp.eq.s32.totalorder %s22, 0
    %p105 = por %p103, %p104
    %p106 = scmp.ne.s32.totalorder %s98, %s100
    %p107 = scmp.eq.s32.totalorder %s27, 7
    %p108 = por %p106, %p107
    %p109 = scmp.ne.s32.totalorder %s100, %s101
    %p110 = scmp.eq.s32.totalorder %s27, 0
    %p111 = por %p109, %p110
    %p112 = scmp.ne.s32.totalorder %s100, %s101
    %p113 = scmp.eq.s32.totalorder %s28, 7
    %p114 = por %p112, %p113
    %p116 = scmp.ne.s32.totalorder %s101, %s115
    %p117 = scmp.eq.s32.totalorder %s28, 0
    %p118 = por %p116, %p117
    %s120 = sadd.s32 %s119, 1
    %p123 = scmp.eq.s32.totalorder %s22, 7
    %p124 = scmp.ne.s32.totalorder %s119, %s121
    %p125 = scmp.eq.s32.totalorder %s22, 0
    %p126 = por %p124, %p125
    %p127 = scmp.ne.s32.totalorder %s119, %s121
    %p128 = scmp.eq.s32.totalorder %s27, 7
    %p129 = por %p127, %p128
    %p130 = scmp.ne.s32.totalorder %s121, %s122
    %p131 = scmp.eq.s32.totalorder %s27, 0
    %p132 = por %p130, %p131
    %p133 = scmp.ne.s32.totalorder %s121, %s122
    %p134 = scmp.eq.s32.totalorder %s28, 7
    %p135 = por %p133, %p134
    %p137 = scmp.ne.s32.totalorder %s122, %s136
    %p138 = scmp.eq.s32.totalorder %s28, 0
    %p139 = por %p137, %p138
    %s141 = sadd.s32 %s140, 1
    %p144 = scmp.eq.s32.totalorder %s22, 7
    %p145 = scmp.ne.s32.totalorder %s140, %s142
    %p146 = scmp.eq.s32.totalorder %s22, 0
    %p147 = por %p145, %p146
    %p148 = scmp.ne.s32.totalorder %s140, %s142
    %p149 = scmp.eq.s32.totalorder %s27, 7
    %p150 = por %p148, %p149
    %p151 = scmp.ne.s32.totalorder %s142, %s143
    %p152 = scmp.eq.s32.totalorder %s27, 0
    %p153 = por %p151, %p152
    %p154 = scmp.ne.s32.totalorder %s142, %s143
    %p155 = scmp.eq.s32.totalorder %s28, 7
    %p156 = por %p154, %p155
    %p158 = scmp.ne.s32.totalorder %s143, %s157
    %p159 = scmp.eq.s32.totalorder %s28, 0
    %p160 = por %p158, %p159
    %s162 = sadd.s32 %s161, 1
    %p165 = scmp.eq.s32.totalorder %s22, 7
    %p166 = scmp.ne.s32.totalorder %s161, %s163
    %p167 = scmp.eq.s32.totalorder %s22, 0
    %p168 = por %p166, %p167
    %p169 = scmp.ne.s32.totalorder %s161, %s163
    %p170 = scmp.eq.s32.totalorder %s27, 7
    %p171 = por %p169, %p170
    %p172 = scmp.ne.s32.totalorder %s163, %s164
    %p173 = scmp.eq.s32.totalorder %s27, 0
    %p174 = por %p172, %p173
    %p175 = scmp.ne.s32.totalorder %s163, %s164
    %p176 = scmp.eq.s32.totalorder %s28, 7
    %p177 = por %p175, %p176
    %p179 = scmp.ne.s32.totalorder %s164, %s178
    %p180 = scmp.eq.s32.totalorder %s28, 0
    %p181 = por %p179, %p180
    %s182 = ssub.s32 %s22, %s29
    %p183 = scmp.eq.s32.totalorder %s182, 0
    %s185 = sadd.s32 %s184, 1
    %s186 = scalar_select %p183, %s184, %s185
    %p189 = pneg %p183
    %p190 = scmp.eq.s32.totalorder %s22, 7
    %p191 = por %p189, %p190
    %p192 = scmp.ne.s32.totalorder %s184, %s187
    %p193 = scmp.eq.s32.totalorder %s22, 0
    %p194 = por %p192, %p193
    %p195 = scmp.ne.s32.totalorder %s184, %s187
    %p196 = scmp.eq.s32.totalorder %s27, 7
    %p197 = por %p195, %p196
    %p198 = scmp.ne.s32.totalorder %s187, %s188
    %p199 = scmp.eq.s32.totalorder %s27, 0
    %p200 = por %p198, %p199
    %p201 = scmp.ne.s32.totalorder %s187, %s188
    %p202 = scmp.eq.s32.totalorder %s28, 7
    %p203 = por %p201, %p202
    %p205 = scmp.ne.s32.totalorder %s188, %s204
    %p206 = scmp.eq.s32.totalorder %s28, 0
    %p207 = por %p205, %p206
    %p208 = scmp.le.s32.totalorder 1, %s22
    %p209 = scmp.lt.s32.totalorder %s22, 9
    %p210 = pnand %p208, %p209
    %p211 = pneg %p210
    // Predicated region
    $region9: #{seq2seq_forward.1} parent=5 // pred_check
      _
    $region10: #{seq2seq_forward.1} parent=5 // pred_check_branch
      %213 = sbr.rel (%p210) target = $region12
    $region11: #{seq2seq_forward.1} parent=5 // pred_region
      %s214 = ssub.s32 %s22, 1
      // Predicated region
      $region13: #{seq2seq_forward.1} parent=11 // pred_check
        %p215 = pneg %p43
      $region14: #{seq2seq_forward.1} parent=11 // pred_check_branch
        %217 = sbr.rel (%p215) target = $region16
      $region15: #{seq2seq_forward.1} parent=11 // pred_region
        _
      $region16: #{seq2seq_forward.1} parent=11 // pred_fallthru
        _
      // Predicated region
      $region17: #{seq2seq_forward.1} parent=11 // pred_check
        %p218 = pneg %p90
      $region18: #{seq2seq_forward.1} parent=11 // pred_check_branch
        %220 = sbr.rel (%p218) target = $region20
      $region19: #{seq2seq_forward.1} parent=11 // pred_region
        _
      $region20: #{seq2seq_forward.1} parent=11 // pred_fallthru
        _
      // Predicated region
      $region21: #{seq2seq_forward.1} parent=11 // pred_check
        %p221 = pneg %p111
      $region22: #{seq2seq_forward.1} parent=11 // pred_check_branch
        %223 = sbr.rel (%p221) target = $region24
      $region23: #{seq2seq_forward.1} parent=11 // pred_region
        _
      $region24: #{seq2seq_forward.1} parent=11 // pred_fallthru
        _
      // Predicated region
      $region25: #{seq2seq_forward.1} parent=11 // pred_check
        %p224 = pneg %p132
      $region26: #{seq2seq_forward.1} parent=11 // pred_check_branch
        %226 = sbr.rel (%p224) target = $region28
      $region27: #{seq2seq_forward.1} parent=11 // pred_region
        _
      $region28: #{seq2seq_forward.1} parent=11 // pred_fallthru
        _
      // Predicated region
      $region29: #{seq2seq_forward.1} parent=11 // pred_check
        %p227 = pneg %p153
      $region30: #{seq2seq_forward.1} parent=11 // pred_check_branch
        %229 = sbr.rel (%p227) target = $region32
      $region31: #{seq2seq_forward.1} parent=11 // pred_region
        _
      $region32: #{seq2seq_forward.1} parent=11 // pred_fallthru
        _
      // Predicated region
      $region33: #{seq2seq_forward.1} parent=11 // pred_check
        %p230 = pneg %p174
      $region34: #{seq2seq_forward.1} parent=11 // pred_check_branch
        %232 = sbr.rel (%p230) target = $region36
      $region35: #{seq2seq_forward.1} parent=11 // pred_region
        _
      $region36: #{seq2seq_forward.1} parent=11 // pred_fallthru
        _
    $region12: #{seq2seq_forward.1} parent=5 // pred_fallthru
      _
    %p233 = scmp.lt.s32.totalorder %s22, 8
    // Predicated region
    $region37: #{seq2seq_forward.1} parent=5 // pred_check
      %p234 = pneg %p233
    $region38: #{seq2seq_forward.1} parent=5 // pred_check_branch
      %236 = sbr.rel (%p234) target = $region40
    $region39: #{seq2seq_forward.1} parent=5 // pred_region
      // Predicated region
      $region41: #{seq2seq_forward.1} parent=39 // pred_check
        %p237 = pneg %p63
      $region42: #{seq2seq_forward.1} parent=39 // pred_check_branch
        %239 = sbr.rel (%p237) target = $region44
      $region43: #{seq2seq_forward.1} parent=39 // pred_region
        %p240 = scmp.lt.s32.totalorder %s22, 7
        %s241 = scalar_select %p240, %s22, 7
        %s242 = smul.addr %s241, 4
        %s243 = smul.addr %s242, 8
        %s244 = scalar_lea.vmem %s2, %s243
      $region44: #{seq2seq_forward.1} parent=39 // pred_fallthru
        _
    $region40: #{seq2seq_forward.1} parent=5 // pred_fallthru
      _
    %p245 = scmp.le.s32.totalorder 1, %s22
    %p246 = scmp.lt.s32.totalorder %s22, 9
    %p247 = pnand %p245, %p246
    %p248 = pneg %p247
    // Predicated region
    $region45: #{seq2seq_forward.1} parent=5 // pred_check
      _
    $region46: #{seq2seq_forward.1} parent=5 // pred_check_branch
      %250 = sbr.rel (%p247) target = $region48
    $region47: #{seq2seq_forward.1} parent=5 // pred_region
      %s251 = ssub.s32 %s22, 1
      %p252 = pneg %p43
      %p253 = pneg %p40
      %p254 = scmp.lt.s32.totalorder %s27, 7
      %s255 = scalar_select %p254, %s27, 7
      %s256 = smul.addr %s255, 4
      %s257 = smul.addr %s256, 8
      %s258 = scalar_lea.vmem %s2, %s257
      %p259 = pneg %p69
      %p260 = pneg %p66
      %p261 = pneg %p90
      %p262 = pneg %p87
      %p263 = pneg %p111
      %p264 = pneg %p108
      %p265 = pneg %p132
      %p266 = pneg %p129
      %p267 = pneg %p153
      %p268 = pneg %p150
      %p269 = pneg %p174
      %p270 = pneg %p171
      %p271 = pneg %p200
      %p272 = pneg %p197
      %p273 = scmp.lt.s32.totalorder %s27, 7
      %s274 = scalar_select %p273, %s27, 7
      %s275 = smul.addr %s274, 8
      %s276 = scalar_lea.vmem %s8, %s275
      %p277 = scmp.lt.s32.totalorder %s27, 7
      %s278 = scalar_select %p277, %s27, 7
      %s279 = smul.addr %s278, 4
      %s280 = smul.addr %s279, 8
      %s281 = scalar_lea.vmem %s2, %s280
      %p282 = scmp.lt.s32.totalorder %s27, 7
      %s283 = scalar_select %p282, %s27, 7
      %s284 = smul.addr %s283, 8
      %s285 = scalar_lea.vmem %s8, %s284
      %p286 = scmp.eq.s32.totalorder %s27, 0
      // Predicated region
      $region49: #{seq2seq_forward.1} parent=47 // pred_check
        %p287 = pneg %p286
      $region50: #{seq2seq_forward.1} parent=47 // pred_check_branch
        %289 = sbr.rel (%p287) target = $region52
      $region51: #{seq2seq_forward.1} parent=47 // pred_region
        %290 = vst [vmem:[#allocation2] sm:$0xff] 0.0
        %291 = vst [vmem:[#allocation3] sm:$0xff] 0.0
        %v292 = vld [vmem:[%s1] sm:$0xff]
        %v293 = vld [vmem:[%s1 + $0x8] sm:$0xff]
        %v294 = vld [vmem:[%s1 + $0x10] sm:$0xff]
        %v295 = vld [vmem:[%s1 + $0x18] sm:$0xff]
        %v296 = vld [vmem:[#allocation2] sm:$0xff]
        %v297 = vld [vmem:[%s3] sm:$0xff]
        %v298 = vld [vmem:[%s3 + $0x8] sm:$0xff]
        %v299 = vld [vmem:[%s3 + $0x10] sm:$0xff]
        %v300 = vld [vmem:[%s3 + $0x18] sm:$0xff]
        %v301 = vld [vmem:[%s3 + $0x20] sm:$0xff]
        %v302 = vld [vmem:[%s3 + $0x28] sm:$0xff]
        %v303 = vld [vmem:[%s3 + $0x30] sm:$0xff]
        %v304 = vld [vmem:[%s3 + $0x38] sm:$0xff]
        %v305 = vld [vmem:[%s3 + $0x40] sm:$0xff]
        %v306 = vld [vmem:[%s3 + $0x48] sm:$0xff]
        %v307 = vld [vmem:[%s3 + $0x50] sm:$0xff]
        %v308 = vld [vmem:[%s3 + $0x58] sm:$0xff]
        %v309 = vld [vmem:[%s3 + $0x60] sm:$0xff]
        %v310 = vld [vmem:[%s3 + $0x68] sm:$0xff]
        %v311 = vld [vmem:[%s3 + $0x70] sm:$0xff]
        %v312 = vld [vmem:[%s3 + $0x78] sm:$0xff]
        %v313 = vld [vmem:[%s3 + $0x80] sm:$0xff]
        %v314 = vld [vmem:[%s3 + $0x88] sm:$0xff]
        %v315 = vld [vmem:[%s3 + $0x90] sm:$0xff]
        %v316 = vld [vmem:[%s3 + $0x98] sm:$0xff]
        %v317 = vld [vmem:[%s3 + $0xa0] sm:$0xff]
        %v318 = vld [vmem:[%s3 + $0xa8] sm:$0xff]
        %v319 = vld [vmem:[%s3 + $0xb0] sm:$0xff]
        %v320 = vld [vmem:[%s3 + $0xb8] sm:$0xff]
        %v321 = vld [vmem:[%s3 + $0xc0] sm:$0xff]
        %v322 = vld [vmem:[%s3 + $0xc8] sm:$0xff]
        %v323 = vld [vmem:[%s3 + $0xd0] sm:$0xff]
        %v324 = vld [vmem:[%s3 + $0xd8] sm:$0xff]
        %v325 = vld [vmem:[%s3 + $0xe0] sm:$0xff]
        %v326 = vld [vmem:[%s3 + $0xe8] sm:$0xff]
        %v327 = vld [vmem:[%s3 + $0xf0] sm:$0xff]
        %v328 = vld [vmem:[%s3 + $0xf8] sm:$0xff]
        %v329 = vld [vmem:[%s3 + $0x100] sm:$0xff]
        %v330 = vld [vmem:[%s3 + $0x108] sm:$0xff]
        %v331 = vld [vmem:[%s3 + $0x110] sm:$0xff]
        %v332 = vld [vmem:[%s3 + $0x118] sm:$0xff]
        %v333 = vld [vmem:[%s3 + $0x120] sm:$0xff]
        %v334 = vld [vmem:[%s3 + $0x128] sm:$0xff]
        %v335 = vld [vmem:[%s3 + $0x130] sm:$0xff]
        %v336 = vld [vmem:[%s3 + $0x138] sm:$0xff]
        %v337 = vld [vmem:[%s3 + $0x140] sm:$0xff]
        %v338 = vld [vmem:[%s3 + $0x148] sm:$0xff]
        %v339 = vld [vmem:[%s3 + $0x150] sm:$0xff]
        %v340 = vld [vmem:[%s3 + $0x158] sm:$0xff]
        %v341 = vld [vmem:[%s3 + $0x160] sm:$0xff]
        %v342 = vld [vmem:[%s3 + $0x168] sm:$0xff]
        %v343 = vld [vmem:[%s3 + $0x170] sm:$0xff]
        %v344 = vld [vmem:[%s3 + $0x178] sm:$0xff]
        %v345 = vld [vmem:[%s3 + $0x180] sm:$0xff]
        %v346 = vld [vmem:[%s3 + $0x188] sm:$0xff]
        %v347 = vld [vmem:[%s3 + $0x190] sm:$0xff]
        %v348 = vld [vmem:[%s3 + $0x198] sm:$0xff]
        %v349 = vld [vmem:[%s3 + $0x1a0] sm:$0xff]
        %v350 = vld [vmem:[%s3 + $0x1a8] sm:$0xff]
        %v351 = vld [vmem:[%s3 + $0x1b0] sm:$0xff]
        %v352 = vld [vmem:[%s3 + $0x1b8] sm:$0xff]
        %v353 = vld [vmem:[%s3 + $0x1c0] sm:$0xff]
        %v354 = vld [vmem:[%s3 + $0x1c8] sm:$0xff]
        %v355 = vld [vmem:[%s3 + $0x1d0] sm:$0xff]
        %v356 = vld [vmem:[%s3 + $0x1d8] sm:$0xff]
        %v357 = vld [vmem:[%s3 + $0x1e0] sm:$0xff]
        %v358 = vld [vmem:[%s3 + $0x1e8] sm:$0xff]
        %v359 = vld [vmem:[%s3 + $0x1f0] sm:$0xff]
        %v360 = vld [vmem:[%s3 + $0x1f8] sm:$0xff]
        %361 = vmatpush.msra.mxu0 %v357
        %362 = vmatpush.msra.mxu0 %v353
        %363 = vmatpush.msra.mxu0 %v349
        %364 = vmatpush.msra.mxu0 %v345
        %365 = vmatpush.msra.mxu0 %v341
        %366 = vmatpush.msra.mxu0 %v337
        %367 = vmatpush.msra.mxu0 %v333
        %368 = vmatpush.msra.mxu0 %v329
        %369 = vmatpush.msra.mxu0 %v325
        %370 = vmatpush.msra.mxu0 %v321
        %371 = vmatpush.msra.mxu0 %v317
        %372 = vmatpush.msra.mxu0 %v313
        %373 = vmatpush.msra.mxu0 %v309
        %374 = vmatpush.msra.mxu0 %v305
        %375 = vmatpush.msra.mxu0 %v301
        %376 = vmatpush.msra.mxu0 %v297
        %377 = vmatmul.f32.gmra.mxu0 %v296
        %v378 = vpop.f32.mrf.mxu0
        %v379 = vadd.f32 0.0, %v378
        %380 = vdwg.mxu0
        %381 = vmatpush.msra.mxu0 %v358
        %382 = vmatpush.msra.mxu0 %v354
        %383 = vmatpush.msra.mxu0 %v350
        %384 = vmatpush.msra.mxu0 %v346
        %385 = vmatpush.msra.mxu0 %v342
        %386 = vmatpush.msra.mxu0 %v338
        %387 = vmatpush.msra.mxu0 %v334
        %388 = vmatpush.msra.mxu0 %v330
        %389 = vmatpush.msra.mxu0 %v326
        %390 = vmatpush.msra.mxu0 %v322
        %391 = vmatpush.msra.mxu0 %v318
        %392 = vmatpush.msra.mxu0 %v314
        %393 = vmatpush.msra.mxu0 %v310
        %394 = vmatpush.msra.mxu0 %v306
        %395 = vmatpush.msra.mxu0 %v302
        %396 = vmatpush.msra.mxu0 %v298
        %397 = vmatmul.f32.gmra.mxu0 %v296
        %v398 = vpop.f32.mrf.mxu0
        %v399 = vadd.f32 0.0, %v398
        %400 = vdwg.mxu0
        %401 = vmatpush.msra.mxu0 %v359
        %402 = vmatpush.msra.mxu0 %v355
        %403 = vmatpush.msra.mxu0 %v351
        %404 = vmatpush.msra.mxu0 %v347
        %405 = vmatpush.msra.mxu0 %v343
        %406 = vmatpush.msra.mxu0 %v339
        %407 = vmatpush.msra.mxu0 %v335
        %408 = vmatpush.msra.mxu0 %v331
        %409 = vmatpush.msra.mxu0 %v327
        %410 = vmatpush.msra.mxu0 %v323
        %411 = vmatpush.msra.mxu0 %v319
        %412 = vmatpush.msra.mxu0 %v315
        %413 = vmatpush.msra.mxu0 %v311
        %414 = vmatpush.msra.mxu0 %v307
        %415 = vmatpush.msra.mxu0 %v303
        %416 = vmatpush.msra.mxu0 %v299
        %417 = vmatmul.f32.gmra.mxu0 %v296
        %v418 = vpop.f32.mrf.mxu0
        %v419 = vadd.f32 0.0, %v418
        %420 = vdwg.mxu0
        %421 = vmatpush.msra.mxu0 %v360
        %422 = vmatpush.msra.mxu0 %v356
        %423 = vmatpush.msra.mxu0 %v352
        %424 = vmatpush.msra.mxu0 %v348
        %425 = vmatpush.msra.mxu0 %v344
        %426 = vmatpush.msra.mxu0 %v340
        %427 = vmatpush.msra.mxu0 %v336
        %428 = vmatpush.msra.mxu0 %v332
        %429 = vmatpush.msra.mxu0 %v328
        %430 = vmatpush.msra.mxu0 %v324
        %431 = vmatpush.msra.mxu0 %v320
        %432 = vmatpush.msra.mxu0 %v316
        %433 = vmatpush.msra.mxu0 %v312
        %434 = vmatpush.msra.mxu0 %v308
        %435 = vmatpush.msra.mxu0 %v304
        %436 = vmatpush.msra.mxu0 %v300
        %437 = vmatmul.f32.gmra.mxu0 %v296
        %v438 = vpop.f32.mrf.mxu0
        %v439 = vadd.f32 0.0, %v438
        %440 = vdwg.mxu0
        %v441 = vadd.f32 %v292, %v379
        %v442 = vadd.f32 %v293, %v399
        %v443 = vadd.f32 %v294, %v419
        %v444 = vadd.f32 %v295, %v439
        %v445 = vxor.u32 %v441, 2147483648
        %v446 = vmul.f32 %v445, 1.442695
        %v447 = vpow.pop %v446
        %v448 = vadd.f32 %v447, 1.0
        %v449 = vrcp.pop %v448
        %v450 = vmul.f32 %v448, %v449
        %v451 = vsub.f32 1.0, %v450
        %v452 = vmul.f32 %v449, %v451
        %v453 = vadd.f32 %v449, %v452
        %vm454 = vweird.f32 %v448
        %vm455 = vweird.f32 %v449
        %vm456 = vmor %vm454, %vm455
        %v457 = vsel %vm456, %v449, %v453
        %v458 = vand.u32 2147483647, %v448
        %vm459 = vcmp.eq.f32.partialorder %v458, 8.507059e+37
        %v460 = vand.u32 %v448, 2147483648
        %v461 = vor.u32 1.1754944e-38, %v460
        %v462 = vsel %vm459, %v461, %v457
        %v463 = vmul.f32 1.0, %v462
        %v464 = vxor.u32 %v442, 2147483648
        %v465 = vmul.f32 %v464, 1.442695
        %v466 = vpow.pop %v465
        %v467 = vadd.f32 %v466, 1.0
        %v468 = vrcp.pop %v467
        %v469 = vmul.f32 %v467, %v468
        %v470 = vsub.f32 1.0, %v469
        %v471 = vmul.f32 %v468, %v470
        %v472 = vadd.f32 %v468, %v471
        %vm473 = vweird.f32 %v467
        %vm474 = vweird.f32 %v468
        %vm475 = vmor %vm473, %vm474
        %v476 = vsel %vm475, %v468, %v472
        %v477 = vand.u32 2147483647, %v467
        %vm478 = vcmp.eq.f32.partialorder %v477, 8.507059e+37
        %v479 = vand.u32 %v467, 2147483648
        %v480 = vor.u32 1.1754944e-38, %v479
        %v481 = vsel %vm478, %v480, %v476
        %v482 = vmul.f32 1.0, %v481
        %v483 = vtanh.pop %v443
        %v484 = vxor.u32 %v444, 2147483648
        %v485 = vmul.f32 %v484, 1.442695
        %v486 = vpow.pop %v485
        %v487 = vadd.f32 %v486, 1.0
        %v488 = vrcp.pop %v487
        %v489 = vmul.f32 %v487, %v488
        %v490 = vsub.f32 1.0, %v489
        %v491 = vmul.f32 %v488, %v490
        %v492 = vadd.f32 %v488, %v491
        %vm493 = vweird.f32 %v487
        %vm494 = vweird.f32 %v488
        %vm495 = vmor %vm493, %vm494
        %v496 = vsel %vm495, %v488, %v492
        %v497 = vand.u32 2147483647, %v487
        %vm498 = vcmp.eq.f32.partialorder %v497, 8.507059e+37
        %v499 = vand.u32 %v487, 2147483648
        %v500 = vor.u32 1.1754944e-38, %v499
        %v501 = vsel %vm498, %v500, %v496
        %v502 = vmul.f32 1.0, %v501
        %v503 = vld [vmem:[#allocation3] sm:$0xff]
        %v504 = vmul.f32 %v482, %v503
        %v505 = vmul.f32 %v463, %v483
        %v506 = vadd.f32 %v504, %v505
        %v507 = vtanh.pop %v506
        %v508 = vmul.f32 %v502, %v507
        %509 = vst [vmem:[#allocation2] sm:$0xff] %v508
        %510 = vst [vmem:[#allocation3] sm:$0xff] %v506
        %s511 = scalar_lea.vmem %s1, 32
        %v512 = vld [vmem:[%s511] sm:$0xff]
        %v513 = vld [vmem:[%s511 + $0x8] sm:$0xff]
        %v514 = vld [vmem:[%s511 + $0x10] sm:$0xff]
        %v515 = vld [vmem:[%s511 + $0x18] sm:$0xff]
        %v516 = vld [vmem:[#allocation2] sm:$0xff]
        %v517 = vld [vmem:[%s3] sm:$0xff]
        %v518 = vld [vmem:[%s3 + $0x8] sm:$0xff]
        %v519 = vld [vmem:[%s3 + $0x10] sm:$0xff]
        %v520 = vld [vmem:[%s3 + $0x18] sm:$0xff]
        %v521 = vld [vmem:[%s3 + $0x20] sm:$0xff]
        %v522 = vld [vmem:[%s3 + $0x28] sm:$0xff]
        %v523 = vld [vmem:[%s3 + $0x30] sm:$0xff]
        %v524 = vld [vmem:[%s3 + $0x38] sm:$0xff]
        %v525 = vld [vmem:[%s3 + $0x40] sm:$0xff]
        %v526 = vld [vmem:[%s3 + $0x48] sm:$0xff]
        %v527 = vld [vmem:[%s3 + $0x50] sm:$0xff]
        %v528 = vld [vmem:[%s3 + $0x58] sm:$0xff]
        %v529 = vld [vmem:[%s3 + $0x60] sm:$0xff]
        %v530 = vld [vmem:[%s3 + $0x68] sm:$0xff]
        %v531 = vld [vmem:[%s3 + $0x70] sm:$0xff]
        %v532 = vld [vmem:[%s3 + $0x78] sm:$0xff]
        %v533 = vld [vmem:[%s3 + $0x80] sm:$0xff]
        %v534 = vld [vmem:[%s3 + $0x88] sm:$0xff]
        %v535 = vld [vmem:[%s3 + $0x90] sm:$0xff]
        %v536 = vld [vmem:[%s3 + $0x98] sm:$0xff]
        %v537 = vld [vmem:[%s3 + $0xa0] sm:$0xff]
        %v538 = vld [vmem:[%s3 + $0xa8] sm:$0xff]
        %v539 = vld [vmem:[%s3 + $0xb0] sm:$0xff]
        %v540 = vld [vmem:[%s3 + $0xb8] sm:$0xff]
        %v541 = vld [vmem:[%s3 + $0xc0] sm:$0xff]
        %v542 = vld [vmem:[%s3 + $0xc8] sm:$0xff]
        %v543 = vld [vmem:[%s3 + $0xd0] sm:$0xff]
        %v544 = vld [vmem:[%s3 + $0xd8] sm:$0xff]
        %v545 = vld [vmem:[%s3 + $0xe0] sm:$0xff]
        %v546 = vld [vmem:[%s3 + $0xe8] sm:$0xff]
        %v547 = vld [vmem:[%s3 + $0xf0] sm:$0xff]
        %v548 = vld [vmem:[%s3 + $0xf8] sm:$0xff]
        %v549 = vld [vmem:[%s3 + $0x100] sm:$0xff]
        %v550 = vld [vmem:[%s3 + $0x108] sm:$0xff]
        %v551 = vld [vmem:[%s3 + $0x110] sm:$0xff]
        %v552 = vld [vmem:[%s3 + $0x118] sm:$0xff]
        %v553 = vld [vmem:[%s3 + $0x120] sm:$0xff]
        %v554 = vld [vmem:[%s3 + $0x128] sm:$0xff]
        %v555 = vld [vmem:[%s3 + $0x130] sm:$0xff]
        %v556 = vld [vmem:[%s3 + $0x138] sm:$0xff]
        %v557 = vld [vmem:[%s3 + $0x140] sm:$0xff]
        %v558 = vld [vmem:[%s3 + $0x148] sm:$0xff]
        %v559 = vld [vmem:[%s3 + $0x150] sm:$0xff]
        %v560 = vld [vmem:[%s3 + $0x158] sm:$0xff]
        %v561 = vld [vmem:[%s3 + $0x160] sm:$0xff]
        %v562 = vld [vmem:[%s3 + $0x168] sm:$0xff]
        %v563 = vld [vmem:[%s3 + $0x170] sm:$0xff]
        %v564 = vld [vmem:[%s3 + $0x178] sm:$0xff]
        %v565 = vld [vmem:[%s3 + $0x180] sm:$0xff]
        %v566 = vld [vmem:[%s3 + $0x188] sm:$0xff]
        %v567 = vld [vmem:[%s3 + $0x190] sm:$0xff]
        %v568 = vld [vmem:[%s3 + $0x198] sm:$0xff]
        %v569 = vld [vmem:[%s3 + $0x1a0] sm:$0xff]
        %v570 = vld [vmem:[%s3 + $0x1a8] sm:$0xff]
        %v571 = vld [vmem:[%s3 + $0x1b0] sm:$0xff]
        %v572 = vld [vmem:[%s3 + $0x1b8] sm:$0xff]
        %v573 = vld [vmem:[%s3 + $0x1c0] sm:$0xff]
        %v574 = vld [vmem:[%s3 + $0x1c8] sm:$0xff]
        %v575 = vld [vmem:[%s3 + $0x1d0] sm:$0xff]
        %v576 = vld [vmem:[%s3 + $0x1d8] sm:$0xff]
        %v577 = vld [vmem:[%s3 + $0x1e0] sm:$0xff]
        %v578 = vld [vmem:[%s3 + $0x1e8] sm:$0xff]
        %v579 = vld [vmem:[%s3 + $0x1f0] sm:$0xff]
        %v580 = vld [vmem:[%s3 + $0x1f8] sm:$0xff]
        %581 = vmatpush.msra.mxu0 %v577
        %582 = vmatpush.msra.mxu0 %v573
        %583 = vmatpush.msra.mxu0 %v569
        %584 = vmatpush.msra.mxu0 %v565
        %585 = vmatpush.msra.mxu0 %v561
        %586 = vmatpush.msra.mxu0 %v557
        %587 = vmatpush.msra.mxu0 %v553
        %588 = vmatpush.msra.mxu0 %v549
        %589 = vmatpush.msra.mxu0 %v545
        %590 = vmatpush.msra.mxu0 %v541
        %591 = vmatpush.msra.mxu0 %v537
        %592 = vmatpush.msra.mxu0 %v533
        %593 = vmatpush.msra.mxu0 %v529
        %594 = vmatpush.msra.mxu0 %v525
        %595 = vmatpush.msra.mxu0 %v521
        %596 = vmatpush.msra.mxu0 %v517
        %597 = vmatmul.f32.gmra.mxu0 %v516
        %v598 = vpop.f32.mrf.mxu0
        %v599 = vadd.f32 0.0, %v598
        %600 = vdwg.mxu0
        %601 = vmatpush.msra.mxu0 %v578
        %602 = vmatpush.msra.mxu0 %v574
        %603 = vmatpush.msra.mxu0 %v570
        %604 = vmatpush.msra.mxu0 %v566
        %605 = vmatpush.msra.mxu0 %v562
        %606 = vmatpush.msra.mxu0 %v558
        %607 = vmatpush.msra.mxu0 %v554
        %608 = vmatpush.msra.mxu0 %v550
        %609 = vmatpush.msra.mxu0 %v546
        %610 = vmatpush.msra.mxu0 %v542
        %611 = vmatpush.msra.mxu0 %v538
        %612 = vmatpush.msra.mxu0 %v534
        %613 = vmatpush.msra.mxu0 %v530
        %614 = vmatpush.msra.mxu0 %v526
        %615 = vmatpush.msra.mxu0 %v522
        %616 = vmatpush.msra.mxu0 %v518
        %617 = vmatmul.f32.gmra.mxu0 %v516
        %v618 = vpop.f32.mrf.mxu0
        %v619 = vadd.f32 0.0, %v618
        %620 = vdwg.mxu0
        %621 = vmatpush.msra.mxu0 %v579
        %622 = vmatpush.msra.mxu0 %v575
        %623 = vmatpush.msra.mxu0 %v571
        %624 = vmatpush.msra.mxu0 %v567
        %625 = vmatpush.msra.mxu0 %v563
        %626 = vmatpush.msra.mxu0 %v559
        %627 = vmatpush.msra.mxu0 %v555
        %628 = vmatpush.msra.mxu0 %v551
        %629 = vmatpush.msra.mxu0 %v547
        %630 = vmatpush.msra.mxu0 %v543
        %631 = vmatpush.msra.mxu0 %v539
        %632 = vmatpush.msra.mxu0 %v535
        %633 = vmatpush.msra.mxu0 %v531
        %634 = vmatpush.msra.mxu0 %v527
        %635 = vmatpush.msra.mxu0 %v523
        %636 = vmatpush.msra.mxu0 %v519
        %637 = vmatmul.f32.gmra.mxu0 %v516
        %v638 = vpop.f32.mrf.mxu0
        %v639 = vadd.f32 0.0, %v638
        %640 = vdwg.mxu0
        %641 = vmatpush.msra.mxu0 %v580
        %642 = vmatpush.msra.mxu0 %v576
        %643 = vmatpush.msra.mxu0 %v572
        %644 = vmatpush.msra.mxu0 %v568
        %645 = vmatpush.msra.mxu0 %v564
        %646 = vmatpush.msra.mxu0 %v560
        %647 = vmatpush.msra.mxu0 %v556
        %648 = vmatpush.msra.mxu0 %v552
        %649 = vmatpush.msra.mxu0 %v548
        %650 = vmatpush.msra.mxu0 %v544
        %651 = vmatpush.msra.mxu0 %v540
        %652 = vmatpush.msra.mxu0 %v536
        %653 = vmatpush.msra.mxu0 %v532
        %654 = vmatpush.msra.mxu0 %v528
        %655 = vmatpush.msra.mxu0 %v524
        %656 = vmatpush.msra.mxu0 %v520
        %657 = vmatmul.f32.gmra.mxu0 %v516
        %v658 = vpop.f32.mrf.mxu0
        %v659 = vadd.f32 0.0, %v658
        %660 = vdwg.mxu0
        %v661 = vadd.f32 %v512, %v599
        %v662 = vadd.f32 %v513, %v619
        %v663 = vadd.f32 %v514, %v639
        %v664 = vadd.f32 %v515, %v659
        %v665 = vxor.u32 %v661, 2147483648
        %v666 = vmul.f32 %v665, 1.442695
        %v667 = vpow.pop %v666
        %v668 = vadd.f32 %v667, 1.0
        %v669 = vrcp.pop %v668
        %v670 = vmul.f32 %v668, %v669
        %v671 = vsub.f32 1.0, %v670
        %v672 = vmul.f32 %v669, %v671
        %v673 = vadd.f32 %v669, %v672
        %vm674 = vweird.f32 %v668
        %vm675 = vweird.f32 %v669
        %vm676 = vmor %vm674, %vm675
        %v677 = vsel %vm676, %v669, %v673
        %v678 = vand.u32 2147483647, %v668
        %vm679 = vcmp.eq.f32.partialorder %v678, 8.507059e+37
        %v680 = vand.u32 %v668, 2147483648
        %v681 = vor.u32 1.1754944e-38, %v680
        %v682 = vsel %vm679, %v681, %v677
        %v683 = vmul.f32 1.0, %v682
        %v684 = vxor.u32 %v662, 2147483648
        %v685 = vmul.f32 %v684, 1.442695
        %v686 = vpow.pop %v685
        %v687 = vadd.f32 %v686, 1.0
        %v688 = vrcp.pop %v687
        %v689 = vmul.f32 %v687, %v688
        %v690 = vsub.f32 1.0, %v689
        %v691 = vmul.f32 %v688, %v690
        %v692 = vadd.f32 %v688, %v691
        %vm693 = vweird.f32 %v687
        %vm694 = vweird.f32 %v688
        %vm695 = vmor %vm693, %vm694
        %v696 = vsel %vm695, %v688, %v692
        %v697 = vand.u32 2147483647, %v687
        %vm698 = vcmp.eq.f32.partialorder %v697, 8.507059e+37
        %v699 = vand.u32 %v687, 2147483648
        %v700 = vor.u32 1.1754944e-38, %v699
        %v701 = vsel %vm698, %v700, %v696
        %v702 = vmul.f32 1.0, %v701
        %v703 = vtanh.pop %v663
        %v704 = vxor.u32 %v664, 2147483648
        %v705 = vmul.f32 %v704, 1.442695
        %v706 = vpow.pop %v705
        %v707 = vadd.f32 %v706, 1.0
        %v708 = vrcp.pop %v707
        %v709 = vmul.f32 %v707, %v708
        %v710 = vsub.f32 1.0, %v709
        %v711 = vmul.f32 %v708, %v710
        %v712 = vadd.f32 %v708, %v711
        %vm713 = vweird.f32 %v707
        %vm714 = vweird.f32 %v708
        %vm715 = vmor %vm713, %vm714
        %v716 = vsel %vm715, %v708, %v712
        %v717 = vand.u32 2147483647, %v707
        %vm718 = vcmp.eq.f32.partialorder %v717, 8.507059e+37
        %v719 = vand.u32 %v707, 2147483648
        %v720 = vor.u32 1.1754944e-38, %v719
        %v721 = vsel %vm718, %v720, %v716
        %v722 = vmul.f32 1.0, %v721
        %v723 = vld [vmem:[#allocation3] sm:$0xff]
        %v724 = vmul.f32 %v702, %v723
        %v725 = vmul.f32 %v683, %v703
        %v726 = vadd.f32 %v724, %v725
        %v727 = vtanh.pop %v726
        %v728 = vmul.f32 %v722, %v727
        %729 = vst [vmem:[#allocation2] sm:$0xff] %v728
        %730 = vst [vmem:[#allocation3] sm:$0xff] %v726
        %s731 = scalar_lea.vmem %s1, 64
        %v732 = vld [vmem:[%s731] sm:$0xff]
        %v733 = vld [vmem:[%s731 + $0x8] sm:$0xff]
        %v734 = vld [vmem:[%s731 + $0x10] sm:$0xff]
        %v735 = vld [vmem:[%s731 + $0x18] sm:$0xff]
        %v736 = vld [vmem:[#allocation2] sm:$0xff]
        %v737 = vld [vmem:[%s3] sm:$0xff]
        %v738 = vld [vmem:[%s3 + $0x8] sm:$0xff]
        %v739 = vld [vmem:[%s3 + $0x10] sm:$0xff]
        %v740 = vld [vmem:[%s3 + $0x18] sm:$0xff]
        %v741 = vld [vmem:[%s3 + $0x20] sm:$0xff]
        %v742 = vld [vmem:[%s3 + $0x28] sm:$0xff]
        %v743 = vld [vmem:[%s3 + $0x30] sm:$0xff]
        %v744 = vld [vmem:[%s3 + $0x38] sm:$0xff]
        %v745 = vld [vmem:[%s3 + $0x40] sm:$0xff]
        %v746 = vld [vmem:[%s3 + $0x48] sm:$0xff]
        %v747 = vld [vmem:[%s3 + $0x50] sm:$0xff]
        %v748 = vld [vmem:[%s3 + $0x58] sm:$0xff]
        %v749 = vld [vmem:[%s3 + $0x60] sm:$0xff]
        %v750 = vld [vmem:[%s3 + $0x68] sm:$0xff]
        %v751 = vld [vmem:[%s3 + $0x70] sm:$0xff]
        %v752 = vld [vmem:[%s3 + $0x78] sm:$0xff]
        %v753 = vld [vmem:[%s3 + $0x80] sm:$0xff]
        %v754 = vld [vmem:[%s3 + $0x88] sm:$0xff]
        %v755 = vld [vmem:[%s3 + $0x90] sm:$0xff]
        %v756 = vld [vmem:[%s3 + $0x98] sm:$0xff]
        %v757 = vld [vmem:[%s3 + $0xa0] sm:$0xff]
        %v758 = vld [vmem:[%s3 + $0xa8] sm:$0xff]
        %v759 = vld [vmem:[%s3 + $0xb0] sm:$0xff]
        %v760 = vld [vmem:[%s3 + $0xb8] sm:$0xff]
        %v761 = vld [vmem:[%s3 + $0xc0] sm:$0xff]
        %v762 = vld [vmem:[%s3 + $0xc8] sm:$0xff]
        %v763 = vld [vmem:[%s3 + $0xd0] sm:$0xff]
        %v764 = vld [vmem:[%s3 + $0xd8] sm:$0xff]
        %v765 = vld [vmem:[%s3 + $0xe0] sm:$0xff]
        %v766 = vld [vmem:[%s3 + $0xe8] sm:$0xff]
        %v767 = vld [vmem:[%s3 + $0xf0] sm:$0xff]
        %v768 = vld [vmem:[%s3 + $0xf8] sm:$0xff]
        %v769 = vld [vmem:[%s3 + $0x100] sm:$0xff]
        %v770 = vld [vmem:[%s3 + $0x108] sm:$0xff]
        %v771 = vld [vmem:[%s3 + $0x110] sm:$0xff]
        %v772 = vld [vmem:[%s3 + $0x118] sm:$0xff]
        %v773 = vld [vmem:[%s3 + $0x120] sm:$0xff]
        %v774 = vld [vmem:[%s3 + $0x128] sm:$0xff]
        %v775 = vld [vmem:[%s3 + $0x130] sm:$0xff]
        %v776 = vld [vmem:[%s3 + $0x138] sm:$0xff]
        %v777 = vld [vmem:[%s3 + $0x140] sm:$0xff]
        %v778 = vld [vmem:[%s3 + $0x148] sm:$0xff]
        %v779 = vld [vmem:[%s3 + $0x150] sm:$0xff]
        %v780 = vld [vmem:[%s3 + $0x158] sm:$0xff]
        %v781 = vld [vmem:[%s3 + $0x160] sm:$0xff]
        %v782 = vld [vmem:[%s3 + $0x168] sm:$0xff]
        %v783 = vld [vmem:[%s3 + $0x170] sm:$0xff]
        %v784 = vld [vmem:[%s3 + $0x178] sm:$0xff]
        %v785 = vld [vmem:[%s3 + $0x180] sm:$0xff]
        %v786 = vld [vmem:[%s3 + $0x188] sm:$0xff]
        %v787 = vld [vmem:[%s3 + $0x190] sm:$0xff]
        %v788 = vld [vmem:[%s3 + $0x198] sm:$0xff]
        %v789 = vld [vmem:[%s3 + $0x1a0] sm:$0xff]
        %v790 = vld [vmem:[%s3 + $0x1a8] sm:$0xff]
        %v791 = vld [vmem:[%s3 + $0x1b0] sm:$0xff]
        %v792 = vld [vmem:[%s3 + $0x1b8] sm:$0xff]
        %v793 = vld [vmem:[%s3 + $0x1c0] sm:$0xff]
        %v794 = vld [vmem:[%s3 + $0x1c8] sm:$0xff]
        %v795 = vld [vmem:[%s3 + $0x1d0] sm:$0xff]
        %v796 = vld [vmem:[%s3 + $0x1d8] sm:$0xff]
        %v797 = vld [vmem:[%s3 + $0x1e0] sm:$0xff]
        %v798 = vld [vmem:[%s3 + $0x1e8] sm:$0xff]
        %v799 = vld [vmem:[%s3 + $0x1f0] sm:$0xff]
        %v800 = vld [vmem:[%s3 + $0x1f8] sm:$0xff]
        %801 = vmatpush.msra.mxu0 %v797
        %802 = vmatpush.msra.mxu0 %v793
        %803 = vmatpush.msra.mxu0 %v789
        %804 = vmatpush.msra.mxu0 %v785
        %805 = vmatpush.msra.mxu0 %v781
        %806 = vmatpush.msra.mxu0 %v777
        %807 = vmatpush.msra.mxu0 %v773
        %808 = vmatpush.msra.mxu0 %v769
        %809 = vmatpush.msra.mxu0 %v765
        %810 = vmatpush.msra.mxu0 %v761
        %811 = vmatpush.msra.mxu0 %v757
        %812 = vmatpush.msra.mxu0 %v753
        %813 = vmatpush.msra.mxu0 %v749
        %814 = vmatpush.msra.mxu0 %v745
        %815 = vmatpush.msra.mxu0 %v741
        %816 = vmatpush.msra.mxu0 %v737
        %817 = vmatmul.f32.gmra.mxu0 %v736
        %v818 = vpop.f32.mrf.mxu0
        %v819 = vadd.f32 0.0, %v818
        %820 = vdwg.mxu0
        %821 = vmatpush.msra.mxu0 %v798
        %822 = vmatpush.msra.mxu0 %v794
        %823 = vmatpush.msra.mxu0 %v790
        %824 = vmatpush.msra.mxu0 %v786
        %825 = vmatpush.msra.mxu0 %v782
        %826 = vmatpush.msra.mxu0 %v778
        %827 = vmatpush.msra.mxu0 %v774
        %828 = vmatpush.msra.mxu0 %v770
        %829 = vmatpush.msra.mxu0 %v766
        %830 = vmatpush.msra.mxu0 %v762
        %831 = vmatpush.msra.mxu0 %v758
        %832 = vmatpush.msra.mxu0 %v754
        %833 = vmatpush.msra.mxu0 %v750
        %834 = vmatpush.msra.mxu0 %v746
        %835 = vmatpush.msra.mxu0 %v742
        %836 = vmatpush.msra.mxu0 %v738
        %837 = vmatmul.f32.gmra.mxu0 %v736
        %v838 = vpop.f32.mrf.mxu0
        %v839 = vadd.f32 0.0, %v838
        %840 = vdwg.mxu0
        %841 = vmatpush.msra.mxu0 %v799
        %842 = vmatpush.msra.mxu0 %v795
        %843 = vmatpush.msra.mxu0 %v791
        %844 = vmatpush.msra.mxu0 %v787
        %845 = vmatpush.msra.mxu0 %v783
        %846 = vmatpush.msra.mxu0 %v779
        %847 = vmatpush.msra.mxu0 %v775
        %848 = vmatpush.msra.mxu0 %v771
        %849 = vmatpush.msra.mxu0 %v767
        %850 = vmatpush.msra.mxu0 %v763
        %851 = vmatpush.msra.mxu0 %v759
        %852 = vmatpush.msra.mxu0 %v755
        %853 = vmatpush.msra.mxu0 %v751
        %854 = vmatpush.msra.mxu0 %v747
        %855 = vmatpush.msra.mxu0 %v743
        %856 = vmatpush.msra.mxu0 %v739
        %857 = vmatmul.f32.gmra.mxu0 %v736
        %v858 = vpop.f32.mrf.mxu0
        %v859 = vadd.f32 0.0, %v858
        %860 = vdwg.mxu0
        %861 = vmatpush.msra.mxu0 %v800
        %862 = vmatpush.msra.mxu0 %v796
        %863 = vmatpush.msra.mxu0 %v792
        %864 = vmatpush.msra.mxu0 %v788
        %865 = vmatpush.msra.mxu0 %v784
        %866 = vmatpush.msra.mxu0 %v780
        %867 = vmatpush.msra.mxu0 %v776
        %868 = vmatpush.msra.mxu0 %v772
        %869 = vmatpush.msra.mxu0 %v768
        %870 = vmatpush.msra.mxu0 %v764
        %871 = vmatpush.msra.mxu0 %v760
        %872 = vmatpush.msra.mxu0 %v756
        %873 = vmatpush.msra.mxu0 %v752
        %874 = vmatpush.msra.mxu0 %v748
        %875 = vmatpush.msra.mxu0 %v744
        %876 = vmatpush.msra.mxu0 %v740
        %877 = vmatmul.f32.gmra.mxu0 %v736
        %v878 = vpop.f32.mrf.mxu0
        %v879 = vadd.f32 0.0, %v878
        %880 = vdwg.mxu0
        %v881 = vadd.f32 %v732, %v819
        %v882 = vadd.f32 %v733, %v839
        %v883 = vadd.f32 %v734, %v859
        %v884 = vadd.f32 %v735, %v879
        %v885 = vxor.u32 %v881, 2147483648
        %v886 = vmul.f32 %v885, 1.442695
        %v887 = vpow.pop %v886
        %v888 = vadd.f32 %v887, 1.0
        %v889 = vrcp.pop %v888
        %v890 = vmul.f32 %v888, %v889
        %v891 = vsub.f32 1.0, %v890
        %v892 = vmul.f32 %v889, %v891
        %v893 = vadd.f32 %v889, %v892
        %vm894 = vweird.f32 %v888
        %vm895 = vweird.f32 %v889
        %vm896 = vmor %vm894, %vm895
        %v897 = vsel %vm896, %v889, %v893
        %v898 = vand.u32 2147483647, %v888
        %vm899 = vcmp.eq.f32.partialorder %v898, 8.507059e+37
        %v900 = vand.u32 %v888, 2147483648
        %v901 = vor.u32 1.1754944e-38, %v900
        %v902 = vsel %vm899, %v901, %v897
        %v903 = vmul.f32 1.0, %v902
        %v904 = vxor.u32 %v882, 2147483648
        %v905 = vmul.f32 %v904, 1.442695
        %v906 = vpow.pop %v905
        %v907 = vadd.f32 %v906, 1.0
        %v908 = vrcp.pop %v907
        %v909 = vmul.f32 %v907, %v908
        %v910 = vsub.f32 1.0, %v909
        %v911 = vmul.f32 %v908, %v910
        %v912 = vadd.f32 %v908, %v911
        %vm913 = vweird.f32 %v907
        %vm914 = vweird.f32 %v908
        %vm915 = vmor %vm913, %vm914
        %v916 = vsel %vm915, %v908, %v912
        %v917 = vand.u32 2147483647, %v907
        %vm918 = vcmp.eq.f32.partialorder %v917, 8.507059e+37
        %v919 = vand.u32 %v907, 2147483648
        %v920 = vor.u32 1.1754944e-38, %v919
        %v921 = vsel %vm918, %v920, %v916
        %v922 = vmul.f32 1.0, %v921
        %v923 = vtanh.pop %v883
        %v924 = vxor.u32 %v884, 2147483648
        %v925 = vmul.f32 %v924, 1.442695
        %v926 = vpow.pop %v925
        %v927 = vadd.f32 %v926, 1.0
        %v928 = vrcp.pop %v927
        %v929 = vmul.f32 %v927, %v928
        %v930 = vsub.f32 1.0, %v929
        %v931 = vmul.f32 %v928, %v930
        %v932 = vadd.f32 %v928, %v931
        %vm933 = vweird.f32 %v927
        %vm934 = vweird.f32 %v928
        %vm935 = vmor %vm933, %vm934
        %v936 = vsel %vm935, %v928, %v932
        %v937 = vand.u32 2147483647, %v927
        %vm938 = vcmp.eq.f32.partialorder %v937, 8.507059e+37
        %v939 = vand.u32 %v927, 2147483648
        %v940 = vor.u32 1.1754944e-38, %v939
        %v941 = vsel %vm938, %v940, %v936
        %v942 = vmul.f32 1.0, %v941
        %v943 = vld [vmem:[#allocation3] sm:$0xff]
        %v944 = vmul.f32 %v922, %v943
        %v945 = vmul.f32 %v903, %v923
        %v946 = vadd.f32 %v944, %v945
        %v947 = vtanh.pop %v946
        %v948 = vmul.f32 %v942, %v947
        %949 = vst [vmem:[#allocation2] sm:$0xff] %v948
        %950 = vst [vmem:[#allocation3] sm:$0xff] %v946
        %s951 = scalar_lea.vmem %s1, 96
        %v952 = vld [vmem:[%s951] sm:$0xff]
        %v953 = vld [vmem:[%s951 + $0x8] sm:$0xff]
        %v954 = vld [vmem:[%s951 + $0x10] sm:$0xff]
        %v955 = vld [vmem:[%s951 + $0x18] sm:$0xff]
        %v956 = vld [vmem:[#allocation2] sm:$0xff]
        %v957 = vld [vmem:[%s3] sm:$0xff]
        %v958 = vld [vmem:[%s3 + $0x8] sm:$0xff]
        %v959 = vld [vmem:[%s3 + $0x10] sm:$0xff]
        %v960 = vld [vmem:[%s3 + $0x18] sm:$0xff]
        %v961 = vld [vmem:[%s3 + $0x20] sm:$0xff]
        %v962 = vld [vmem:[%s3 + $0x28] sm:$0xff]
        %v963 = vld [vmem:[%s3 + $0x30] sm:$0xff]
        %v964 = vld [vmem:[%s3 + $0x38] sm:$0xff]
        %v965 = vld [vmem:[%s3 + $0x40] sm:$0xff]
        %v966 = vld [vmem:[%s3 + $0x48] sm:$0xff]
        %v967 = vld [vmem:[%s3 + $0x50] sm:$0xff]
        %v968 = vld [vmem:[%s3 + $0x58] sm:$0xff]
        %v969 = vld [vmem:[%s3 + $0x60] sm:$0xff]
        %v970 = vld [vmem:[%s3 + $0x68] sm:$0xff]
        %v971 = vld [vmem:[%s3 + $0x70] sm:$0xff]
        %v972 = vld [vmem:[%s3 + $0x78] sm:$0xff]
        %v973 = vld [vmem:[%s3 + $0x80] sm:$0xff]
        %v974 = vld [vmem:[%s3 + $0x88] sm:$0xff]
        %v975 = vld [vmem:[%s3 + $0x90] sm:$0xff]
        %v976 = vld [vmem:[%s3 + $0x98] sm:$0xff]
        %v977 = vld [vmem:[%s3 + $0xa0] sm:$0xff]
        %v978 = vld [vmem:[%s3 + $0xa8] sm:$0xff]
        %v979 = vld [vmem:[%s3 + $0xb0] sm:$0xff]
        %v980 = vld [vmem:[%s3 + $0xb8] sm:$0xff]
        %v981 = vld [vmem:[%s3 + $0xc0] sm:$0xff]
        %v982 = vld [vmem:[%s3 + $0xc8] sm:$0xff]
        %v983 = vld [vmem:[%s3 + $0xd0] sm:$0xff]
        %v984 = vld [vmem:[%s3 + $0xd8] sm:$0xff]
        %v985 = vld [vmem:[%s3 + $0xe0] sm:$0xff]
        %v986 = vld [vmem:[%s3 + $0xe8] sm:$0xff]
        %v987 = vld [vmem:[%s3 + $0xf0] sm:$0xff]
        %v988 = vld [vmem:[%s3 + $0xf8] sm:$0xff]
        %v989 = vld [vmem:[%s3 + $0x100] sm:$0xff]
        %v990 = vld [vmem:[%s3 + $0x108] sm:$0xff]
        %v991 = vld [vmem:[%s3 + $0x110] sm:$0xff]
        %v992 = vld [vmem:[%s3 + $0x118] sm:$0xff]
        %v993 = vld [vmem:[%s3 + $0x120] sm:$0xff]
        %v994 = vld [vmem:[%s3 + $0x128] sm:$0xff]
        %v995 = vld [vmem:[%s3 + $0x130] sm:$0xff]
        %v996 = vld [vmem:[%s3 + $0x138] sm:$0xff]
        %v997 = vld [vmem:[%s3 + $0x140] sm:$0xff]
        %v998 = vld [vmem:[%s3 + $0x148] sm:$0xff]
        %v999 = vld [vmem:[%s3 + $0x150] sm:$0xff]
        %v1000 = vld [vmem:[%s3 + $0x158] sm:$0xff]
        %v1001 = vld [vmem:[%s3 + $0x160] sm:$0xff]
        %v1002 = vld [vmem:[%s3 + $0x168] sm:$0xff]
        %v1003 = vld [vmem:[%s3 + $0x170] sm:$0xff]
        %v1004 = vld [vmem:[%s3 + $0x178] sm:$0xff]
        %v1005 = vld [vmem:[%s3 + $0x180] sm:$0xff]
        %v1006 = vld [vmem:[%s3 + $0x188] sm:$0xff]
        %v1007 = vld [vmem:[%s3 + $0x190] sm:$0xff]
        %v1008 = vld [vmem:[%s3 + $0x198] sm:$0xff]
        %v1009 = vld [vmem:[%s3 + $0x1a0] sm:$0xff]
        %v1010 = vld [vmem:[%s3 + $0x1a8] sm:$0xff]
        %v1011 = vld [vmem:[%s3 + $0x1b0] sm:$0xff]
        %v1012 = vld [vmem:[%s3 + $0x1b8] sm:$0xff]
        %v1013 = vld [vmem:[%s3 + $0x1c0] sm:$0xff]
        %v1014 = vld [vmem:[%s3 + $0x1c8] sm:$0xff]
        %v1015 = vld [vmem:[%s3 + $0x1d0] sm:$0xff]
        %v1016 = vld [vmem:[%s3 + $0x1d8] sm:$0xff]
        %v1017 = vld [vmem:[%s3 + $0x1e0] sm:$0xff]
        %v1018 = vld [vmem:[%s3 + $0x1e8] sm:$0xff]
        %v1019 = vld [vmem:[%s3 + $0x1f0] sm:$0xff]
        %v1020 = vld [vmem:[%s3 + $0x1f8] sm:$0xff]
        %1021 = vmatpush.msra.mxu0 %v1017
        %1022 = vmatpush.msra.mxu0 %v1013
        %1023 = vmatpush.msra.mxu0 %v1009
        %1024 = vmatpush.msra.mxu0 %v1005
        %1025 = vmatpush.msra.mxu0 %v1001
        %1026 = vmatpush.msra.mxu0 %v997
        %1027 = vmatpush.msra.mxu0 %v993
        %1028 = vmatpush.msra.mxu0 %v989
        %1029 = vmatpush.msra.mxu0 %v985
        %1030 = vmatpush.msra.mxu0 %v981
        %1031 = vmatpush.msra.mxu0 %v977
        %1032 = vmatpush.msra.mxu0 %v973
        %1033 = vmatpush.msra.mxu0 %v969
        %1034 = vmatpush.msra.mxu0 %v965
        %1035 = vmatpush.msra.mxu0 %v961
        %1036 = vmatpush.msra.mxu0 %v957
        %1037 = vmatmul.f32.gmra.mxu0 %v956
        %v1038 = vpop.f32.mrf.mxu0
        %v1039 = vadd.f32 0.0, %v1038
        %1040 = vdwg.mxu0
        %1041 = vmatpush.msra.mxu0 %v1018
        %1042 = vmatpush.msra.mxu0 %v1014
        %1043 = vmatpush.msra.mxu0 %v1010
        %1044 = vmatpush.msra.mxu0 %v1006
        %1045 = vmatpush.msra.mxu0 %v1002
        %1046 = vmatpush.msra.mxu0 %v998
        %1047 = vmatpush.msra.mxu0 %v994
        %1048 = vmatpush.msra.mxu0 %v990
        %1049 = vmatpush.msra.mxu0 %v986
        %1050 = vmatpush.msra.mxu0 %v982
        %1051 = vmatpush.msra.mxu0 %v978
        %1052 = vmatpush.msra.mxu0 %v974
        %1053 = vmatpush.msra.mxu0 %v970
        %1054 = vmatpush.msra.mxu0 %v966
        %1055 = vmatpush.msra.mxu0 %v962
        %1056 = vmatpush.msra.mxu0 %v958
        %1057 = vmatmul.f32.gmra.mxu0 %v956
        %v1058 = vpop.f32.mrf.mxu0
        %v1059 = vadd.f32 0.0, %v1058
        %1060 = vdwg.mxu0
        %1061 = vmatpush.msra.mxu0 %v1019
        %1062 = vmatpush.msra.mxu0 %v1015
        %1063 = vmatpush.msra.mxu0 %v1011
        %1064 = vmatpush.msra.mxu0 %v1007
        %1065 = vmatpush.msra.mxu0 %v1003
        %1066 = vmatpush.msra.mxu0 %v999
        %1067 = vmatpush.msra.mxu0 %v995
        %1068 = vmatpush.msra.mxu0 %v991
        %1069 = vmatpush.msra.mxu0 %v987
        %1070 = vmatpush.msra.mxu0 %v983
        %1071 = vmatpush.msra.mxu0 %v979
        %1072 = vmatpush.msra.mxu0 %v975
        %1073 = vmatpush.msra.mxu0 %v971
        %1074 = vmatpush.msra.mxu0 %v967
        %1075 = vmatpush.msra.mxu0 %v963
        %1076 = vmatpush.msra.mxu0 %v959
        %1077 = vmatmul.f32.gmra.mxu0 %v956
        %v1078 = vpop.f32.mrf.mxu0
        %v1079 = vadd.f32 0.0, %v1078
        %1080 = vdwg.mxu0
        %1081 = vmatpush.msra.mxu0 %v1020
        %1082 = vmatpush.msra.mxu0 %v1016
        %1083 = vmatpush.msra.mxu0 %v1012
        %1084 = vmatpush.msra.mxu0 %v1008
        %1085 = vmatpush.msra.mxu0 %v1004
        %1086 = vmatpush.msra.mxu0 %v1000
        %1087 = vmatpush.msra.mxu0 %v996
        %1088 = vmatpush.msra.mxu0 %v992
        %1089 = vmatpush.msra.mxu0 %v988
        %1090 = vmatpush.msra.mxu0 %v984
        %1091 = vmatpush.msra.mxu0 %v980
        %1092 = vmatpush.msra.mxu0 %v976
        %1093 = vmatpush.msra.mxu0 %v972
        %1094 = vmatpush.msra.mxu0 %v968
        %1095 = vmatpush.msra.mxu0 %v964
        %1096 = vmatpush.msra.mxu0 %v960
        %1097 = vmatmul.f32.gmra.mxu0 %v956
        %v1098 = vpop.f32.mrf.mxu0
        %v1099 = vadd.f32 0.0, %v1098
        %1100 = vdwg.mxu0
        %v1101 = vadd.f32 %v952, %v1039
        %v1102 = vadd.f32 %v953, %v1059
        %v1103 = vadd.f32 %v954, %v1079
        %v1104 = vadd.f32 %v955, %v1099
        %v1105 = vxor.u32 %v1101, 2147483648
        %v1106 = vmul.f32 %v1105, 1.442695
        %v1107 = vpow.pop %v1106
        %v1108 = vadd.f32 %v1107, 1.0
        %v1109 = vrcp.pop %v1108
        %v1110 = vmul.f32 %v1108, %v1109
        %v1111 = vsub.f32 1.0, %v1110
        %v1112 = vmul.f32 %v1109, %v1111
        %v1113 = vadd.f32 %v1109, %v1112
        %vm1114 = vweird.f32 %v1108
        %vm1115 = vweird.f32 %v1109
        %vm1116 = vmor %vm1114, %vm1115
        %v1117 = vsel %vm1116, %v1109, %v1113
        %v1118 = vand.u32 2147483647, %v1108
        %vm1119 = vcmp.eq.f32.partialorder %v1118, 8.507059e+37
        %v1120 = vand.u32 %v1108, 2147483648
        %v1121 = vor.u32 1.1754944e-38, %v1120
        %v1122 = vsel %vm1119, %v1121, %v1117
        %v1123 = vmul.f32 1.0, %v1122
        %v1124 = vxor.u32 %v1102, 2147483648
        %v1125 = vmul.f32 %v1124, 1.442695
        %v1126 = vpow.pop %v1125
        %v1127 = vadd.f32 %v1126, 1.0
        %v1128 = vrcp.pop %v1127
        %v1129 = vmul.f32 %v1127, %v1128
        %v1130 = vsub.f32 1.0, %v1129
        %v1131 = vmul.f32 %v1128, %v1130
        %v1132 = vadd.f32 %v1128, %v1131
        %vm1133 = vweird.f32 %v1127
        %vm1134 = vweird.f32 %v1128
        %vm1135 = vmor %vm1133, %vm1134
        %v1136 = vsel %vm1135, %v1128, %v1132
        %v1137 = vand.u32 2147483647, %v1127
        %vm1138 = vcmp.eq.f32.partialorder %v1137, 8.507059e+37
        %v1139 = vand.u32 %v1127, 2147483648
        %v1140 = vor.u32 1.1754944e-38, %v1139
        %v1141 = vsel %vm1138, %v1140, %v1136
        %v1142 = vmul.f32 1.0, %v1141
        %v1143 = vtanh.pop %v1103
        %v1144 = vxor.u32 %v1104, 2147483648
        %v1145 = vmul.f32 %v1144, 1.442695
        %v1146 = vpow.pop %v1145
        %v1147 = vadd.f32 %v1146, 1.0
        %v1148 = vrcp.pop %v1147
        %v1149 = vmul.f32 %v1147, %v1148
        %v1150 = vsub.f32 1.0, %v1149
        %v1151 = vmul.f32 %v1148, %v1150
        %v1152 = vadd.f32 %v1148, %v1151
        %vm1153 = vweird.f32 %v1147
        %vm1154 = vweird.f32 %v1148
        %vm1155 = vmor %vm1153, %vm1154
        %v1156 = vsel %vm1155, %v1148, %v1152
        %v1157 = vand.u32 2147483647, %v1147
        %vm1158 = vcmp.eq.f32.partialorder %v1157, 8.507059e+37
        %v1159 = vand.u32 %v1147, 2147483648
        %v1160 = vor.u32 1.1754944e-38, %v1159
        %v1161 = vsel %vm1158, %v1160, %v1156
        %v1162 = vmul.f32 1.0, %v1161
        %v1163 = vld [vmem:[#allocation3] sm:$0xff]
        %v1164 = vmul.f32 %v1142, %v1163
        %v1165 = vmul.f32 %v1123, %v1143
        %v1166 = vadd.f32 %v1164, %v1165
        %v1167 = vtanh.pop %v1166
        %v1168 = vmul.f32 %v1162, %v1167
        %1169 = vst [vmem:[#allocation2] sm:$0xff] %v1168
        %1170 = vst [vmem:[#allocation3] sm:$0xff] %v1166
        %s1171 = scalar_lea.vmem %s1, 128
        %v1172 = vld [vmem:[%s1171] sm:$0xff]
        %v1173 = vld [vmem:[%s1171 + $0x8] sm:$0xff]
        %v1174 = vld [vmem:[%s1171 + $0x10] sm:$0xff]
        %v1175 = vld [vmem:[%s1171 + $0x18] sm:$0xff]
        %v1176 = vld [vmem:[#allocation2] sm:$0xff]
        %v1177 = vld [vmem:[%s3] sm:$0xff]
        %v1178 = vld [vmem:[%s3 + $0x8] sm:$0xff]
        %v1179 = vld [vmem:[%s3 + $0x10] sm:$0xff]
        %v1180 = vld [vmem:[%s3 + $0x18] sm:$0xff]
        %v1181 = vld [vmem:[%s3 + $0x20] sm:$0xff]
        %v1182 = vld [vmem:[%s3 + $0x28] sm:$0xff]
        %v1183 = vld [vmem:[%s3 + $0x30] sm:$0xff]
        %v1184 = vld [vmem:[%s3 + $0x38] sm:$0xff]
        %v1185 = vld [vmem:[%s3 + $0x40] sm:$0xff]
        %v1186 = vld [vmem:[%s3 + $0x48] sm:$0xff]
        %v1187 = vld [vmem:[%s3 + $0x50] sm:$0xff]
        %v1188 = vld [vmem:[%s3 + $0x58] sm:$0xff]
        %v1189 = vld [vmem:[%s3 + $0x60] sm:$0xff]
        %v1190 = vld [vmem:[%s3 + $0x68] sm:$0xff]
        %v1191 = vld [vmem:[%s3 + $0x70] sm:$0xff]
        %v1192 = vld [vmem:[%s3 + $0x78] sm:$0xff]
        %v1193 = vld [vmem:[%s3 + $0x80] sm:$0xff]
        %v1194 = vld [vmem:[%s3 + $0x88] sm:$0xff]
        %v1195 = vld [vmem:[%s3 + $0x90] sm:$0xff]
        %v1196 = vld [vmem:[%s3 + $0x98] sm:$0xff]
        %v1197 = vld [vmem:[%s3 + $0xa0] sm:$0xff]
        %v1198 = vld [vmem:[%s3 + $0xa8] sm:$0xff]
        %v1199 = vld [vmem:[%s3 + $0xb0] sm:$0xff]
        %v1200 = vld [vmem:[%s3 + $0xb8] sm:$0xff]
        %v1201 = vld [vmem:[%s3 + $0xc0] sm:$0xff]
        %v1202 = vld [vmem:[%s3 + $0xc8] sm:$0xff]
        %v1203 = vld [vmem:[%s3 + $0xd0] sm:$0xff]
        %v1204 = vld [vmem:[%s3 + $0xd8] sm:$0xff]
        %v1205 = vld [vmem:[%s3 + $0xe0] sm:$0xff]
        %v1206 = vld [vmem:[%s3 + $0xe8] sm:$0xff]
        %v1207 = vld [vmem:[%s3 + $0xf0] sm:$0xff]
        %v1208 = vld [vmem:[%s3 + $0xf8] sm:$0xff]
        %v1209 = vld [vmem:[%s3 + $0x100] sm:$0xff]
        %v1210 = vld [vmem:[%s3 + $0x108] sm:$0xff]
        %v1211 = vld [vmem:[%s3 + $0x110] sm:$0xff]
        %v1212 = vld [vmem:[%s3 + $0x118] sm:$0xff]
        %v1213 = vld [vmem:[%s3 + $0x120] sm:$0xff]
        %v1214 = vld [vmem:[%s3 + $0x128] sm:$0xff]
        %v1215 = vld [vmem:[%s3 + $0x130] sm:$0xff]
        %v1216 = vld [vmem:[%s3 + $0x138] sm:$0xff]
        %v1217 = vld [vmem:[%s3 + $0x140] sm:$0xff]
        %v1218 = vld [vmem:[%s3 + $0x148] sm:$0xff]
        %v1219 = vld [vmem:[%s3 + $0x150] sm:$0xff]
        %v1220 = vld [vmem:[%s3 + $0x158] sm:$0xff]
        %v1221 = vld [vmem:[%s3 + $0x160] sm:$0xff]
        %v1222 = vld [vmem:[%s3 + $0x168] sm:$0xff]
        %v1223 = vld [vmem:[%s3 + $0x170] sm:$0xff]
        %v1224 = vld [vmem:[%s3 + $0x178] sm:$0xff]
        %v1225 = vld [vmem:[%s3 + $0x180] sm:$0xff]
        %v1226 = vld [vmem:[%s3 + $0x188] sm:$0xff]
        %v1227 = vld [vmem:[%s3 + $0x190] sm:$0xff]
        %v1228 = vld [vmem:[%s3 + $0x198] sm:$0xff]
        %v1229 = vld [vmem:[%s3 + $0x1a0] sm:$0xff]
        %v1230 = vld [vmem:[%s3 + $0x1a8] sm:$0xff]
        %v1231 = vld [vmem:[%s3 + $0x1b0] sm:$0xff]
        %v1232 = vld [vmem:[%s3 + $0x1b8] sm:$0xff]
        %v1233 = vld [vmem:[%s3 + $0x1c0] sm:$0xff]
        %v1234 = vld [vmem:[%s3 + $0x1c8] sm:$0xff]
        %v1235 = vld [vmem:[%s3 + $0x1d0] sm:$0xff]
        %v1236 = vld [vmem:[%s3 + $0x1d8] sm:$0xff]
        %v1237 = vld [vmem:[%s3 + $0x1e0] sm:$0xff]
        %v1238 = vld [vmem:[%s3 + $0x1e8] sm:$0xff]
        %v1239 = vld [vmem:[%s3 + $0x1f0] sm:$0xff]
        %v1240 = vld [vmem:[%s3 + $0x1f8] sm:$0xff]
        %1241 = vmatpush.msra.mxu0 %v1237
        %1242 = vmatpush.msra.mxu0 %v1233
        %1243 = vmatpush.msra.mxu0 %v1229
        %1244 = vmatpush.msra.mxu0 %v1225
        %1245 = vmatpush.msra.mxu0 %v1221
        %1246 = vmatpush.msra.mxu0 %v1217
        %1247 = vmatpush.msra.mxu0 %v1213
        %1248 = vmatpush.msra.mxu0 %v1209
        %1249 = vmatpush.msra.mxu0 %v1205
        %1250 = vmatpush.msra.mxu0 %v1201
        %1251 = vmatpush.msra.mxu0 %v1197
        %1252 = vmatpush.msra.mxu0 %v1193
        %1253 = vmatpush.msra.mxu0 %v1189
        %1254 = vmatpush.msra.mxu0 %v1185
        %1255 = vmatpush.msra.mxu0 %v1181
        %1256 = vmatpush.msra.mxu0 %v1177
        %1257 = vmatmul.f32.gmra.mxu0 %v1176
        %v1258 = vpop.f32.mrf.mxu0
        %v1259 = vadd.f32 0.0, %v1258
        %1260 = vdwg.mxu0
        %1261 = vmatpush.msra.mxu0 %v1238
        %1262 = vmatpush.msra.mxu0 %v1234
        %1263 = vmatpush.msra.mxu0 %v1230
        %1264 = vmatpush.msra.mxu0 %v1226
        %1265 = vmatpush.msra.mxu0 %v1222
        %1266 = vmatpush.msra.mxu0 %v1218
        %1267 = vmatpush.msra.mxu0 %v1214
        %1268 = vmatpush.msra.mxu0 %v1210
        %1269 = vmatpush.msra.mxu0 %v1206
        %1270 = vmatpush.msra.mxu0 %v1202
        %1271 = vmatpush.msra.mxu0 %v1198
        %1272 = vmatpush.msra.mxu0 %v1194
        %1273 = vmatpush.msra.mxu0 %v1190
        %1274 = vmatpush.msra.mxu0 %v1186
        %1275 = vmatpush.msra.mxu0 %v1182
        %1276 = vmatpush.msra.mxu0 %v1178
        %1277 = vmatmul.f32.gmra.mxu0 %v1176
        %v1278 = vpop.f32.mrf.mxu0
        %v1279 = vadd.f32 0.0, %v1278
        %1280 = vdwg.mxu0
        %1281 = vmatpush.msra.mxu0 %v1239
        %1282 = vmatpush.msra.mxu0 %v1235
        %1283 = vmatpush.msra.mxu0 %v1231
        %1284 = vmatpush.msra.mxu0 %v1227
        %1285 = vmatpush.msra.mxu0 %v1223
        %1286 = vmatpush.msra.mxu0 %v1219
        %1287 = vmatpush.msra.mxu0 %v1215
        %1288 = vmatpush.msra.mxu0 %v1211
        %1289 = vmatpush.msra.mxu0 %v1207
        %1290 = vmatpush.msra.mxu0 %v1203
        %1291 = vmatpush.msra.mxu0 %v1199
        %1292 = vmatpush.msra.mxu0 %v1195
        %1293 = vmatpush.msra.mxu0 %v1191
        %1294 = vmatpush.msra.mxu0 %v1187
        %1295 = vmatpush.msra.mxu0 %v1183
        %1296 = vmatpush.msra.mxu0 %v1179
        %1297 = vmatmul.f32.gmra.mxu0 %v1176
        %v1298 = vpop.f32.mrf.mxu0
        %v1299 = vadd.f32 0.0, %v1298
        %1300 = vdwg.mxu0
        %1301 = vmatpush.msra.mxu0 %v1240
        %1302 = vmatpush.msra.mxu0 %v1236
        %1303 = vmatpush.msra.mxu0 %v1232
        %1304 = vmatpush.msra.mxu0 %v1228
        %1305 = vmatpush.msra.mxu0 %v1224
        %1306 = vmatpush.msra.mxu0 %v1220
        %1307 = vmatpush.msra.mxu0 %v1216
        %1308 = vmatpush.msra.mxu0 %v1212
        %1309 = vmatpush.msra.mxu0 %v1208
        %1310 = vmatpush.msra.mxu0 %v1204
        %1311 = vmatpush.msra.mxu0 %v1200
        %1312 = vmatpush.msra.mxu0 %v1196
        %1313 = vmatpush.msra.mxu0 %v1192
        %1314 = vmatpush.msra.mxu0 %v1188
        %1315 = vmatpush.msra.mxu0 %v1184
        %1316 = vmatpush.msra.mxu0 %v1180
        %1317 = vmatmul.f32.gmra.mxu0 %v1176
        %v1318 = vpop.f32.mrf.mxu0
        %v1319 = vadd.f32 0.0, %v1318
        %1320 = vdwg.mxu0
        %v1321 = vadd.f32 %v1172, %v1259
        %v1322 = vadd.f32 %v1173, %v1279
        %v1323 = vadd.f32 %v1174, %v1299
        %v1324 = vadd.f32 %v1175, %v1319
        %v1325 = vxor.u32 %v1321, 2147483648
        %v1326 = vmul.f32 %v1325, 1.442695
        %v1327 = vpow.pop %v1326
        %v1328 = vadd.f32 %v1327, 1.0
        %v1329 = vrcp.pop %v1328
        %v1330 = vmul.f32 %v1328, %v1329
        %v1331 = vsub.f32 1.0, %v1330
        %v1332 = vmul.f32 %v1329, %v1331
        %v1333 = vadd.f32 %v1329, %v1332
        %vm1334 = vweird.f32 %v1328
        %vm1335 = vweird.f32 %v1329
        %vm1336 = vmor %vm1334, %vm1335
        %v1337 = vsel %vm1336, %v1329, %v1333
        %v1338 = vand.u32 2147483647, %v1328
        %vm1339 = vcmp.eq.f32.partialorder %v1338, 8.507059e+37
        %v1340 = vand.u32 %v1328, 2147483648
        %v1341 = vor.u32 1.1754944e-38, %v1340
        %v1342 = vsel %vm1339, %v1341, %v1337
        %v1343 = vmul.f32 1.0, %v1342
        %v1344 = vxor.u32 %v1322, 2147483648
        %v1345 = vmul.f32 %v1344, 1.442695
        %v1346 = vpow.pop %v1345
        %v1347 = vadd.f32 %v1346, 1.0
        %v1348 = vrcp.pop %v1347
        %v1349 = vmul.f32 %v1347, %v1348
        %v1350 = vsub.f32 1.0, %v1349
        %v1351 = vmul.f32 %v1348, %v1350
        %v1352 = vadd.f32 %v1348, %v1351
        %vm1353 = vweird.f32 %v1347
        %vm1354 = vweird.f32 %v1348
        %vm1355 = vmor %vm1353, %vm1354
        %v1356 = vsel %vm1355, %v1348, %v1352
        %v1357 = vand.u32 2147483647, %v1347
        %vm1358 = vcmp.eq.f32.partialorder %v1357, 8.507059e+37
        %v1359 = vand.u32 %v1347, 2147483648
        %v1360 = vor.u32 1.1754944e-38, %v1359
        %v1361 = vsel %vm1358, %v1360, %v1356
        %v1362 = vmul.f32 1.0, %v1361
        %v1363 = vtanh.pop %v1323
        %v1364 = vxor.u32 %v1324, 2147483648
        %v1365 = vmul.f32 %v1364, 1.442695
        %v1366 = vpow.pop %v1365
        %v1367 = vadd.f32 %v1366, 1.0
        %v1368 = vrcp.pop %v1367
        %v1369 = vmul.f32 %v1367, %v1368
        %v1370 = vsub.f32 1.0, %v1369
        %v1371 = vmul.f32 %v1368, %v1370
        %v1372 = vadd.f32 %v1368, %v1371
        %vm1373 = vweird.f32 %v1367
        %vm1374 = vweird.f32 %v1368
        %vm1375 = vmor %vm1373, %vm1374
        %v1376 = vsel %vm1375, %v1368, %v1372
        %v1377 = vand.u32 2147483647, %v1367
        %vm1378 = vcmp.eq.f32.partialorder %v1377, 8.507059e+37
        %v1379 = vand.u32 %v1367, 2147483648
        %v1380 = vor.u32 1.1754944e-38, %v1379
        %v1381 = vsel %vm1378, %v1380, %v1376
        %v1382 = vmul.f32 1.0, %v1381
        %v1383 = vld [vmem:[#allocation3] sm:$0xff]
        %v1384 = vmul.f32 %v1362, %v1383
        %v1385 = vmul.f32 %v1343, %v1363
        %v1386 = vadd.f32 %v1384, %v1385
        %v1387 = vtanh.pop %v1386
        %v1388 = vmul.f32 %v1382, %v1387
        %1389 = vst [vmem:[#allocation2] sm:$0xff] %v1388
        %1390 = vst [vmem:[#allocation3] sm:$0xff] %v1386
        %s1391 = scalar_lea.vmem %s1, 160
        %v1392 = vld [vmem:[%s1391] sm:$0xff]
        %v1393 = vld [vmem:[%s1391 + $0x8] sm:$0xff]
        %v1394 = vld [vmem:[%s1391 + $0x10] sm:$0xff]
        %v1395 = vld [vmem:[%s1391 + $0x18] sm:$0xff]
        %v1396 = vld [vmem:[#allocation2] sm:$0xff]
        %v1397 = vld [vmem:[%s3] sm:$0xff]
        %v1398 = vld [vmem:[%s3 + $0x8] sm:$0xff]
        %v1399 = vld [vmem:[%s3 + $0x10] sm:$0xff]
        %v1400 = vld [vmem:[%s3 + $0x18] sm:$0xff]
        %v1401 = vld [vmem:[%s3 + $0x20] sm:$0xff]
        %v1402 = vld [vmem:[%s3 + $0x28] sm:$0xff]
        %v1403 = vld [vmem:[%s3 + $0x30] sm:$0xff]
        %v1404 = vld [vmem:[%s3 + $0x38] sm:$0xff]
        %v1405 = vld [vmem:[%s3 + $0x40] sm:$0xff]
        %v1406 = vld [vmem:[%s3 + $0x48] sm:$0xff]
        %v1407 = vld [vmem:[%s3 + $0x50] sm:$0xff]
        %v1408 = vld [vmem:[%s3 + $0x58] sm:$0xff]
        %v1409 = vld [vmem:[%s3 + $0x60] sm:$0xff]
        %v1410 = vld [vmem:[%s3 + $0x68] sm:$0xff]
        %v1411 = vld [vmem:[%s3 + $0x70] sm:$0xff]
        %v1412 = vld [vmem:[%s3 + $0x78] sm:$0xff]
        %v1413 = vld [vmem:[%s3 + $0x80] sm:$0xff]
        %v1414 = vld [vmem:[%s3 + $0x88] sm:$0xff]
        %v1415 = vld [vmem:[%s3 + $0x90] sm:$0xff]
        %v1416 = vld [vmem:[%s3 + $0x98] sm:$0xff]
        %v1417 = vld [vmem:[%s3 + $0xa0] sm:$0xff]
        %v1418 = vld [vmem:[%s3 + $0xa8] sm:$0xff]
        %v1419 = vld [vmem:[%s3 + $0xb0] sm:$0xff]
        %v1420 = vld [vmem:[%s3 + $0xb8] sm:$0xff]
        %v1421 = vld [vmem:[%s3 + $0xc0] sm:$0xff]
        %v1422 = vld [vmem:[%s3 + $0xc8] sm:$0xff]
        %v1423 = vld [vmem:[%s3 + $0xd0] sm:$0xff]
        %v1424 = vld [vmem:[%s3 + $0xd8] sm:$0xff]
        %v1425 = vld [vmem:[%s3 + $0xe0] sm:$0xff]
        %v1426 = vld [vmem:[%s3 + $0xe8] sm:$0xff]
        %v1427 = vld [vmem:[%s3 + $0xf0] sm:$0xff]
        %v1428 = vld [vmem:[%s3 + $0xf8] sm:$0xff]
        %v1429 = vld [vmem:[%s3 + $0x100] sm:$0xff]
        %v1430 = vld [vmem:[%s3 + $0x108] sm:$0xff]
        %v1431 = vld [vmem:[%s3 + $0x110] sm:$0xff]
        %v1432 = vld [vmem:[%s3 + $0x118] sm:$0xff]
        %v1433 = vld [vmem:[%s3 + $0x120] sm:$0xff]
        %v1434 = vld [vmem:[%s3 + $0x128] sm:$0xff]
        %v1435 = vld [vmem:[%s3 + $0x130] sm:$0xff]
        %v1436 = vld [vmem:[%s3 + $0x138] sm:$0xff]
        %v1437 = vld [vmem:[%s3 + $0x140] sm:$0xff]
        %v1438 = vld [vmem:[%s3 + $0x148] sm:$0xff]
        %v1439 = vld [vmem:[%s3 + $0x150] sm:$0xff]
        %v1440 = vld [vmem:[%s3 + $0x158] sm:$0xff]
        %v1441 = vld [vmem:[%s3 + $0x160] sm:$0xff]
        %v1442 = vld [vmem:[%s3 + $0x168] sm:$0xff]
        %v1443 = vld [vmem:[%s3 + $0x170] sm:$0xff]
        %v1444 = vld [vmem:[%s3 + $0x178] sm:$0xff]
        %v1445 = vld [vmem:[%s3 + $0x180] sm:$0xff]
        %v1446 = vld [vmem:[%s3 + $0x188] sm:$0xff]
        %v1447 = vld [vmem:[%s3 + $0x190] sm:$0xff]
        %v1448 = vld [vmem:[%s3 + $0x198] sm:$0xff]
        %v1449 = vld [vmem:[%s3 + $0x1a0] sm:$0xff]
        %v1450 = vld [vmem:[%s3 + $0x1a8] sm:$0xff]
        %v1451 = vld [vmem:[%s3 + $0x1b0] sm:$0xff]
        %v1452 = vld [vmem:[%s3 + $0x1b8] sm:$0xff]
        %v1453 = vld [vmem:[%s3 + $0x1c0] sm:$0xff]
        %v1454 = vld [vmem:[%s3 + $0x1c8] sm:$0xff]
        %v1455 = vld [vmem:[%s3 + $0x1d0] sm:$0xff]
        %v1456 = vld [vmem:[%s3 + $0x1d8] sm:$0xff]
        %v1457 = vld [vmem:[%s3 + $0x1e0] sm:$0xff]
        %v1458 = vld [vmem:[%s3 + $0x1e8] sm:$0xff]
        %v1459 = vld [vmem:[%s3 + $0x1f0] sm:$0xff]
        %v1460 = vld [vmem:[%s3 + $0x1f8] sm:$0xff]
        %1461 = vmatpush.msra.mxu0 %v1457
        %1462 = vmatpush.msra.mxu0 %v1453
        %1463 = vmatpush.msra.mxu0 %v1449
        %1464 = vmatpush.msra.mxu0 %v1445
        %1465 = vmatpush.msra.mxu0 %v1441
        %1466 = vmatpush.msra.mxu0 %v1437
        %1467 = vmatpush.msra.mxu0 %v1433
        %1468 = vmatpush.msra.mxu0 %v1429
        %1469 = vmatpush.msra.mxu0 %v1425
        %1470 = vmatpush.msra.mxu0 %v1421
        %1471 = vmatpush.msra.mxu0 %v1417
        %1472 = vmatpush.msra.mxu0 %v1413
        %1473 = vmatpush.msra.mxu0 %v1409
        %1474 = vmatpush.msra.mxu0 %v1405
        %1475 = vmatpush.msra.mxu0 %v1401
        %1476 = vmatpush.msra.mxu0 %v1397
        %1477 = vmatmul.f32.gmra.mxu0 %v1396
        %v1478 = vpop.f32.mrf.mxu0
        %v1479 = vadd.f32 0.0, %v1478
        %1480 = vdwg.mxu0
        %1481 = vmatpush.msra.mxu0 %v1458
        %1482 = vmatpush.msra.mxu0 %v1454
        %1483 = vmatpush.msra.mxu0 %v1450
        %1484 = vmatpush.msra.mxu0 %v1446
        %1485 = vmatpush.msra.mxu0 %v1442
        %1486 = vmatpush.msra.mxu0 %v1438
        %1487 = vmatpush.msra.mxu0 %v1434
        %1488 = vmatpush.msra.mxu0 %v1430
        %1489 = vmatpush.msra.mxu0 %v1426
        %1490 = vmatpush.msra.mxu0 %v1422
        %1491 = vmatpush.msra.mxu0 %v1418
        %1492 = vmatpush.msra.mxu0 %v1414
        %1493 = vmatpush.msra.mxu0 %v1410
        %1494 = vmatpush.msra.mxu0 %v1406
        %1495 = vmatpush.msra.mxu0 %v1402
        %1496 = vmatpush.msra.mxu0 %v1398
        %1497 = vmatmul.f32.gmra.mxu0 %v1396
        %v1498 = vpop.f32.mrf.mxu0
        %v1499 = vadd.f32 0.0, %v1498
        %1500 = vdwg.mxu0
        %1501 = vmatpush.msra.mxu0 %v1459
        %1502 = vmatpush.msra.mxu0 %v1455
        %1503 = vmatpush.msra.mxu0 %v1451
        %1504 = vmatpush.msra.mxu0 %v1447
        %1505 = vmatpush.msra.mxu0 %v1443
        %1506 = vmatpush.msra.mxu0 %v1439
        %1507 = vmatpush.msra.mxu0 %v1435
        %1508 = vmatpush.msra.mxu0 %v1431
        %1509 = vmatpush.msra.mxu0 %v1427
        %1510 = vmatpush.msra.mxu0 %v1423
        %1511 = vmatpush.msra.mxu0 %v1419
        %1512 = vmatpush.msra.mxu0 %v1415
        %1513 = vmatpush.msra.mxu0 %v1411
        %1514 = vmatpush.msra.mxu0 %v1407
        %1515 = vmatpush.msra.mxu0 %v1403
        %1516 = vmatpush.msra.mxu0 %v1399
        %1517 = vmatmul.f32.gmra.mxu0 %v1396
        %v1518 = vpop.f32.mrf.mxu0
        %v1519 = vadd.f32 0.0, %v1518
        %1520 = vdwg.mxu0
        %1521 = vmatpush.msra.mxu0 %v1460
        %1522 = vmatpush.msra.mxu0 %v1456
        %1523 = vmatpush.msra.mxu0 %v1452
        %1524 = vmatpush.msra.mxu0 %v1448
        %1525 = vmatpush.msra.mxu0 %v1444
        %1526 = vmatpush.msra.mxu0 %v1440
        %1527 = vmatpush.msra.mxu0 %v1436
        %1528 = vmatpush.msra.mxu0 %v1432
        %1529 = vmatpush.msra.mxu0 %v1428
        %1530 = vmatpush.msra.mxu0 %v1424
        %1531 = vmatpush.msra.mxu0 %v1420
        %1532 = vmatpush.msra.mxu0 %v1416
        %1533 = vmatpush.msra.mxu0 %v1412
        %1534 = vmatpush.msra.mxu0 %v1408
        %1535 = vmatpush.msra.mxu0 %v1404
        %1536 = vmatpush.msra.mxu0 %v1400
        %1537 = vmatmul.f32.gmra.mxu0 %v1396
        %v1538 = vpop.f32.mrf.mxu0
        %v1539 = vadd.f32 0.0, %v1538
        %1540 = vdwg.mxu0
        %v1541 = vadd.f32 %v1392, %v1479
        %v1542 = vadd.f32 %v1393, %v1499
        %v1543 = vadd.f32 %v1394, %v1519
        %v1544 = vadd.f32 %v1395, %v1539
        %v1545 = vxor.u32 %v1541, 2147483648
        %v1546 = vmul.f32 %v1545, 1.442695
        %v1547 = vpow.pop %v1546
        %v1548 = vadd.f32 %v1547, 1.0
        %v1549 = vrcp.pop %v1548
        %v1550 = vmul.f32 %v1548, %v1549
        %v1551 = vsub.f32 1.0, %v1550
        %v1552 = vmul.f32 %v1549, %v1551
        %v1553 = vadd.f32 %v1549, %v1552
        %vm1554 = vweird.f32 %v1548
        %vm1555 = vweird.f32 %v1549
        %vm1556 = vmor %vm1554, %vm1555
        %v1557 = vsel %vm1556, %v1549, %v1553
        %v1558 = vand.u32 2147483647, %v1548
        %vm1559 = vcmp.eq.f32.partialorder %v1558, 8.507059e+37
        %v1560 = vand.u32 %v1548, 2147483648
        %v1561 = vor.u32 1.1754944e-38, %v1560
        %v1562 = vsel %vm1559, %v1561, %v1557
        %v1563 = vmul.f32 1.0, %v1562
        %v1564 = vxor.u32 %v1542, 2147483648
        %v1565 = vmul.f32 %v1564, 1.442695
        %v1566 = vpow.pop %v1565
        %v1567 = vadd.f32 %v1566, 1.0
        %v1568 = vrcp.pop %v1567
        %v1569 = vmul.f32 %v1567, %v1568
        %v1570 = vsub.f32 1.0, %v1569
        %v1571 = vmul.f32 %v1568, %v1570
        %v1572 = vadd.f32 %v1568, %v1571
        %vm1573 = vweird.f32 %v1567
        %vm1574 = vweird.f32 %v1568
        %vm1575 = vmor %vm1573, %vm1574
        %v1576 = vsel %vm1575, %v1568, %v1572
        %v1577 = vand.u32 2147483647, %v1567
        %vm1578 = vcmp.eq.f32.partialorder %v1577, 8.507059e+37
        %v1579 = vand.u32 %v1567, 2147483648
        %v1580 = vor.u32 1.1754944e-38, %v1579
        %v1581 = vsel %vm1578, %v1580, %v1576
        %v1582 = vmul.f32 1.0, %v1581
        %v1583 = vtanh.pop %v1543
        %v1584 = vxor.u32 %v1544, 2147483648
        %v1585 = vmul.f32 %v1584, 1.442695
        %v1586 = vpow.pop %v1585
        %v1587 = vadd.f32 %v1586, 1.0
        %v1588 = vrcp.pop %v1587
        %v1589 = vmul.f32 %v1587, %v1588
        %v1590 = vsub.f32 1.0, %v1589
        %v1591 = vmul.f32 %v1588, %v1590
        %v1592 = vadd.f32 %v1588, %v1591
        %vm1593 = vweird.f32 %v1587
        %vm1594 = vweird.f32 %v1588
        %vm1595 = vmor %vm1593, %vm1594
        %v1596 = vsel %vm1595, %v1588, %v1592
        %v1597 = vand.u32 2147483647, %v1587
        %vm1598 = vcmp.eq.f32.partialorder %v1597, 8.507059e+37
        %v1599 = vand.u32 %v1587, 2147483648
        %v1600 = vor.u32 1.1754944e-38, %v1599
        %v1601 = vsel %vm1598, %v1600, %v1596
        %v1602 = vmul.f32 1.0, %v1601
        %v1603 = vld [vmem:[#allocation3] sm:$0xff]
        %v1604 = vmul.f32 %v1582, %v1603
        %v1605 = vmul.f32 %v1563, %v1583
        %v1606 = vadd.f32 %v1604, %v1605
        %v1607 = vtanh.pop %v1606
        %v1608 = vmul.f32 %v1602, %v1607
        %1609 = vst [vmem:[#allocation2] sm:$0xff] %v1608
        %1610 = vst [vmem:[#allocation3] sm:$0xff] %v1606
        %s1611 = scalar_lea.vmem %s1, 192
        %v1612 = vld [vmem:[%s1611] sm:$0xff]
        %v1613 = vld [vmem:[%s1611 + $0x8] sm:$0xff]
        %v1614 = vld [vmem:[%s1611 + $0x10] sm:$0xff]
        %v1615 = vld [vmem:[%s1611 + $0x18] sm:$0xff]
        %v1616 = vld [vmem:[#allocation2] sm:$0xff]
        %v1617 = vld [vmem:[%s3] sm:$0xff]
        %v1618 = vld [vmem:[%s3 + $0x8] sm:$0xff]
        %v1619 = vld [vmem:[%s3 + $0x10] sm:$0xff]
        %v1620 = vld [vmem:[%s3 + $0x18] sm:$0xff]
        %v1621 = vld [vmem:[%s3 + $0x20] sm:$0xff]
        %v1622 = vld [vmem:[%s3 + $0x28] sm:$0xff]
        %v1623 = vld [vmem:[%s3 + $0x30] sm:$0xff]
        %v1624 = vld [vmem:[%s3 + $0x38] sm:$0xff]
        %v1625 = vld [vmem:[%s3 + $0x40] sm:$0xff]
        %v1626 = vld [vmem:[%s3 + $0x48] sm:$0xff]
        %v1627 = vld [vmem:[%s3 + $0x50] sm:$0xff]
        %v1628 = vld [vmem:[%s3 + $0x58] sm:$0xff]
        %v1629 = vld [vmem:[%s3 + $0x60] sm:$0xff]
        %v1630 = vld [vmem:[%s3 + $0x68] sm:$0xff]
        %v1631 = vld [vmem:[%s3 + $0x70] sm:$0xff]
        %v1632 = vld [vmem:[%s3 + $0x78] sm:$0xff]
        %v1633 = vld [vmem:[%s3 + $0x80] sm:$0xff]
        %v1634 = vld [vmem:[%s3 + $0x88] sm:$0xff]
        %v1635 = vld [vmem:[%s3 + $0x90] sm:$0xff]
        %v1636 = vld [vmem:[%s3 + $0x98] sm:$0xff]
        %v1637 = vld [vmem:[%s3 + $0xa0] sm:$0xff]
        %v1638 = vld [vmem:[%s3 + $0xa8] sm:$0xff]
        %v1639 = vld [vmem:[%s3 + $0xb0] sm:$0xff]
        %v1640 = vld [vmem:[%s3 + $0xb8] sm:$0xff]
        %v1641 = vld [vmem:[%s3 + $0xc0] sm:$0xff]
        %v1642 = vld [vmem:[%s3 + $0xc8] sm:$0xff]
        %v1643 = vld [vmem:[%s3 + $0xd0] sm:$0xff]
        %v1644 = vld [vmem:[%s3 + $0xd8] sm:$0xff]
        %v1645 = vld [vmem:[%s3 + $0xe0] sm:$0xff]
        %v1646 = vld [vmem:[%s3 + $0xe8] sm:$0xff]
        %v1647 = vld [vmem:[%s3 + $0xf0] sm:$0xff]
        %v1648 = vld [vmem:[%s3 + $0xf8] sm:$0xff]
        %v1649 = vld [vmem:[%s3 + $0x100] sm:$0xff]
        %v1650 = vld [vmem:[%s3 + $0x108] sm:$0xff]
        %v1651 = vld [vmem:[%s3 + $0x110] sm:$0xff]
        %v1652 = vld [vmem:[%s3 + $0x118] sm:$0xff]
        %v1653 = vld [vmem:[%s3 + $0x120] sm:$0xff]
        %v1654 = vld [vmem:[%s3 + $0x128] sm:$0xff]
        %v1655 = vld [vmem:[%s3 + $0x130] sm:$0xff]
        %v1656 = vld [vmem:[%s3 + $0x138] sm:$0xff]
        %v1657 = vld [vmem:[%s3 + $0x140] sm:$0xff]
        %v1658 = vld [vmem:[%s3 + $0x148] sm:$0xff]
        %v1659 = vld [vmem:[%s3 + $0x150] sm:$0xff]
        %v1660 = vld [vmem:[%s3 + $0x158] sm:$0xff]
        %v1661 = vld [vmem:[%s3 + $0x160] sm:$0xff]
        %v1662 = vld [vmem:[%s3 + $0x168] sm:$0xff]
        %v1663 = vld [vmem:[%s3 + $0x170] sm:$0xff]
        %v1664 = vld [vmem:[%s3 + $0x178] sm:$0xff]
        %v1665 = vld [vmem:[%s3 + $0x180] sm:$0xff]
        %v1666 = vld [vmem:[%s3 + $0x188] sm:$0xff]
        %v1667 = vld [vmem:[%s3 + $0x190] sm:$0xff]
        %v1668 = vld [vmem:[%s3 + $0x198] sm:$0xff]
        %v1669 = vld [vmem:[%s3 + $0x1a0] sm:$0xff]
        %v1670 = vld [vmem:[%s3 + $0x1a8] sm:$0xff]
        %v1671 = vld [vmem:[%s3 + $0x1b0] sm:$0xff]
        %v1672 = vld [vmem:[%s3 + $0x1b8] sm:$0xff]
        %v1673 = vld [vmem:[%s3 + $0x1c0] sm:$0xff]
        %v1674 = vld [vmem:[%s3 + $0x1c8] sm:$0xff]
        %v1675 = vld [vmem:[%s3 + $0x1d0] sm:$0xff]
        %v1676 = vld [vmem:[%s3 + $0x1d8] sm:$0xff]
        %v1677 = vld [vmem:[%s3 + $0x1e0] sm:$0xff]
        %v1678 = vld [vmem:[%s3 + $0x1e8] sm:$0xff]
        %v1679 = vld [vmem:[%s3 + $0x1f0] sm:$0xff]
        %v1680 = vld [vmem:[%s3 + $0x1f8] sm:$0xff]
        %1681 = vmatpush.msra.mxu0 %v1677
        %1682 = vmatpush.msra.mxu0 %v1673
        %1683 = vmatpush.msra.mxu0 %v1669
        %1684 = vmatpush.msra.mxu0 %v1665
        %1685 = vmatpush.msra.mxu0 %v1661
        %1686 = vmatpush.msra.mxu0 %v1657
        %1687 = vmatpush.msra.mxu0 %v1653
        %1688 = vmatpush.msra.mxu0 %v1649
        %1689 = vmatpush.msra.mxu0 %v1645
        %1690 = vmatpush.msra.mxu0 %v1641
        %1691 = vmatpush.msra.mxu0 %v1637
        %1692 = vmatpush.msra.mxu0 %v1633
        %1693 = vmatpush.msra.mxu0 %v1629
        %1694 = vmatpush.msra.mxu0 %v1625
        %1695 = vmatpush.msra.mxu0 %v1621
        %1696 = vmatpush.msra.mxu0 %v1617
        %1697 = vmatmul.f32.gmra.mxu0 %v1616
        %v1698 = vpop.f32.mrf.mxu0
        %v1699 = vadd.f32 0.0, %v1698
        %1700 = vdwg.mxu0
        %1701 = vmatpush.msra.mxu0 %v1678
        %1702 = vmatpush.msra.mxu0 %v1674
        %1703 = vmatpush.msra.mxu0 %v1670
        %1704 = vmatpush.msra.mxu0 %v1666
        %1705 = vmatpush.msra.mxu0 %v1662
        %1706 = vmatpush.msra.mxu0 %v1658
        %1707 = vmatpush.msra.mxu0 %v1654
        %1708 = vmatpush.msra.mxu0 %v1650
        %1709 = vmatpush.msra.mxu0 %v1646
        %1710 = vmatpush.msra.mxu0 %v1642
        %1711 = vmatpush.msra.mxu0 %v1638
        %1712 = vmatpush.msra.mxu0 %v1634
        %1713 = vmatpush.msra.mxu0 %v1630
        %1714 = vmatpush.msra.mxu0 %v1626
        %1715 = vmatpush.msra.mxu0 %v1622
        %1716 = vmatpush.msra.mxu0 %v1618
        %1717 = vmatmul.f32.gmra.mxu0 %v1616
        %v1718 = vpop.f32.mrf.mxu0
        %v1719 = vadd.f32 0.0, %v1718
        %1720 = vdwg.mxu0
        %1721 = vmatpush.msra.mxu0 %v1679
        %1722 = vmatpush.msra.mxu0 %v1675
        %1723 = vmatpush.msra.mxu0 %v1671
        %1724 = vmatpush.msra.mxu0 %v1667
        %1725 = vmatpush.msra.mxu0 %v1663
        %1726 = vmatpush.msra.mxu0 %v1659
        %1727 = vmatpush.msra.mxu0 %v1655
        %1728 = vmatpush.msra.mxu0 %v1651
        %1729 = vmatpush.msra.mxu0 %v1647
        %1730 = vmatpush.msra.mxu0 %v1643
        %1731 = vmatpush.msra.mxu0 %v1639
        %1732 = vmatpush.msra.mxu0 %v1635
        %1733 = vmatpush.msra.mxu0 %v1631
        %1734 = vmatpush.msra.mxu0 %v1627
        %1735 = vmatpush.msra.mxu0 %v1623
        %1736 = vmatpush.msra.mxu0 %v1619
        %1737 = vmatmul.f32.gmra.mxu0 %v1616
        %v1738 = vpop.f32.mrf.mxu0
        %v1739 = vadd.f32 0.0, %v1738
        %1740 = vdwg.mxu0
        %1741 = vmatpush.msra.mxu0 %v1680
        %1742 = vmatpush.msra.mxu0 %v1676
        %1743 = vmatpush.msra.mxu0 %v1672
        %1744 = vmatpush.msra.mxu0 %v1668
        %1745 = vmatpush.msra.mxu0 %v1664
        %1746 = vmatpush.msra.mxu0 %v1660
        %1747 = vmatpush.msra.mxu0 %v1656
        %1748 = vmatpush.msra.mxu0 %v1652
        %1749 = vmatpush.msra.mxu0 %v1648
        %1750 = vmatpush.msra.mxu0 %v1644
        %1751 = vmatpush.msra.mxu0 %v1640
        %1752 = vmatpush.msra.mxu0 %v1636
        %1753 = vmatpush.msra.mxu0 %v1632
        %1754 = vmatpush.msra.mxu0 %v1628
        %1755 = vmatpush.msra.mxu0 %v1624
        %1756 = vmatpush.msra.mxu0 %v1620
        %1757 = vmatmul.f32.gmra.mxu0 %v1616
        %v1758 = vpop.f32.mrf.mxu0
        %v1759 = vadd.f32 0.0, %v1758
        %1760 = vdwg.mxu0
        %v1761 = vadd.f32 %v1612, %v1699
        %v1762 = vadd.f32 %v1613, %v1719
        %v1763 = vadd.f32 %v1614, %v1739
        %v1764 = vadd.f32 %v1615, %v1759
        %v1765 = vxor.u32 %v1761, 2147483648
        %v1766 = vmul.f32 %v1765, 1.442695
        %v1767 = vpow.pop %v1766
        %v1768 = vadd.f32 %v1767, 1.0
        %v1769 = vrcp.pop %v1768
        %v1770 = vmul.f32 %v1768, %v1769
        %v1771 = vsub.f32 1.0, %v1770
        %v1772 = vmul.f32 %v1769, %v1771
        %v1773 = vadd.f32 %v1769, %v1772
        %vm1774 = vweird.f32 %v1768
        %vm1775 = vweird.f32 %v1769
        %vm1776 = vmor %vm1774, %vm1775
        %v1777 = vsel %vm1776, %v1769, %v1773
        %v1778 = vand.u32 2147483647, %v1768
        %vm1779 = vcmp.eq.f32.partialorder %v1778, 8.507059e+37
        %v1780 = vand.u32 %v1768, 2147483648
        %v1781 = vor.u32 1.1754944e-38, %v1780
        %v1782 = vsel %vm1779, %v1781, %v1777
        %v1783 = vmul.f32 1.0, %v1782
        %v1784 = vxor.u32 %v1762, 2147483648
        %v1785 = vmul.f32 %v1784, 1.442695
        %v1786 = vpow.pop %v1785
        %v1787 = vadd.f32 %v1786, 1.0
        %v1788 = vrcp.pop %v1787
        %v1789 = vmul.f32 %v1787, %v1788
        %v1790 = vsub.f32 1.0, %v1789
        %v1791 = vmul.f32 %v1788, %v1790
        %v1792 = vadd.f32 %v1788, %v1791
        %vm1793 = vweird.f32 %v1787
        %vm1794 = vweird.f32 %v1788
        %vm1795 = vmor %vm1793, %vm1794
        %v1796 = vsel %vm1795, %v1788, %v1792
        %v1797 = vand.u32 2147483647, %v1787
        %vm1798 = vcmp.eq.f32.partialorder %v1797, 8.507059e+37
        %v1799 = vand.u32 %v1787, 2147483648
        %v1800 = vor.u32 1.1754944e-38, %v1799
        %v1801 = vsel %vm1798, %v1800, %v1796
        %v1802 = vmul.f32 1.0, %v1801
        %v1803 = vtanh.pop %v1763
        %v1804 = vxor.u32 %v1764, 2147483648
        %v1805 = vmul.f32 %v1804, 1.442695
        %v1806 = vpow.pop %v1805
        %v1807 = vadd.f32 %v1806, 1.0
        %v1808 = vrcp.pop %v1807
        %v1809 = vmul.f32 %v1807, %v1808
        %v1810 = vsub.f32 1.0, %v1809
        %v1811 = vmul.f32 %v1808, %v1810
        %v1812 = vadd.f32 %v1808, %v1811
        %vm1813 = vweird.f32 %v1807
        %vm1814 = vweird.f32 %v1808
        %vm1815 = vmor %vm1813, %vm1814
        %v1816 = vsel %vm1815, %v1808, %v1812
        %v1817 = vand.u32 2147483647, %v1807
        %vm1818 = vcmp.eq.f32.partialorder %v1817, 8.507059e+37
        %v1819 = vand.u32 %v1807, 2147483648
        %v1820 = vor.u32 1.1754944e-38, %v1819
        %v1821 = vsel %vm1818, %v1820, %v1816
        %v1822 = vmul.f32 1.0, %v1821
        %v1823 = vld [vmem:[#allocation3] sm:$0xff]
        %v1824 = vmul.f32 %v1802, %v1823
        %v1825 = vmul.f32 %v1783, %v1803
        %v1826 = vadd.f32 %v1824, %v1825
        %v1827 = vtanh.pop %v1826
        %v1828 = vmul.f32 %v1822, %v1827
        %1829 = vst [vmem:[#allocation2] sm:$0xff] %v1828
        %1830 = vst [vmem:[#allocation3] sm:$0xff] %v1826
        %s1831 = scalar_lea.vmem %s1, 224
        %v1832 = vld [vmem:[%s1831] sm:$0xff]
        %v1833 = vld [vmem:[%s1831 + $0x8] sm:$0xff]
        %v1834 = vld [vmem:[%s1831 + $0x10] sm:$0xff]
        %v1835 = vld [vmem:[%s1831 + $0x18] sm:$0xff]
        %v1836 = vld [vmem:[#allocation2] sm:$0xff]
        %v1837 = vld [vmem:[%s3] sm:$0xff]
        %v1838 = vld [vmem:[%s3 + $0x8] sm:$0xff]
        %v1839 = vld [vmem:[%s3 + $0x10] sm:$0xff]
        %v1840 = vld [vmem:[%s3 + $0x18] sm:$0xff]
        %v1841 = vld [vmem:[%s3 + $0x20] sm:$0xff]
        %v1842 = vld [vmem:[%s3 + $0x28] sm:$0xff]
        %v1843 = vld [vmem:[%s3 + $0x30] sm:$0xff]
        %v1844 = vld [vmem:[%s3 + $0x38] sm:$0xff]
        %v1845 = vld [vmem:[%s3 + $0x40] sm:$0xff]
        %v1846 = vld [vmem:[%s3 + $0x48] sm:$0xff]
        %v1847 = vld [vmem:[%s3 + $0x50] sm:$0xff]
        %v1848 = vld [vmem:[%s3 + $0x58] sm:$0xff]
        %v1849 = vld [vmem:[%s3 + $0x60] sm:$0xff]
        %v1850 = vld [vmem:[%s3 + $0x68] sm:$0xff]
        %v1851 = vld [vmem:[%s3 + $0x70] sm:$0xff]
        %v1852 = vld [vmem:[%s3 + $0x78] sm:$0xff]
        %v1853 = vld [vmem:[%s3 + $0x80] sm:$0xff]
        %v1854 = vld [vmem:[%s3 + $0x88] sm:$0xff]
        %v1855 = vld [vmem:[%s3 + $0x90] sm:$0xff]
        %v1856 = vld [vmem:[%s3 + $0x98] sm:$0xff]
        %v1857 = vld [vmem:[%s3 + $0xa0] sm:$0xff]
        %v1858 = vld [vmem:[%s3 + $0xa8] sm:$0xff]
        %v1859 = vld [vmem:[%s3 + $0xb0] sm:$0xff]
        %v1860 = vld [vmem:[%s3 + $0xb8] sm:$0xff]
        %v1861 = vld [vmem:[%s3 + $0xc0] sm:$0xff]
        %v1862 = vld [vmem:[%s3 + $0xc8] sm:$0xff]
        %v1863 = vld [vmem:[%s3 + $0xd0] sm:$0xff]
        %v1864 = vld [vmem:[%s3 + $0xd8] sm:$0xff]
        %v1865 = vld [vmem:[%s3 + $0xe0] sm:$0xff]
        %v1866 = vld [vmem:[%s3 + $0xe8] sm:$0xff]
        %v1867 = vld [vmem:[%s3 + $0xf0] sm:$0xff]
        %v1868 = vld [vmem:[%s3 + $0xf8] sm:$0xff]
        %v1869 = vld [vmem:[%s3 + $0x100] sm:$0xff]
        %v1870 = vld [vmem:[%s3 + $0x108] sm:$0xff]
        %v1871 = vld [vmem:[%s3 + $0x110] sm:$0xff]
        %v1872 = vld [vmem:[%s3 + $0x118] sm:$0xff]
        %v1873 = vld [vmem:[%s3 + $0x120] sm:$0xff]
        %v1874 = vld [vmem:[%s3 + $0x128] sm:$0xff]
        %v1875 = vld [vmem:[%s3 + $0x130] sm:$0xff]
        %v1876 = vld [vmem:[%s3 + $0x138] sm:$0xff]
        %v1877 = vld [vmem:[%s3 + $0x140] sm:$0xff]
        %v1878 = vld [vmem:[%s3 + $0x148] sm:$0xff]
        %v1879 = vld [vmem:[%s3 + $0x150] sm:$0xff]
        %v1880 = vld [vmem:[%s3 + $0x158] sm:$0xff]
        %v1881 = vld [vmem:[%s3 + $0x160] sm:$0xff]
        %v1882 = vld [vmem:[%s3 + $0x168] sm:$0xff]
        %v1883 = vld [vmem:[%s3 + $0x170] sm:$0xff]
        %v1884 = vld [vmem:[%s3 + $0x178] sm:$0xff]
        %v1885 = vld [vmem:[%s3 + $0x180] sm:$0xff]
        %v1886 = vld [vmem:[%s3 + $0x188] sm:$0xff]
        %v1887 = vld [vmem:[%s3 + $0x190] sm:$0xff]
        %v1888 = vld [vmem:[%s3 + $0x198] sm:$0xff]
        %v1889 = vld [vmem:[%s3 + $0x1a0] sm:$0xff]
        %v1890 = vld [vmem:[%s3 + $0x1a8] sm:$0xff]
        %v1891 = vld [vmem:[%s3 + $0x1b0] sm:$0xff]
        %v1892 = vld [vmem:[%s3 + $0x1b8] sm:$0xff]
        %v1893 = vld [vmem:[%s3 + $0x1c0] sm:$0xff]
        %v1894 = vld [vmem:[%s3 + $0x1c8] sm:$0xff]
        %v1895 = vld [vmem:[%s3 + $0x1d0] sm:$0xff]
        %v1896 = vld [vmem:[%s3 + $0x1d8] sm:$0xff]
        %v1897 = vld [vmem:[%s3 + $0x1e0] sm:$0xff]
        %v1898 = vld [vmem:[%s3 + $0x1e8] sm:$0xff]
        %v1899 = vld [vmem:[%s3 + $0x1f0] sm:$0xff]
        %v1900 = vld [vmem:[%s3 + $0x1f8] sm:$0xff]
        %1901 = vmatpush.msra.mxu0 %v1897
        %1902 = vmatpush.msra.mxu0 %v1893
        %1903 = vmatpush.msra.mxu0 %v1889
        %1904 = vmatpush.msra.mxu0 %v1885
        %1905 = vmatpush.msra.mxu0 %v1881
        %1906 = vmatpush.msra.mxu0 %v1877
        %1907 = vmatpush.msra.mxu0 %v1873
        %1908 = vmatpush.msra.mxu0 %v1869
        %1909 = vmatpush.msra.mxu0 %v1865
        %1910 = vmatpush.msra.mxu0 %v1861
        %1911 = vmatpush.msra.mxu0 %v1857
        %1912 = vmatpush.msra.mxu0 %v1853
        %1913 = vmatpush.msra.mxu0 %v1849
        %1914 = vmatpush.msra.mxu0 %v1845
        %1915 = vmatpush.msra.mxu0 %v1841
        %1916 = vmatpush.msra.mxu0 %v1837
        %1917 = vmatmul.f32.gmra.mxu0 %v1836
        %v1918 = vpop.f32.mrf.mxu0
        %v1919 = vadd.f32 0.0, %v1918
        %1920 = vdwg.mxu0
        %1921 = vmatpush.msra.mxu0 %v1898
        %1922 = vmatpush.msra.mxu0 %v1894
        %1923 = vmatpush.msra.mxu0 %v1890
        %1924 = vmatpush.msra.mxu0 %v1886
        %1925 = vmatpush.msra.mxu0 %v1882
        %1926 = vmatpush.msra.mxu0 %v1878
        %1927 = vmatpush.msra.mxu0 %v1874
        %1928 = vmatpush.msra.mxu0 %v1870
        %1929 = vmatpush.msra.mxu0 %v1866
        %1930 = vmatpush.msra.mxu0 %v1862
        %1931 = vmatpush.msra.mxu0 %v1858
        %1932 = vmatpush.msra.mxu0 %v1854
        %1933 = vmatpush.msra.mxu0 %v1850
        %1934 = vmatpush.msra.mxu0 %v1846
        %1935 = vmatpush.msra.mxu0 %v1842
        %1936 = vmatpush.msra.mxu0 %v1838
        %1937 = vmatmul.f32.gmra.mxu0 %v1836
        %v1938 = vpop.f32.mrf.mxu0
        %v1939 = vadd.f32 0.0, %v1938
        %1940 = vdwg.mxu0
        %1941 = vmatpush.msra.mxu0 %v1899
        %1942 = vmatpush.msra.mxu0 %v1895
        %1943 = vmatpush.msra.mxu0 %v1891
        %1944 = vmatpush.msra.mxu0 %v1887
        %1945 = vmatpush.msra.mxu0 %v1883
        %1946 = vmatpush.msra.mxu0 %v1879
        %1947 = vmatpush.msra.mxu0 %v1875
        %1948 = vmatpush.msra.mxu0 %v1871
        %1949 = vmatpush.msra.mxu0 %v1867
        %1950 = vmatpush.msra.mxu0 %v1863
        %1951 = vmatpush.msra.mxu0 %v1859
        %1952 = vmatpush.msra.mxu0 %v1855
        %1953 = vmatpush.msra.mxu0 %v1851
        %1954 = vmatpush.msra.mxu0 %v1847
        %1955 = vmatpush.msra.mxu0 %v1843
        %1956 = vmatpush.msra.mxu0 %v1839
        %1957 = vmatmul.f32.gmra.mxu0 %v1836
        %v1958 = vpop.f32.mrf.mxu0
        %v1959 = vadd.f32 0.0, %v1958
        %1960 = vdwg.mxu0
        %1961 = vmatpush.msra.mxu0 %v1900
        %1962 = vmatpush.msra.mxu0 %v1896
        %1963 = vmatpush.msra.mxu0 %v1892
        %1964 = vmatpush.msra.mxu0 %v1888
        %1965 = vmatpush.msra.mxu0 %v1884
        %1966 = vmatpush.msra.mxu0 %v1880
        %1967 = vmatpush.msra.mxu0 %v1876
        %1968 = vmatpush.msra.mxu0 %v1872
        %1969 = vmatpush.msra.mxu0 %v1868
        %1970 = vmatpush.msra.mxu0 %v1864
        %1971 = vmatpush.msra.mxu0 %v1860
        %1972 = vmatpush.msra.mxu0 %v1856
        %1973 = vmatpush.msra.mxu0 %v1852
        %1974 = vmatpush.msra.mxu0 %v1848
        %1975 = vmatpush.msra.mxu0 %v1844
        %1976 = vmatpush.msra.mxu0 %v1840
        %1977 = vmatmul.f32.gmra.mxu0 %v1836
        %v1978 = vpop.f32.mrf.mxu0
        %v1979 = vadd.f32 0.0, %v1978
        %1980 = vdwg.mxu0
        %v1981 = vadd.f32 %v1832, %v1919
        %v1982 = vadd.f32 %v1833, %v1939
        %v1983 = vadd.f32 %v1834, %v1959
        %v1984 = vadd.f32 %v1835, %v1979
        %v1985 = vxor.u32 %v1981, 2147483648
        %v1986 = vmul.f32 %v1985, 1.442695
        %v1987 = vpow.pop %v1986
        %v1988 = vadd.f32 %v1987, 1.0
        %v1989 = vrcp.pop %v1988
        %v1990 = vmul.f32 %v1988, %v1989
        %v1991 = vsub.f32 1.0, %v1990
        %v1992 = vmul.f32 %v1989, %v1991
        %v1993 = vadd.f32 %v1989, %v1992
        %vm1994 = vweird.f32 %v1988
        %vm1995 = vweird.f32 %v1989
        %vm1996 = vmor %vm1994, %vm1995
        %v1997 = vsel %vm1996, %v1989, %v1993
        %v1998 = vand.u32 2147483647, %v1988
        %vm1999 = vcmp.eq.f32.partialorder %v1998, 8.507059e+37
        %v2000 = vand.u32 %v1988, 2147483648
        %v2001 = vor.u32 1.1754944e-38, %v2000
        %v2002 = vsel %vm1999, %v2001, %v1997
        %v2003 = vmul.f32 1.0, %v2002
        %v2004 = vxor.u32 %v1982, 2147483648
        %v2005 = vmul.f32 %v2004, 1.442695
        %v2006 = vpow.pop %v2005
        %v2007 = vadd.f32 %v2006, 1.0
        %v2008 = vrcp.pop %v2007
        %v2009 = vmul.f32 %v2007, %v2008
        %v2010 = vsub.f32 1.0, %v2009
        %v2011 = vmul.f32 %v2008, %v2010
        %v2012 = vadd.f32 %v2008, %v2011
        %vm2013 = vweird.f32 %v2007
        %vm2014 = vweird.f32 %v2008
        %vm2015 = vmor %vm2013, %vm2014
        %v2016 = vsel %vm2015, %v2008, %v2012
        %v2017 = vand.u32 2147483647, %v2007
        %vm2018 = vcmp.eq.f32.partialorder %v2017, 8.507059e+37
        %v2019 = vand.u32 %v2007, 2147483648
        %v2020 = vor.u32 1.1754944e-38, %v2019
        %v2021 = vsel %vm2018, %v2020, %v2016
        %v2022 = vmul.f32 1.0, %v2021
        %v2023 = vtanh.pop %v1983
        %v2024 = vxor.u32 %v1984, 2147483648
        %v2025 = vmul.f32 %v2024, 1.442695
        %v2026 = vpow.pop %v2025
        %v2027 = vadd.f32 %v2026, 1.0
        %v2028 = vrcp.pop %v2027
        %v2029 = vmul.f32 %v2027, %v2028
        %v2030 = vsub.f32 1.0, %v2029
        %v2031 = vmul.f32 %v2028, %v2030
        %v2032 = vadd.f32 %v2028, %v2031
        %vm2033 = vweird.f32 %v2027
        %vm2034 = vweird.f32 %v2028
        %vm2035 = vmor %vm2033, %vm2034
        %v2036 = vsel %vm2035, %v2028, %v2032
        %v2037 = vand.u32 2147483647, %v2027
        %vm2038 = vcmp.eq.f32.partialorder %v2037, 8.507059e+37
        %v2039 = vand.u32 %v2027, 2147483648
        %v2040 = vor.u32 1.1754944e-38, %v2039
        %v2041 = vsel %vm2038, %v2040, %v2036
        %v2042 = vmul.f32 1.0, %v2041
        %v2043 = vld [vmem:[#allocation3] sm:$0xff]
        %v2044 = vmul.f32 %v2022, %v2043
        %v2045 = vmul.f32 %v2003, %v2023
        %v2046 = vadd.f32 %v2044, %v2045
        %v2047 = vtanh.pop %v2046
        %v2048 = vmul.f32 %v2042, %v2047
        %2049 = vst [vmem:[#allocation2] sm:$0xff] %v2048
        %2050 = vst [vmem:[#allocation3] sm:$0xff] %v2046
        %v2051 = vld [vmem:[%s281] sm:$0xff]
        %v2052 = vld [vmem:[%s281 + $0x8] sm:$0xff]
        %v2053 = vld [vmem:[%s281 + $0x10] sm:$0xff]
        %v2054 = vld [vmem:[%s281 + $0x18] sm:$0xff]
        %2055 = vst [vmem:[#allocation4] sm:$0xff] %v2051
        %2056 = vst [vmem:[#allocation4 + $0x8] sm:$0xff] %v2052
        %2057 = vst [vmem:[#allocation4 + $0x10] sm:$0xff] %v2053
        %2058 = vst [vmem:[#allocation4 + $0x18] sm:$0xff] %v2054
      $region52: #{seq2seq_forward.1} parent=47 // pred_fallthru
        _
      %v2059 = vld [vmem:[#allocation4] sm:$0xff]
      %v2060 = vld [vmem:[#allocation4 + $0x8] sm:$0xff]
      %v2061 = vld [vmem:[#allocation4 + $0x10] sm:$0xff]
      %v2062 = vld [vmem:[#allocation4 + $0x18] sm:$0xff]
      %v2063 = vld [vmem:[#allocation2] sm:$0xff]
      %v2064 = vld [vmem:[%s4] sm:$0xff]
      %v2065 = vld [vmem:[%s4 + $0x8] sm:$0xff]
      %v2066 = vld [vmem:[%s4 + $0x10] sm:$0xff]
      %v2067 = vld [vmem:[%s4 + $0x18] sm:$0xff]
      %v2068 = vld [vmem:[%s4 + $0x20] sm:$0xff]
      %v2069 = vld [vmem:[%s4 + $0x28] sm:$0xff]
      %v2070 = vld [vmem:[%s4 + $0x30] sm:$0xff]
      %v2071 = vld [vmem:[%s4 + $0x38] sm:$0xff]
      %v2072 = vld [vmem:[%s4 + $0x40] sm:$0xff]
      %v2073 = vld [vmem:[%s4 + $0x48] sm:$0xff]
      %v2074 = vld [vmem:[%s4 + $0x50] sm:$0xff]
      %v2075 = vld [vmem:[%s4 + $0x58] sm:$0xff]
      %v2076 = vld [vmem:[%s4 + $0x60] sm:$0xff]
      %v2077 = vld [vmem:[%s4 + $0x68] sm:$0xff]
      %v2078 = vld [vmem:[%s4 + $0x70] sm:$0xff]
      %v2079 = vld [vmem:[%s4 + $0x78] sm:$0xff]
      %v2080 = vld [vmem:[%s4 + $0x80] sm:$0xff]
      %v2081 = vld [vmem:[%s4 + $0x88] sm:$0xff]
      %v2082 = vld [vmem:[%s4 + $0x90] sm:$0xff]
      %v2083 = vld [vmem:[%s4 + $0x98] sm:$0xff]
      %v2084 = vld [vmem:[%s4 + $0xa0] sm:$0xff]
      %v2085 = vld [vmem:[%s4 + $0xa8] sm:$0xff]
      %v2086 = vld [vmem:[%s4 + $0xb0] sm:$0xff]
      %v2087 = vld [vmem:[%s4 + $0xb8] sm:$0xff]
      %v2088 = vld [vmem:[%s4 + $0xc0] sm:$0xff]
      %v2089 = vld [vmem:[%s4 + $0xc8] sm:$0xff]
      %v2090 = vld [vmem:[%s4 + $0xd0] sm:$0xff]
      %v2091 = vld [vmem:[%s4 + $0xd8] sm:$0xff]
      %v2092 = vld [vmem:[%s4 + $0xe0] sm:$0xff]
      %v2093 = vld [vmem:[%s4 + $0xe8] sm:$0xff]
      %v2094 = vld [vmem:[%s4 + $0xf0] sm:$0xff]
      %v2095 = vld [vmem:[%s4 + $0xf8] sm:$0xff]
      %v2096 = vld [vmem:[%s4 + $0x100] sm:$0xff]
      %v2097 = vld [vmem:[%s4 + $0x108] sm:$0xff]
      %v2098 = vld [vmem:[%s4 + $0x110] sm:$0xff]
      %v2099 = vld [vmem:[%s4 + $0x118] sm:$0xff]
      %v2100 = vld [vmem:[%s4 + $0x120] sm:$0xff]
      %v2101 = vld [vmem:[%s4 + $0x128] sm:$0xff]
      %v2102 = vld [vmem:[%s4 + $0x130] sm:$0xff]
      %v2103 = vld [vmem:[%s4 + $0x138] sm:$0xff]
      %v2104 = vld [vmem:[%s4 + $0x140] sm:$0xff]
      %v2105 = vld [vmem:[%s4 + $0x148] sm:$0xff]
      %v2106 = vld [vmem:[%s4 + $0x150] sm:$0xff]
      %v2107 = vld [vmem:[%s4 + $0x158] sm:$0xff]
      %v2108 = vld [vmem:[%s4 + $0x160] sm:$0xff]
      %v2109 = vld [vmem:[%s4 + $0x168] sm:$0xff]
      %v2110 = vld [vmem:[%s4 + $0x170] sm:$0xff]
      %v2111 = vld [vmem:[%s4 + $0x178] sm:$0xff]
      %v2112 = vld [vmem:[%s4 + $0x180] sm:$0xff]
      %v2113 = vld [vmem:[%s4 + $0x188] sm:$0xff]
      %v2114 = vld [vmem:[%s4 + $0x190] sm:$0xff]
      %v2115 = vld [vmem:[%s4 + $0x198] sm:$0xff]
      %v2116 = vld [vmem:[%s4 + $0x1a0] sm:$0xff]
      %v2117 = vld [vmem:[%s4 + $0x1a8] sm:$0xff]
      %v2118 = vld [vmem:[%s4 + $0x1b0] sm:$0xff]
      %v2119 = vld [vmem:[%s4 + $0x1b8] sm:$0xff]
      %v2120 = vld [vmem:[%s4 + $0x1c0] sm:$0xff]
      %v2121 = vld [vmem:[%s4 + $0x1c8] sm:$0xff]
      %v2122 = vld [vmem:[%s4 + $0x1d0] sm:$0xff]
      %v2123 = vld [vmem:[%s4 + $0x1d8] sm:$0xff]
      %v2124 = vld [vmem:[%s4 + $0x1e0] sm:$0xff]
      %v2125 = vld [vmem:[%s4 + $0x1e8] sm:$0xff]
      %v2126 = vld [vmem:[%s4 + $0x1f0] sm:$0xff]
      %v2127 = vld [vmem:[%s4 + $0x1f8] sm:$0xff]
      %2128 = vmatpush.msra.mxu0 %v2124
      %2129 = vmatpush.msra.mxu0 %v2120
      %2130 = vmatpush.msra.mxu0 %v2116
      %2131 = vmatpush.msra.mxu0 %v2112
      %2132 = vmatpush.msra.mxu0 %v2108
      %2133 = vmatpush.msra.mxu0 %v2104
      %2134 = vmatpush.msra.mxu0 %v2100
      %2135 = vmatpush.msra.mxu0 %v2096
      %2136 = vmatpush.msra.mxu0 %v2092
      %2137 = vmatpush.msra.mxu0 %v2088
      %2138 = vmatpush.msra.mxu0 %v2084
      %2139 = vmatpush.msra.mxu0 %v2080
      %2140 = vmatpush.msra.mxu0 %v2076
      %2141 = vmatpush.msra.mxu0 %v2072
      %2142 = vmatpush.msra.mxu0 %v2068
      %2143 = vmatpush.msra.mxu0 %v2064
      %2144 = vmatmul.f32.gmra.mxu0 %v2063
      %v2145 = vpop.f32.mrf.mxu0
      %v2146 = vadd.f32 0.0, %v2145
      %2147 = vdwg.mxu0
      %2148 = vmatpush.msra.mxu0 %v2125
      %2149 = vmatpush.msra.mxu0 %v2121
      %2150 = vmatpush.msra.mxu0 %v2117
      %2151 = vmatpush.msra.mxu0 %v2113
      %2152 = vmatpush.msra.mxu0 %v2109
      %2153 = vmatpush.msra.mxu0 %v2105
      %2154 = vmatpush.msra.mxu0 %v2101
      %2155 = vmatpush.msra.mxu0 %v2097
      %2156 = vmatpush.msra.mxu0 %v2093
      %2157 = vmatpush.msra.mxu0 %v2089
      %2158 = vmatpush.msra.mxu0 %v2085
      %2159 = vmatpush.msra.mxu0 %v2081
      %2160 = vmatpush.msra.mxu0 %v2077
      %2161 = vmatpush.msra.mxu0 %v2073
      %2162 = vmatpush.msra.mxu0 %v2069
      %2163 = vmatpush.msra.mxu0 %v2065
      %2164 = vmatmul.f32.gmra.mxu0 %v2063
      %v2165 = vpop.f32.mrf.mxu0
      %v2166 = vadd.f32 0.0, %v2165
      %2167 = vdwg.mxu0
      %2168 = vmatpush.msra.mxu0 %v2126
      %2169 = vmatpush.msra.mxu0 %v2122
      %2170 = vmatpush.msra.mxu0 %v2118
      %2171 = vmatpush.msra.mxu0 %v2114
      %2172 = vmatpush.msra.mxu0 %v2110
      %2173 = vmatpush.msra.mxu0 %v2106
      %2174 = vmatpush.msra.mxu0 %v2102
      %2175 = vmatpush.msra.mxu0 %v2098
      %2176 = vmatpush.msra.mxu0 %v2094
      %2177 = vmatpush.msra.mxu0 %v2090
      %2178 = vmatpush.msra.mxu0 %v2086
      %2179 = vmatpush.msra.mxu0 %v2082
      %2180 = vmatpush.msra.mxu0 %v2078
      %2181 = vmatpush.msra.mxu0 %v2074
      %2182 = vmatpush.msra.mxu0 %v2070
      %2183 = vmatpush.msra.mxu0 %v2066
      %2184 = vmatmul.f32.gmra.mxu0 %v2063
      %v2185 = vpop.f32.mrf.mxu0
      %v2186 = vadd.f32 0.0, %v2185
      %2187 = vdwg.mxu0
      %2188 = vmatpush.msra.mxu0 %v2127
      %2189 = vmatpush.msra.mxu0 %v2123
      %2190 = vmatpush.msra.mxu0 %v2119
      %2191 = vmatpush.msra.mxu0 %v2115
      %2192 = vmatpush.msra.mxu0 %v2111
      %2193 = vmatpush.msra.mxu0 %v2107
      %2194 = vmatpush.msra.mxu0 %v2103
      %2195 = vmatpush.msra.mxu0 %v2099
      %2196 = vmatpush.msra.mxu0 %v2095
      %2197 = vmatpush.msra.mxu0 %v2091
      %2198 = vmatpush.msra.mxu0 %v2087
      %2199 = vmatpush.msra.mxu0 %v2083
      %2200 = vmatpush.msra.mxu0 %v2079
      %2201 = vmatpush.msra.mxu0 %v2075
      %2202 = vmatpush.msra.mxu0 %v2071
      %2203 = vmatpush.msra.mxu0 %v2067
      %2204 = vmatmul.f32.gmra.mxu0 %v2063
      %v2205 = vpop.f32.mrf.mxu0
      %v2206 = vadd.f32 0.0, %v2205
      %2207 = vdwg.mxu0
      %v2208 = vadd.f32 %v2059, %v2146
      %v2209 = vadd.f32 %v2060, %v2166
      %v2210 = vadd.f32 %v2061, %v2186
      %v2211 = vadd.f32 %v2062, %v2206
      %v2212 = vxor.u32 %v2208, 2147483648
      %v2213 = vmul.f32 %v2212, 1.442695
      %v2214 = vpow.pop %v2213
      %v2215 = vadd.f32 %v2214, 1.0
      %v2216 = vrcp.pop %v2215
      %v2217 = vmul.f32 %v2215, %v2216
      %v2218 = vsub.f32 1.0, %v2217
      %v2219 = vmul.f32 %v2216, %v2218
      %v2220 = vadd.f32 %v2216, %v2219
      %vm2221 = vweird.f32 %v2215
      %vm2222 = vweird.f32 %v2216
      %vm2223 = vmor %vm2221, %vm2222
      %v2224 = vsel %vm2223, %v2216, %v2220
      %v2225 = vand.u32 2147483647, %v2215
      %vm2226 = vcmp.eq.f32.partialorder %v2225, 8.507059e+37
      %v2227 = vand.u32 %v2215, 2147483648
      %v2228 = vor.u32 1.1754944e-38, %v2227
      %v2229 = vsel %vm2226, %v2228, %v2224
      %v2230 = vmul.f32 1.0, %v2229
      %v2231 = vxor.u32 %v2209, 2147483648
      %v2232 = vmul.f32 %v2231, 1.442695
      %v2233 = vpow.pop %v2232
      %v2234 = vadd.f32 %v2233, 1.0
      %v2235 = vrcp.pop %v2234
      %v2236 = vmul.f32 %v2234, %v2235
      %v2237 = vsub.f32 1.0, %v2236
      %v2238 = vmul.f32 %v2235, %v2237
      %v2239 = vadd.f32 %v2235, %v2238
      %vm2240 = vweird.f32 %v2234
      %vm2241 = vweird.f32 %v2235
      %vm2242 = vmor %vm2240, %vm2241
      %v2243 = vsel %vm2242, %v2235, %v2239
      %v2244 = vand.u32 2147483647, %v2234
      %vm2245 = vcmp.eq.f32.partialorder %v2244, 8.507059e+37
      %v2246 = vand.u32 %v2234, 2147483648
      %v2247 = vor.u32 1.1754944e-38, %v2246
      %v2248 = vsel %vm2245, %v2247, %v2243
      %v2249 = vmul.f32 1.0, %v2248
      %v2250 = vtanh.pop %v2210
      %v2251 = vxor.u32 %v2211, 2147483648
      %v2252 = vmul.f32 %v2251, 1.442695
      %v2253 = vpow.pop %v2252
      %v2254 = vadd.f32 %v2253, 1.0
      %v2255 = vrcp.pop %v2254
      %v2256 = vmul.f32 %v2254, %v2255
      %v2257 = vsub.f32 1.0, %v2256
      %v2258 = vmul.f32 %v2255, %v2257
      %v2259 = vadd.f32 %v2255, %v2258
      %vm2260 = vweird.f32 %v2254
      %vm2261 = vweird.f32 %v2255
      %vm2262 = vmor %vm2260, %vm2261
      %v2263 = vsel %vm2262, %v2255, %v2259
      %v2264 = vand.u32 2147483647, %v2254
      %vm2265 = vcmp.eq.f32.partialorder %v2264, 8.507059e+37
      %v2266 = vand.u32 %v2254, 2147483648
      %v2267 = vor.u32 1.1754944e-38, %v2266
      %v2268 = vsel %vm2265, %v2267, %v2263
      %v2269 = vmul.f32 1.0, %v2268
      %v2270 = vld [vmem:[#allocation3] sm:$0xff]
      %v2271 = vmul.f32 %v2249, %v2270
      %v2272 = vmul.f32 %v2230, %v2250
      %v2273 = vadd.f32 %v2271, %v2272
      %v2274 = vtanh.pop %v2273
      %v2275 = vmul.f32 %v2269, %v2274
      %2276 = vst [vmem:[#allocation2] sm:$0xff] %v2275
      %2277 = vst [vmem:[#allocation3] sm:$0xff] %v2273
      %v2278 = vld [vmem:[%s6] sm:$0xff]
      %v2279 = vld [vmem:[%s6 + $0x8] sm:$0xff]
      %v2280 = vld [vmem:[%s6 + $0x10] sm:$0xff]
      %v2281 = vld [vmem:[%s6 + $0x18] sm:$0xff]
      %v2282 = vld [vmem:[%s6 + $0x20] sm:$0xff]
      %v2283 = vld [vmem:[%s6 + $0x28] sm:$0xff]
      %v2284 = vld [vmem:[%s6 + $0x30] sm:$0xff]
      %v2285 = vld [vmem:[%s6 + $0x38] sm:$0xff]
      %v2286 = vld [vmem:[%s6 + $0x40] sm:$0xff]
      %v2287 = vld [vmem:[%s6 + $0x48] sm:$0xff]
      %v2288 = vld [vmem:[%s6 + $0x50] sm:$0xff]
      %v2289 = vld [vmem:[%s6 + $0x58] sm:$0xff]
      %v2290 = vld [vmem:[%s6 + $0x60] sm:$0xff]
      %v2291 = vld [vmem:[%s6 + $0x68] sm:$0xff]
      %v2292 = vld [vmem:[%s6 + $0x70] sm:$0xff]
      %v2293 = vld [vmem:[%s6 + $0x78] sm:$0xff]
      %v2294 = vld [vmem:[%s7] sm:$0x1]
      %v2296 = vperm.slane %v2294, 0
      %2298 = vmatpush.msra.mxu0 %v2293
      %2299 = vmatpush.msra.mxu0 %v2292
      %2300 = vmatpush.msra.mxu0 %v2291
      %2301 = vmatpush.msra.mxu0 %v2290
      %2302 = vmatpush.msra.mxu0 %v2289
      %2303 = vmatpush.msra.mxu0 %v2288
      %2304 = vmatpush.msra.mxu0 %v2287
      %2305 = vmatpush.msra.mxu0 %v2286
      %2306 = vmatpush.msra.mxu0 %v2285
      %2307 = vmatpush.msra.mxu0 %v2284
      %2308 = vmatpush.msra.mxu0 %v2283
      %2309 = vmatpush.msra.mxu0 %v2282
      %2310 = vmatpush.msra.mxu0 %v2281
      %2311 = vmatpush.msra.mxu0 %v2280
      %2312 = vmatpush.msra.mxu0 %v2279
      %2313 = vmatpush.msra.mxu0 %v2278
      %2314 = vmatmul.f32.gmra.mxu0 %v2275
      %v2315 = vpop.f32.mrf.mxu0
      %v2316 = vadd.f32 %v2296, %v2315
      %2317 = vdwg.mxu0
      %2318 = vst [vmem:[%s285] sm:$0xff] %v2316
      %s2319 = sld [smem:[#allocation6 + %s27]]
      %s2320 = sadd.s32 %s27, 1
      %p2321 = scmp.lt.s32.totalorder %s2320, 8
      %p2322 = scmp.ne.s32.totalorder %s2319, 0
      %p2323 = pnand %p2321, %p2322
      %p2324 = pneg %p2323
      // Predicated region
      $region53: #{seq2seq_forward.1} parent=47 // pred_check
        _
      $region54: #{seq2seq_forward.1} parent=47 // pred_check_branch
        %2326 = sbr.rel (%p2323) target = $region56
      $region55: #{seq2seq_forward.1} parent=47 // pred_region
        %v2327 = vld [vmem:[%s281] sm:$0xff]
        %v2328 = vld [vmem:[%s281 + $0x8] sm:$0xff]
        %v2329 = vld [vmem:[%s281 + $0x10] sm:$0xff]
        %v2330 = vld [vmem:[%s281 + $0x18] sm:$0xff]
        %2331 = vst [vmem:[#allocation4] sm:$0xff] %v2327
        %2332 = vst [vmem:[#allocation4 + $0x8] sm:$0xff] %v2328
        %2333 = vst [vmem:[#allocation4 + $0x10] sm:$0xff] %v2329
        %2334 = vst [vmem:[#allocation4 + $0x18] sm:$0xff] %v2330
      $region56: #{seq2seq_forward.1} parent=47 // pred_fallthru
        _
      %p2335 = scmp.eq.s32.totalorder %s2319, 0
      %p2336 = pnand %p2321, %p2335
      %p2337 = pneg %p2336
      // Predicated region
      $region57: #{seq2seq_forward.1} parent=47 // pred_check
        _
      $region58: #{seq2seq_forward.1} parent=47 // pred_check_branch
        %2339 = sbr.rel (%p2336) target = $region60
      $region59: #{seq2seq_forward.1} parent=47 // pred_region
        %v2340 = vlaneseq
        %v2341 = vand.u32 %v2340, 127
        %v2342 = vcvt.s32.f32 %v2341
        %2343 = vmax.xlane.f32.xlu0 %v2316
        %v2344 = vpop.xlane.xlu0 %2343
        %vm2345 = vcmp.eq.f32.partialorder %v2316, %v2344
        %v2346 = vsel %vm2345, %v2342, 128.0
        %2347 = vmin.xlane.f32.xlu0 %v2346
        %v2348 = vpop.xlane.xlu0 %2347
        %vm2349 = vcmp.eq.f32.partialorder %v2342, %v2348
        %v2350 = vsel %vm2349, 1, 0
        %v2351 = vcvt.s32.f32 %v2350
        %v2352 = vld [vmem:[%s5] sm:$0xff]
        %v2353 = vld [vmem:[%s5 + $0x8] sm:$0xff]
        %v2354 = vld [vmem:[%s5 + $0x10] sm:$0xff]
        %v2355 = vld [vmem:[%s5 + $0x18] sm:$0xff]
        %v2356 = vld [vmem:[%s5 + $0x20] sm:$0xff]
        %v2357 = vld [vmem:[%s5 + $0x28] sm:$0xff]
        %v2358 = vld [vmem:[%s5 + $0x30] sm:$0xff]
        %v2359 = vld [vmem:[%s5 + $0x38] sm:$0xff]
        %v2360 = vld [vmem:[%s5 + $0x40] sm:$0xff]
        %v2361 = vld [vmem:[%s5 + $0x48] sm:$0xff]
        %v2362 = vld [vmem:[%s5 + $0x50] sm:$0xff]
        %v2363 = vld [vmem:[%s5 + $0x58] sm:$0xff]
        %v2364 = vld [vmem:[%s5 + $0x60] sm:$0xff]
        %v2365 = vld [vmem:[%s5 + $0x68] sm:$0xff]
        %v2366 = vld [vmem:[%s5 + $0x70] sm:$0xff]
        %v2367 = vld [vmem:[%s5 + $0x78] sm:$0xff]
        %v2368 = vld [vmem:[%s5 + $0x80] sm:$0xff]
        %v2369 = vld [vmem:[%s5 + $0x88] sm:$0xff]
        %v2370 = vld [vmem:[%s5 + $0x90] sm:$0xff]
        %v2371 = vld [vmem:[%s5 + $0x98] sm:$0xff]
        %v2372 = vld [vmem:[%s5 + $0xa0] sm:$0xff]
        %v2373 = vld [vmem:[%s5 + $0xa8] sm:$0xff]
        %v2374 = vld [vmem:[%s5 + $0xb0] sm:$0xff]
        %v2375 = vld [vmem:[%s5 + $0xb8] sm:$0xff]
        %v2376 = vld [vmem:[%s5 + $0xc0] sm:$0xff]
        %v2377 = vld [vmem:[%s5 + $0xc8] sm:$0xff]
        %v2378 = vld [vmem:[%s5 + $0xd0] sm:$0xff]
        %v2379 = vld [vmem:[%s5 + $0xd8] sm:$0xff]
        %v2380 = vld [vmem:[%s5 + $0xe0] sm:$0xff]
        %v2381 = vld [vmem:[%s5 + $0xe8] sm:$0xff]
        %v2382 = vld [vmem:[%s5 + $0xf0] sm:$0xff]
        %v2383 = vld [vmem:[%s5 + $0xf8] sm:$0xff]
        %v2384 = vld [vmem:[%s5 + $0x100] sm:$0xff]
        %v2385 = vld [vmem:[%s5 + $0x108] sm:$0xff]
        %v2386 = vld [vmem:[%s5 + $0x110] sm:$0xff]
        %v2387 = vld [vmem:[%s5 + $0x118] sm:$0xff]
        %v2388 = vld [vmem:[%s5 + $0x120] sm:$0xff]
        %v2389 = vld [vmem:[%s5 + $0x128] sm:$0xff]
        %v2390 = vld [vmem:[%s5 + $0x130] sm:$0xff]
        %v2391 = vld [vmem:[%s5 + $0x138] sm:$0xff]
        %v2392 = vld [vmem:[%s5 + $0x140] sm:$0xff]
        %v2393 = vld [vmem:[%s5 + $0x148] sm:$0xff]
        %v2394 = vld [vmem:[%s5 + $0x150] sm:$0xff]
        %v2395 = vld [vmem:[%s5 + $0x158] sm:$0xff]
        %v2396 = vld [vmem:[%s5 + $0x160] sm:$0xff]
        %v2397 = vld [vmem:[%s5 + $0x168] sm:$0xff]
        %v2398 = vld [vmem:[%s5 + $0x170] sm:$0xff]
        %v2399 = vld [vmem:[%s5 + $0x178] sm:$0xff]
        %v2400 = vld [vmem:[%s5 + $0x180] sm:$0xff]
        %v2401 = vld [vmem:[%s5 + $0x188] sm:$0xff]
        %v2402 = vld [vmem:[%s5 + $0x190] sm:$0xff]
        %v2403 = vld [vmem:[%s5 + $0x198] sm:$0xff]
        %v2404 = vld [vmem:[%s5 + $0x1a0] sm:$0xff]
        %v2405 = vld [vmem:[%s5 + $0x1a8] sm:$0xff]
        %v2406 = vld [vmem:[%s5 + $0x1b0] sm:$0xff]
        %v2407 = vld [vmem:[%s5 + $0x1b8] sm:$0xff]
        %v2408 = vld [vmem:[%s5 + $0x1c0] sm:$0xff]
        %v2409 = vld [vmem:[%s5 + $0x1c8] sm:$0xff]
        %v2410 = vld [vmem:[%s5 + $0x1d0] sm:$0xff]
        %v2411 = vld [vmem:[%s5 + $0x1d8] sm:$0xff]
        %v2412 = vld [vmem:[%s5 + $0x1e0] sm:$0xff]
        %v2413 = vld [vmem:[%s5 + $0x1e8] sm:$0xff]
        %v2414 = vld [vmem:[%s5 + $0x1f0] sm:$0xff]
        %v2415 = vld [vmem:[%s5 + $0x1f8] sm:$0xff]
        %2416 = vmatpush.msra.mxu0 %v2412
        %2417 = vmatpush.msra.mxu0 %v2408
        %2418 = vmatpush.msra.mxu0 %v2404
        %2419 = vmatpush.msra.mxu0 %v2400
        %2420 = vmatpush.msra.mxu0 %v2396
        %2421 = vmatpush.msra.mxu0 %v2392
        %2422 = vmatpush.msra.mxu0 %v2388
        %2423 = vmatpush.msra.mxu0 %v2384
        %2424 = vmatpush.msra.mxu0 %v2380
        %2425 = vmatpush.msra.mxu0 %v2376
        %2426 = vmatpush.msra.mxu0 %v2372
        %2427 = vmatpush.msra.mxu0 %v2368
        %2428 = vmatpush.msra.mxu0 %v2364
        %2429 = vmatpush.msra.mxu0 %v2360
        %2430 = vmatpush.msra.mxu0 %v2356
        %2431 = vmatpush.msra.mxu0 %v2352
        %2432 = vmatmul.f32.gmra.mxu0 %v2351
        %v2433 = vpop.f32.mrf.mxu0
        %v2434 = vadd.f32 0.0, %v2433
        %2435 = vdwg.mxu0
        %2436 = vmatpush.msra.mxu0 %v2413
        %2437 = vmatpush.msra.mxu0 %v2409
        %2438 = vmatpush.msra.mxu0 %v2405
        %2439 = vmatpush.msra.mxu0 %v2401
        %2440 = vmatpush.msra.mxu0 %v2397
        %2441 = vmatpush.msra.mxu0 %v2393
        %2442 = vmatpush.msra.mxu0 %v2389
        %2443 = vmatpush.msra.mxu0 %v2385
        %2444 = vmatpush.msra.mxu0 %v2381
        %2445 = vmatpush.msra.mxu0 %v2377
        %2446 = vmatpush.msra.mxu0 %v2373
        %2447 = vmatpush.msra.mxu0 %v2369
        %2448 = vmatpush.msra.mxu0 %v2365
        %2449 = vmatpush.msra.mxu0 %v2361
        %2450 = vmatpush.msra.mxu0 %v2357
        %2451 = vmatpush.msra.mxu0 %v2353
        %2452 = vmatmul.f32.gmra.mxu0 %v2351
        %v2453 = vpop.f32.mrf.mxu0
        %v2454 = vadd.f32 0.0, %v2453
        %2455 = vdwg.mxu0
        %2456 = vmatpush.msra.mxu0 %v2414
        %2457 = vmatpush.msra.mxu0 %v2410
        %2458 = vmatpush.msra.mxu0 %v2406
        %2459 = vmatpush.msra.mxu0 %v2402
        %2460 = vmatpush.msra.mxu0 %v2398
        %2461 = vmatpush.msra.mxu0 %v2394
        %2462 = vmatpush.msra.mxu0 %v2390
        %2463 = vmatpush.msra.mxu0 %v2386
        %2464 = vmatpush.msra.mxu0 %v2382
        %2465 = vmatpush.msra.mxu0 %v2378
        %2466 = vmatpush.msra.mxu0 %v2374
        %2467 = vmatpush.msra.mxu0 %v2370
        %2468 = vmatpush.msra.mxu0 %v2366
        %2469 = vmatpush.msra.mxu0 %v2362
        %2470 = vmatpush.msra.mxu0 %v2358
        %2471 = vmatpush.msra.mxu0 %v2354
        %2472 = vmatmul.f32.gmra.mxu0 %v2351
        %v2473 = vpop.f32.mrf.mxu0
        %v2474 = vadd.f32 0.0, %v2473
        %2475 = vdwg.mxu0
        %2476 = vmatpush.msra.mxu0 %v2415
        %2477 = vmatpush.msra.mxu0 %v2411
        %2478 = vmatpush.msra.mxu0 %v2407
        %2479 = vmatpush.msra.mxu0 %v2403
        %2480 = vmatpush.msra.mxu0 %v2399
        %2481 = vmatpush.msra.mxu0 %v2395
        %2482 = vmatpush.msra.mxu0 %v2391
        %2483 = vmatpush.msra.mxu0 %v2387
        %2484 = vmatpush.msra.mxu0 %v2383
        %2485 = vmatpush.msra.mxu0 %v2379
        %2486 = vmatpush.msra.mxu0 %v2375
        %2487 = vmatpush.msra.mxu0 %v2371
        %2488 = vmatpush.msra.mxu0 %v2367
        %2489 = vmatpush.msra.mxu0 %v2363
        %2490 = vmatpush.msra.mxu0 %v2359
        %2491 = vmatpush.msra.mxu0 %v2355
        %2492 = vmatmul.f32.gmra.mxu0 %v2351
        %v2493 = vpop.f32.mrf.mxu0
        %v2494 = vadd.f32 0.0, %v2493
        %2495 = vdwg.mxu0
        %2496 = vst [vmem:[#allocation4] sm:$0xff] %v2434
        %2497 = vst [vmem:[#allocation4 + $0x8] sm:$0xff] %v2454
        %2498 = vst [vmem:[#allocation4 + $0x10] sm:$0xff] %v2474
        %2499 = vst [vmem:[#allocation4 + $0x18] sm:$0xff] %v2494
      $region60: #{seq2seq_forward.1} parent=47 // pred_fallthru
        _
      %p2500 = scmp.lt.s32.totalorder %s27, 7
      %s2501 = scalar_select %p2500, %s27, 7
      %s2502 = smul.addr %s2501, 8
      %s2503 = scalar_lea.vmem %s8, %s2502
      // Predicated region
      $region61: #{seq2seq_forward.1} parent=47 // pred_check
        %p2504 = pneg %p197
      $region62: #{seq2seq_forward.1} parent=47 // pred_check_branch
        %2506 = sbr.rel (%p2504) target = $region64
      $region63: #{seq2seq_forward.1} parent=47 // pred_region
        _
      $region64: #{seq2seq_forward.1} parent=47 // pred_fallthru
        _
    $region48: #{seq2seq_forward.1} parent=5 // pred_fallthru
      _
    %p2507 = scmp.le.s32.totalorder 2, %s22
    // Predicated region
    $region65: #{seq2seq_forward.1} parent=5 // pred_check
      %p2508 = pneg %p2507
    $region66: #{seq2seq_forward.1} parent=5 // pred_check_branch
      %2510 = sbr.rel (%p2508) target = $region68
    $region67: #{seq2seq_forward.1} parent=5 // pred_region
      %s2511 = ssub.s32 %s22, 2
      // Predicated region
      $region69: #{seq2seq_forward.1} parent=67 // pred_check
        %p2512 = pneg %p203
      $region70: #{seq2seq_forward.1} parent=67 // pred_check_branch
        %2514 = sbr.rel (%p2512) target = $region72
      $region71: #{seq2seq_forward.1} parent=67 // pred_region
        %p2515 = scmp.lt.s32.totalorder %s28, 7
        %s2516 = scalar_select %p2515, %s28, 7
        %s2517 = smul.addr %s2516, 8
        %s2518 = scalar_lea.vmem %s8, %s2517
      $region72: #{seq2seq_forward.1} parent=67 // pred_fallthru
        _
    $region68: #{seq2seq_forward.1} parent=5 // pred_fallthru
      _
  $region6: #{seq2seq_forward.1} parent=0 // loop_footer
    %s26 = sadd.s32 1, %s22
  $region7: #{seq2seq_forward.1} parent=0 // loop_footer_branch
    %21 = sbr.rel target = $region3
  $region8: #{seq2seq_forward.1} parent=0 // loop_exit
    _

</llo_original>
